<compile_context>
chip_gen: v5e
topology: v5e:2x2
jax: 0.10.0
libtpu: 0.0.40
codegen_flags: <defaults>
</compile_context>

<pallas_src>
import jax
import jax.numpy as jnp
from jax.experimental import pallas as pl
from jax.experimental.pallas import tpu as pltpu

LANE = 128
LHALO = 8                       # sublane-aligned left halo for h1/h2 scratch
VMEM_LIMIT = 48 * 1024 * 1024   # explicit scoped-VMEM budget (safe on v5e/v6e/v7x)


def _round_up(n, m=LANE):
    return ((n + m - 1) // m) * m


def _pick_strip(h, target=8):
    th = 1
    for d in range(1, min(h, target) + 1):
        if h % d == 0:
            th = d
    return th


# -----------------------------------------------------------------------------
# Kernel 1: fused conv1(3x3)+ReLU -> conv2(3x3)+ReLU -> conv3(3x3) on one
# (batch, row-strip) block per grid step.  Intermediates live in f32 VMEM
# scratch with a 1-pixel halo; also emits per-(batch, strip) BN partial stats.
# Weights are pre-packed per-dy: (3, 3*Cin_p, Cout_p) bf16.
# -----------------------------------------------------------------------------
def _fused_convs(xp, w1, b1, w2, b2, w3, b3, *, H, W, TH):
    B, Hp, Wp, Cin_p = xp.shape            # Hp = H + 6, Wp = W + 2
    Cout_p = w3.shape[-1]
    S = H // TH
    WPAD = W + 2 * LHALO

    def kernel(xp_ref, w1_ref, b1_ref, w2_ref, b2_ref, w3_ref, b3_ref,
               y3_ref, stats_ref, h1_ref, h2_ref):
        s = pl.program_id(1)
        r0 = pl.multiple_of(s * TH, TH)            # first output row of the strip

        # Zero only the halo COLUMNS of the scratch (no full memset).
        h1_ref[:, 0:LHALO, :] = jnp.zeros((TH + 4, LHALO, Cin_p), jnp.float32)
        h1_ref[:, LHALO + W:, :] = jnp.zeros((TH + 4, LHALO, Cin_p), jnp.float32)
        h2_ref[:, 0:LHALO, :] = jnp.zeros((TH + 2, LHALO, Cin_p), jnp.float32)
        h2_ref[:, LHALO + W:, :] = jnp.zeros((TH + 2, LHALO, Cin_p), jnp.float32)

        def conv3x3(src, rows_out, w_ref, b_row):
            # src: (rows_out + 2, W + 2, C) bf16 with 1-column zero halo.
            # Per-dy row-slab matmuls, K = 3*C, accumulated in f32.
            c3 = 3 * src.shape[-1]
            acc = None
            for dy in range(3):
                slab = jnp.concatenate(
                    [src[dy:dy + rows_out, dx:dx + W, :] for dx in range(3)],
                    axis=-1).reshape(rows_out * W, c3)
                part = jnp.dot(slab, w_ref[dy],
                               preferred_element_type=jnp.float32)
                acc = part if acc is None else acc + part
            return acc + b_row

        # ---- conv1 + ReLU -> h1 rows [r0-2, r0+TH+2) (includes halo rows
        # needed by conv2/conv3); interior columns sublane-aligned at LHALO.
        xin = xp_ref[pl.ds(r0, TH + 6), :, :].astype(jnp.bfloat16)
        y1 = conv3x3(xin, TH + 4, w1_ref, b1_ref[...])
        y1 = jnp.maximum(y1, 0.0)                           # f32 elementwise
        h1_ref[:, LHALO:LHALO + W, :] = y1.reshape(TH + 4, W, Cin_p)

        # Rows outside the image must be exactly zero (SAME padding of conv2).
        @pl.when(s == 0)
        def _():
            h1_ref[0:2, :, :] = jnp.zeros((2, WPAD, Cin_p), jnp.float32)

        @pl.when(s == S - 1)
        def _():
            h1_ref[TH + 2:TH + 4, :, :] = jnp.zeros((2, WPAD, Cin_p), jnp.float32)

        # ---- conv2 + ReLU -> h2 rows [r0-1, r0+TH+1)
        src2 = h1_ref[:, LHALO - 1:LHALO + W + 1, :].astype(jnp.bfloat16)
        y2 = conv3x3(src2, TH + 2, w2_ref, b2_ref[...])
        y2 = jnp.maximum(y2, 0.0)
        h2_ref[:, LHALO:LHALO + W, :] = y2.reshape(TH + 2, W, Cin_p)

        @pl.when(s == 0)
        def _():
            h2_ref[0:1, :, :] = jnp.zeros((1, WPAD, Cin_p), jnp.float32)

        @pl.when(s == S - 1)
        def _():
            h2_ref[TH + 1:TH + 2, :, :] = jnp.zeros((1, WPAD, Cin_p), jnp.float32)

        # ---- conv3 (BN applied in the epilogue kernel)
        src3 = h2_ref[:, LHALO - 1:LHALO + W + 1, :].astype(jnp.bfloat16)
        y3 = conv3x3(src3, TH, w3_ref, b3_ref[...])         # (TH*W, Cout_p) f32

        # BN partial statistics as sublane reductions (free next to the MXU
        # matmuls), taken from the f32 accumulator before the bf16 hand-off.
        ssum = jnp.sum(y3, axis=0, keepdims=True)
        ssq = jnp.sum(y3 * y3, axis=0, keepdims=True)
        stats_ref[0] = jnp.concatenate([ssum, ssq], axis=0)

        y3_ref[...] = y3.reshape(TH, W, Cout_p).astype(y3_ref.dtype)

    return pl.pallas_call(
        kernel,
        out_shape=(jax.ShapeDtypeStruct((B, H, W, Cout_p), jnp.bfloat16),
                   jax.ShapeDtypeStruct((B, S, 2, Cout_p), jnp.float32)),
        grid=(B, S),
        in_specs=[
            # Padded input: index-invariant along the strip axis -> stays
            # VMEM-resident, DMA'd once per batch element.
            pl.BlockSpec((None, Hp, Wp, Cin_p), lambda b, s: (b, 0, 0, 0)),
            # TODO(synk): single-buffer these constant blocks with
            # pipeline_mode=pl.Buffered(1) once available in the deployed JAX;
            # at C>=512 that halves their VMEM footprint.
            pl.BlockSpec((3, 3 * Cin_p, Cin_p), lambda b, s: (0, 0, 0)),
            pl.BlockSpec((1, Cin_p), lambda b, s: (0, 0)),
            pl.BlockSpec((3, 3 * Cin_p, Cin_p), lambda b, s: (0, 0, 0)),
            pl.BlockSpec((1, Cin_p), lambda b, s: (0, 0)),
            pl.BlockSpec((3, 3 * Cin_p, Cout_p), lambda b, s: (0, 0, 0)),
            pl.BlockSpec((1, Cout_p), lambda b, s: (0, 0)),
        ],
        out_specs=(
            pl.BlockSpec((None, TH, W, Cout_p), lambda b, s: (b, s, 0, 0)),
            pl.BlockSpec((None, 1, 2, Cout_p), lambda b, s: (b, s, 0, 0)),
        ),
        scratch_shapes=[pltpu.VMEM((TH + 4, WPAD, Cin_p), jnp.float32),
                        pltpu.VMEM((TH + 2, WPAD, Cin_p), jnp.float32)],
        compiler_params=pltpu.CompilerParams(
            dimension_semantics=("parallel", "parallel"),
            vmem_limit_bytes=VMEM_LIMIT),
    )(xp, w1, b1, w2, b2, w3, b3)


# -----------------------------------------------------------------------------
# Kernel 2: BN apply (precomputed scale/shift) + 1x1 skip conv + residual add +
# ReLU, one (batch, row-strip) block per grid step, lane-dense (TH*W, C) math.
# -----------------------------------------------------------------------------
def _bn_skip_relu(y3, xp, w_skip, b_skip, scale, shift, *, H, W, TH):
    B = y3.shape[0]
    Cout_p = y3.shape[-1]
    _, Hp, Wp, Cin_p = xp.shape
    S = H // TH

    def kernel(y3_ref, xp_ref, wsk_ref, bsk_ref, scale_ref, shift_ref, o_ref):
        s = pl.program_id(1)
        r0 = pl.multiple_of(s * TH, TH)

        y = y3_ref[...].astype(jnp.float32).reshape(TH * W, Cout_p)
        xrows = xp_ref[pl.ds(r0 + 3, TH), :, :]              # (TH, W+2, Cin_p) f32
        xb = xrows[:, 1:W + 1, :].astype(jnp.bfloat16).reshape(TH * W, Cin_p)

        skip = jnp.dot(xb, wsk_ref[...],
                       preferred_element_type=jnp.float32) + bsk_ref[...]
        out = y * scale_ref[...] + shift_ref[...] + skip
        o_ref[...] = jnp.maximum(out, 0.0).reshape(TH, W, Cout_p).astype(o_ref.dtype)

    return pl.pallas_call(
        kernel,
        out_shape=jax.ShapeDtypeStruct((B, H, W, Cout_p), jnp.float32),
        grid=(B, S),
        in_specs=[
            pl.BlockSpec((None, TH, W, Cout_p), lambda b, s: (b, s, 0, 0)),
            pl.BlockSpec((None, Hp, Wp, Cin_p), lambda b, s: (b, 0, 0, 0)),
            pl.BlockSpec((Cin_p, Cout_p), lambda b, s: (0, 0)),
            pl.BlockSpec((1, Cout_p), lambda b, s: (0, 0)),
            pl.BlockSpec((1, Cout_p), lambda b, s: (0, 0)),
            pl.BlockSpec((1, Cout_p), lambda b, s: (0, 0)),
        ],
        out_specs=pl.BlockSpec((None, TH, W, Cout_p), lambda b, s: (b, s, 0, 0)),
        compiler_params=pltpu.CompilerParams(
            dimension_semantics=("parallel", "parallel"),
            vmem_limit_bytes=VMEM_LIMIT),
    )(y3, xp, w_skip, b_skip, scale, shift)


# -----------------------------------------------------------------------------
# Wrapper-side weight packing (per-dy layout, lane-dense channel padding, bf16).
# -----------------------------------------------------------------------------
def _pack_conv_w(w, cin_p, cout_p):
    # w: (3, 3, cin, cout) HWIO -> (3, 3*cin_p, cout_p) bf16, per-dy rows ordered
    # [dx-major, cin-minor] to match the in-kernel per-dy concat.
    cin, cout = w.shape[2], w.shape[3]
    wp = jnp.zeros((3, 3, cin_p, cout_p), jnp.float32)
    wp = wp.at[:, :, :cin, :cout].set(w.astype(jnp.float32))
    return wp.reshape(3, 3 * cin_p, cout_p).astype(jnp.bfloat16)


def _pad_vec(v, cp):
    return jnp.zeros((cp,), jnp.float32).at[:v.shape[0]].set(v.astype(jnp.float32))


# -----------------------------------------------------------------------------
# Full forward pass.  Input/output are NCHW to match PyTorch.
# -----------------------------------------------------------------------------
def resnet_bottleneck_forward(x_nchw, params):
    eps = 1e-5
    x = jnp.transpose(x_nchw, (0, 2, 3, 1)).astype(jnp.float32)   # NCHW -> NHWC
    B, H, W, Cin = x.shape
    Cout = params["w3"].shape[-1]
    Cin_p, Cout_p = _round_up(Cin), _round_up(Cout)
    TH = _pick_strip(H)

    # Single host-side pad: channels to the lane width plus a 3-row / 1-column
    # zero halo so each row strip (and its 3-conv halo) is sliced straight out
    # of the VMEM-resident block.
    # TODO(synk): fold this pad into kernel 1 by DMAing the unpadded input into
    # a halo'd VMEM scratch (saves one XLA pad pass over x).
    xp = jnp.pad(x, ((0, 0), (3, 3), (1, 1), (0, Cin_p - Cin)))

    w1 = _pack_conv_w(params["w1"], Cin_p, Cin_p)
    w2 = _pack_conv_w(params["w2"], Cin_p, Cin_p)
    w3 = _pack_conv_w(params["w3"], Cin_p, Cout_p)
    b1 = _pad_vec(params["b1"], Cin_p).reshape(1, -1)
    b2 = _pad_vec(params["b2"], Cin_p).reshape(1, -1)
    b3 = _pad_vec(params["b3"], Cout_p).reshape(1, -1)

    y3, stats = _fused_convs(xp, w1, b1, w2, b2, w3, b3, H=H, W=W, TH=TH)

    # BatchNorm2d training-mode statistics over (N, H, W), biased variance.
    # Var from E[x^2]-E[x]^2 on f32 partials, clamped at 0.
    # TODO(synk): switch to a shifted/Welford accumulation for very large N*H*W.
    n = float(B * H * W)
    tot = jnp.sum(stats, axis=(0, 1))                        # (2, Cout_p)
    mean = tot[0] / n
    var = jnp.maximum(tot[1] / n - mean * mean, 0.0)
    gamma = _pad_vec(params["gamma"], Cout_p)
    beta = _pad_vec(params["beta"], Cout_p)
    scale = gamma * jax.lax.rsqrt(var + eps)
    shift = beta - mean * scale

    w_skip = jnp.zeros((Cin_p, Cout_p), jnp.float32)
    w_skip = w_skip.at[:Cin, :Cout].set(params["w_skip"].astype(jnp.float32))
    w_skip = w_skip.astype(jnp.bfloat16)
    b_skip = _pad_vec(params["b_skip"], Cout_p)

    out = _bn_skip_relu(y3, xp, w_skip, b_skip.reshape(1, -1),
                        scale.reshape(1, -1), shift.reshape(1, -1),
                        H=H, W=W, TH=TH)
    out = out[:, :, :, :Cout]                   # drop channel padding
    return jnp.transpose(out, (0, 3, 1, 2))     # -> NCHW


# -----------------------------------------------------------------------------
# Pure-JAX reference mirroring the kernel's bf16-operand / f32-accumulate policy
# (products in bf16 on the MXU, all accumulation and elementwise math in f32),
# so the comparison isolates structural / indexing bugs.
# -----------------------------------------------------------------------------
def reference_forward(x_nchw, params):
    eps = 1e-5
    f32, bf16 = jnp.float32, jnp.bfloat16
    x = jnp.transpose(x_nchw, (0, 2, 3, 1)).astype(f32)
    B, H, W, Cin = x.shape
    Cout = params["w3"].shape[-1]

    def conv(h, w, b):
        return jax.lax.conv_general_dilated(
            h.astype(bf16), w.astype(bf16), window_strides=(1, 1), padding="SAME",
            dimension_numbers=("NHWC", "HWIO", "NHWC"),
            preferred_element_type=f32) + b

    y1 = jax.nn.relu(conv(x, params["w1"], params["b1"]))
    y2 = jax.nn.relu(conv(y1, params["w2"], params["b2"]))
    y3 = conv(y2, params["w3"], params["b3"])

    mean = jnp.mean(y3, axis=(0, 1, 2))
    var = jnp.mean((y3 - mean) ** 2, axis=(0, 1, 2))
    scale = params["gamma"] * jax.lax.rsqrt(var + eps)
    shift = params["beta"] - mean * scale
    y3q = y3.astype(bf16).astype(f32)           # bf16 hand-off between kernels

    skip = jax.lax.dot_general(
        x.reshape(B * H * W, Cin).astype(bf16),
        params["w_skip"].astype(bf16),
        (((1,), (0,)), ((), ())),
        preferred_element_type=f32).reshape(B, H, W, Cout) + params["b_skip"]

    out = jax.nn.relu(y3q * scale + shift + skip)
    return jnp.transpose(out, (0, 3, 1, 2))


def init_params(key, cin, cout):
    ks = jax.random.split(key, 8)
    s = 0.2
    return {
        "w1": s * jax.random.normal(ks[0], (3, 3, cin, cin), jnp.float32),
        "b1": s * jax.random.normal(ks[1], (cin,), jnp.float32),
        "w2": s * jax.random.normal(ks[2], (3, 3, cin, cin), jnp.float32),
        "b2": s * jax.random.normal(ks[3], (cin,), jnp.float32),
        "w3": s * jax.random.normal(ks[4], (3, 3, cin, cout), jnp.float32),
        "b3": s * jax.random.normal(ks[5], (cout,), jnp.float32),
        "w_skip": s * jax.random.normal(ks[6], (cin, cout), jnp.float32),
        "b_skip": s * jax.random.normal(ks[7], (cout,), jnp.float32),
        "gamma": jnp.ones((cout,), jnp.float32),
        "beta": jnp.zeros((cout,), jnp.float32),
    }


if __name__ == "__main__":
    B, Cin, Cout, H, W = 2, 4, 8, 16, 16
    key = jax.random.PRNGKey(0)
    k_x, k_p = jax.random.split(key)
    x = jax.random.normal(k_x, (B, Cin, H, W), jnp.float32)   # NCHW like PyTorch
    params = init_params(k_p, Cin, Cout)

    fwd = jax.jit(resnet_bottleneck_forward)
    out = jax.block_until_ready(fwd(x, params))

    ref = jax.block_until_ready(reference_forward(x, params))
    assert out.shape == (B, Cout, H, W)
    # Tolerance documents the bf16 MXU-operand / f32-accumulation policy.
    assert jnp.allclose(out, ref, atol=1e-2, rtol=1e-2), "mismatch vs reference"

    print("KERNEL_OK")
</pallas_src>

<mosaic_0001>
module attributes {stable_mosaic.version = 11 : i64} {
  func.func @kernel(%arg0: i32, %arg1: i32, %arg2: memref<1x22x18x128xf32, #tpu.memory_space<vmem>>, %arg3: memref<3x384x128xbf16, #tpu.memory_space<vmem>>, %arg4: memref<1x128xf32, #tpu.memory_space<vmem>>, %arg5: memref<3x384x128xbf16, #tpu.memory_space<vmem>>, %arg6: memref<1x128xf32, #tpu.memory_space<vmem>>, %arg7: memref<3x384x128xbf16, #tpu.memory_space<vmem>>, %arg8: memref<1x128xf32, #tpu.memory_space<vmem>>, %arg9: memref<1x8x16x128xbf16, #tpu.memory_space<vmem>>, %arg10: memref<1x1x2x128xf32, #tpu.memory_space<vmem>>, %arg11: memref<12x32x128xf32, #tpu.memory_space<vmem>>, %arg12: memref<10x32x128xf32, #tpu.memory_space<vmem>>) attributes {dimension_semantics = [#tpu.dimension_semantics<parallel>, #tpu.dimension_semantics<parallel>], iteration_bounds = array<i64: 2, 2>, scalar_prefetch = 0 : i64, scratch_operands = 2 : i64, tpu.core_type = #tpu.core_type<tc>, window_params = [{transform_indices = @transform_0, window_bounds = array<i64: 1, 22, 18, 128>}, {pipeline_mode = #tpu.pipeline_mode<synchronous>, transform_indices = @transform_1, window_bounds = array<i64: 3, 384, 128>}, {pipeline_mode = #tpu.pipeline_mode<synchronous>, transform_indices = @transform_2, window_bounds = array<i64: 1, 128>}, {pipeline_mode = #tpu.pipeline_mode<synchronous>, transform_indices = @transform_3, window_bounds = array<i64: 3, 384, 128>}, {pipeline_mode = #tpu.pipeline_mode<synchronous>, transform_indices = @transform_4, window_bounds = array<i64: 1, 128>}, {pipeline_mode = #tpu.pipeline_mode<synchronous>, transform_indices = @transform_5, window_bounds = array<i64: 3, 384, 128>}, {pipeline_mode = #tpu.pipeline_mode<synchronous>, transform_indices = @transform_6, window_bounds = array<i64: 1, 128>}, {transform_indices = @transform_7, window_bounds = array<i64: 1, 8, 16, 128>}, {transform_indices = @transform_8, window_bounds = array<i64: 1, 1, 2, 128>}]} {
    %c8_i32 = arith.constant 8 : i32
    %0 = arith.muli %arg1, %c8_i32 : i32
    %1 = tpu.assume_multiple %0, 8 : i32
    %cst = arith.constant 0.000000e+00 : f32
    %2 = vector.broadcast %cst : f32 to vector<12x8x128xf32>
    %c0 = arith.constant 0 : index
    %c0_0 = arith.constant 0 : index
    %c0_1 = arith.constant 0 : index
    %3 = vector.load %arg11[%c0, %c0_0, %c0_1] : memref<12x32x128xf32, #tpu.memory_space<vmem>>, vector<12x8x128xf32>
    tpu.vector_store %arg11[%c0, %c0_0, %c0_1], %2 {strides = array<i32>} : memref<12x32x128xf32, #tpu.memory_space<vmem>>, vector<12x8x128xf32>,
    %cst_2 = arith.constant 0.000000e+00 : f32
    %4 = vector.broadcast %cst_2 : f32 to vector<12x8x128xf32>
    %c0_3 = arith.constant 0 : index
    %c24 = arith.constant 24 : index
    %c0_4 = arith.constant 0 : index
    %5 = vector.load %arg11[%c0_3, %c24, %c0_4] : memref<12x32x128xf32, #tpu.memory_space<vmem>>, vector<12x8x128xf32>
    tpu.vector_store %arg11[%c0_3, %c24, %c0_4], %4 {strides = array<i32>} : memref<12x32x128xf32, #tpu.memory_space<vmem>>, vector<12x8x128xf32>,
    %cst_5 = arith.constant 0.000000e+00 : f32
    %6 = vector.broadcast %cst_5 : f32 to vector<10x8x128xf32>
    %c0_6 = arith.constant 0 : index
    %c0_7 = arith.constant 0 : index
    %c0_8 = arith.constant 0 : index
    %7 = vector.load %arg12[%c0_6, %c0_7, %c0_8] : memref<10x32x128xf32, #tpu.memory_space<vmem>>, vector<10x8x128xf32>
    tpu.vector_store %arg12[%c0_6, %c0_7, %c0_8], %6 {strides = array<i32>} : memref<10x32x128xf32, #tpu.memory_space<vmem>>, vector<10x8x128xf32>,
    %cst_9 = arith.constant 0.000000e+00 : f32
    %8 = vector.broadcast %cst_9 : f32 to vector<10x8x128xf32>
    %c0_10 = arith.constant 0 : index
    %c24_11 = arith.constant 24 : index
    %c0_12 = arith.constant 0 : index
    %9 = vector.load %arg12[%c0_10, %c24_11, %c0_12] : memref<10x32x128xf32, #tpu.memory_space<vmem>>, vector<10x8x128xf32>
    tpu.vector_store %arg12[%c0_10, %c24_11, %c0_12], %8 {strides = array<i32>} : memref<10x32x128xf32, #tpu.memory_space<vmem>>, vector<10x8x128xf32>,
    %c0_13 = arith.constant 0 : index
    %10 = arith.index_cast %1 : i32 to index
    %c0_14 = arith.constant 0 : index
    %c0_15 = arith.constant 0 : index
    %11 = vector.load %arg2[%c0_13, %10, %c0_14, %c0_15] : memref<1x22x18x128xf32, #tpu.memory_space<vmem>>, vector<1x14x18x128xf32>
    %12 = vector.shape_cast %11 : vector<1x14x18x128xf32> to vector<14x18x128xf32>
    %13 = arith.truncf %12 : vector<14x18x128xf32> to vector<14x18x128xbf16>
    %c0_16 = arith.constant 0 : index
    %c0_17 = arith.constant 0 : index
    %14 = vector.load %arg4[%c0_16, %c0_17] : memref<1x128xf32, #tpu.memory_space<vmem>>, vector<1x128xf32>
    %15 = vector.extract_strided_slice %13 {offsets = [0, 0, 0], sizes = [12, 16, 128], strides = [1, 1, 1]} : vector<14x18x128xbf16> to vector<12x16x128xbf16>
    %16 = vector.extract_strided_slice %13 {offsets = [0, 1, 0], sizes = [12, 16, 128], strides = [1, 1, 1]} : vector<14x18x128xbf16> to vector<12x16x128xbf16>
    %17 = vector.extract_strided_slice %13 {offsets = [0, 2, 0], sizes = [12, 16, 128], strides = [1, 1, 1]} : vector<14x18x128xbf16> to vector<12x16x128xbf16>
    %18 = tpu.concatenate %15, %16, %17 in 2 : vector<12x16x128xbf16>, vector<12x16x128xbf16>, vector<12x16x128xbf16> -> vector<12x16x384xbf16>
    %19 = vector.shape_cast %18 : vector<12x16x384xbf16> to vector<192x384xbf16>
    %c0_18 = arith.constant 0 : index
    %c0_19 = arith.constant 0 : index
    %c0_20 = arith.constant 0 : index
    %20 = vector.load %arg3[%c0_18, %c0_19, %c0_20] : memref<3x384x128xbf16, #tpu.memory_space<vmem>>, vector<1x384x128xbf16>
    %21 = vector.shape_cast %20 : vector<1x384x128xbf16> to vector<384x128xbf16>
    %cst_21 = arith.constant dense<0.000000e+00> : vector<192x128xf32>
    %22 = tpu.matmul %19, %21, %cst_21 {dimension_numbers = #tpu.dot_dimension_numbers<[1], [0], [0], [1], [0, 0, 1, 1], [], []>} : vector<192x384xbf16>, vector<384x128xbf16>, vector<192x128xf32> -> vector<192x128xf32>
    %23 = vector.extract_strided_slice %13 {offsets = [1, 0, 0], sizes = [12, 16, 128], strides = [1, 1, 1]} : vector<14x18x128xbf16> to vector<12x16x128xbf16>
    %24 = vector.extract_strided_slice %13 {offsets = [1, 1, 0], sizes = [12, 16, 128], strides = [1, 1, 1]} : vector<14x18x128xbf16> to vector<12x16x128xbf16>
    %25 = vector.extract_strided_slice %13 {offsets = [1, 2, 0], sizes = [12, 16, 128], strides = [1, 1, 1]} : vector<14x18x128xbf16> to vector<12x16x128xbf16>
    %26 = tpu.concatenate %23, %24, %25 in 2 : vector<12x16x128xbf16>, vector<12x16x128xbf16>, vector<12x16x128xbf16> -> vector<12x16x384xbf16>
    %27 = vector.shape_cast %26 : vector<12x16x384xbf16> to vector<192x384xbf16>
    %c1 = arith.constant 1 : index
    %c0_22 = arith.constant 0 : index
    %c0_23 = arith.constant 0 : index
    %28 = vector.load %arg3[%c1, %c0_22, %c0_23] : memref<3x384x128xbf16, #tpu.memory_space<vmem>>, vector<1x384x128xbf16>
    %29 = vector.shape_cast %28 : vector<1x384x128xbf16> to vector<384x128xbf16>
    %cst_24 = arith.constant dense<0.000000e+00> : vector<192x128xf32>
    %30 = tpu.matmul %27, %29, %cst_24 {dimension_numbers = #tpu.dot_dimension_numbers<[1], [0], [0], [1], [0, 0, 1, 1], [], []>} : vector<192x384xbf16>, vector<384x128xbf16>, vector<192x128xf32> -> vector<192x128xf32>
    %31 = arith.addf %22, %30 : vector<192x128xf32>
    %32 = vector.extract_strided_slice %13 {offsets = [2, 0, 0], sizes = [12, 16, 128], strides = [1, 1, 1]} : vector<14x18x128xbf16> to vector<12x16x128xbf16>
    %33 = vector.extract_strided_slice %13 {offsets = [2, 1, 0], sizes = [12, 16, 128], strides = [1, 1, 1]} : vector<14x18x128xbf16> to vector<12x16x128xbf16>
    %34 = vector.extract_strided_slice %13 {offsets = [2, 2, 0], sizes = [12, 16, 128], strides = [1, 1, 1]} : vector<14x18x128xbf16> to vector<12x16x128xbf16>
    %35 = tpu.concatenate %32, %33, %34 in 2 : vector<12x16x128xbf16>, vector<12x16x128xbf16>, vector<12x16x128xbf16> -> vector<12x16x384xbf16>
    %36 = vector.shape_cast %35 : vector<12x16x384xbf16> to vector<192x384xbf16>
    %c2 = arith.constant 2 : index
    %c0_25 = arith.constant 0 : index
    %c0_26 = arith.constant 0 : index
    %37 = vector.load %arg3[%c2, %c0_25, %c0_26] : memref<3x384x128xbf16, #tpu.memory_space<vmem>>, vector<1x384x128xbf16>
    %38 = vector.shape_cast %37 : vector<1x384x128xbf16> to vector<384x128xbf16>
    %cst_27 = arith.constant dense<0.000000e+00> : vector<192x128xf32>
    %39 = tpu.matmul %36, %38, %cst_27 {dimension_numbers = #tpu.dot_dimension_numbers<[1], [0], [0], [1], [0, 0, 1, 1], [], []>} : vector<192x384xbf16>, vector<384x128xbf16>, vector<192x128xf32> -> vector<192x128xf32>
    %40 = arith.addf %31, %39 : vector<192x128xf32>
    %41 = vector.broadcast %14 : vector<1x128xf32> to vector<192x128xf32>
    %42 = arith.addf %40, %41 : vector<192x128xf32>
    %cst_28 = arith.constant 0.000000e+00 : f32
    %43 = vector.broadcast %cst_28 : f32 to vector<192x128xf32>
    %44 = arith.maximumf %42, %43 : vector<192x128xf32>
    %45 = vector.shape_cast %44 : vector<192x128xf32> to vector<12x16x128xf32>
    %c0_29 = arith.constant 0 : index
    %c8 = arith.constant 8 : index
    %c0_30 = arith.constant 0 : index
    %46 = vector.load %arg11[%c0_29, %c8, %c0_30] : memref<12x32x128xf32, #tpu.memory_space<vmem>>, vector<12x16x128xf32>
    tpu.vector_store %arg11[%c0_29, %c8, %c0_30], %45 {strides = array<i32>} : memref<12x32x128xf32, #tpu.memory_space<vmem>>, vector<12x16x128xf32>,
    %c0_i32 = arith.constant 0 : i32
    %47 = arith.cmpi eq, %arg1, %c0_i32 : i32
    %48 = arith.extui %47 : i1 to i32
    %c0_i32_31 = arith.constant 0 : i32
    %49 = arith.cmpi ne, %48, %c0_i32_31 : i32
    scf.if %49 {
      %cst_84 = arith.constant 0.000000e+00 : f32
      %139 = vector.broadcast %cst_84 : f32 to vector<2x32x128xf32>
      %c0_85 = arith.constant 0 : index
      %c0_86 = arith.constant 0 : index
      %c0_87 = arith.constant 0 : index
      %140 = vector.load %arg11[%c0_85, %c0_86, %c0_87] : memref<12x32x128xf32, #tpu.memory_space<vmem>>, vector<2x32x128xf32>
      tpu.vector_store %arg11[%c0_85, %c0_86, %c0_87], %139 {strides = array<i32>} : memref<12x32x128xf32, #tpu.memory_space<vmem>>, vector<2x32x128xf32>,
    } else {
    }
    %c1_i32 = arith.constant 1 : i32
    %50 = arith.cmpi eq, %arg1, %c1_i32 : i32
    %51 = arith.extui %50 : i1 to i32
    %c0_i32_32 = arith.constant 0 : i32
    %52 = arith.cmpi ne, %51, %c0_i32_32 : i32
    scf.if %52 {
      %cst_84 = arith.constant 0.000000e+00 : f32
      %139 = vector.broadcast %cst_84 : f32 to vector<2x32x128xf32>
      %c10 = arith.constant 10 : index
      %c0_85 = arith.constant 0 : index
      %c0_86 = arith.constant 0 : index
      %140 = vector.load %arg11[%c10, %c0_85, %c0_86] : memref<12x32x128xf32, #tpu.memory_space<vmem>>, vector<2x32x128xf32>
      tpu.vector_store %arg11[%c10, %c0_85, %c0_86], %139 {strides = array<i32>} : memref<12x32x128xf32, #tpu.memory_space<vmem>>, vector<2x32x128xf32>,
    } else {
    }
    %c0_33 = arith.constant 0 : index
    %c7 = arith.constant 7 : index
    %c0_34 = arith.constant 0 : index
    %53 = vector.load %arg11[%c0_33, %c7, %c0_34] : memref<12x32x128xf32, #tpu.memory_space<vmem>>, vector<12x18x128xf32>
    %54 = arith.truncf %53 : vector<12x18x128xf32> to vector<12x18x128xbf16>
    %c0_35 = arith.constant 0 : index
    %c0_36 = arith.constant 0 : index
    %55 = vector.load %arg6[%c0_35, %c0_36] : memref<1x128xf32, #tpu.memory_space<vmem>>, vector<1x128xf32>
    %56 = vector.extract_strided_slice %54 {offsets = [0, 0, 0], sizes = [10, 16, 128], strides = [1, 1, 1]} : vector<12x18x128xbf16> to vector<10x16x128xbf16>
    %57 = vector.extract_strided_slice %54 {offsets = [0, 1, 0], sizes = [10, 16, 128], strides = [1, 1, 1]} : vector<12x18x128xbf16> to vector<10x16x128xbf16>
    %58 = vector.extract_strided_slice %54 {offsets = [0, 2, 0], sizes = [10, 16, 128], strides = [1, 1, 1]} : vector<12x18x128xbf16> to vector<10x16x128xbf16>
    %59 = tpu.concatenate %56, %57, %58 in 2 : vector<10x16x128xbf16>, vector<10x16x128xbf16>, vector<10x16x128xbf16> -> vector<10x16x384xbf16>
    %60 = vector.shape_cast %59 : vector<10x16x384xbf16> to vector<160x384xbf16>
    %c0_37 = arith.constant 0 : index
    %c0_38 = arith.constant 0 : index
    %c0_39 = arith.constant 0 : index
    %61 = vector.load %arg5[%c0_37, %c0_38, %c0_39] : memref<3x384x128xbf16, #tpu.memory_space<vmem>>, vector<1x384x128xbf16>
    %62 = vector.shape_cast %61 : vector<1x384x128xbf16> to vector<384x128xbf16>
    %cst_40 = arith.constant dense<0.000000e+00> : vector<160x128xf32>
    %63 = tpu.matmul %60, %62, %cst_40 {dimension_numbers = #tpu.dot_dimension_numbers<[1], [0], [0], [1], [0, 0, 1, 1], [], []>} : vector<160x384xbf16>, vector<384x128xbf16>, vector<160x128xf32> -> vector<160x128xf32>
    %64 = vector.extract_strided_slice %54 {offsets = [1, 0, 0], sizes = [10, 16, 128], strides = [1, 1, 1]} : vector<12x18x128xbf16> to vector<10x16x128xbf16>
    %65 = vector.extract_strided_slice %54 {offsets = [1, 1, 0], sizes = [10, 16, 128], strides = [1, 1, 1]} : vector<12x18x128xbf16> to vector<10x16x128xbf16>
    %66 = vector.extract_strided_slice %54 {offsets = [1, 2, 0], sizes = [10, 16, 128], strides = [1, 1, 1]} : vector<12x18x128xbf16> to vector<10x16x128xbf16>
    %67 = tpu.concatenate %64, %65, %66 in 2 : vector<10x16x128xbf16>, vector<10x16x128xbf16>, vector<10x16x128xbf16> -> vector<10x16x384xbf16>
    %68 = vector.shape_cast %67 : vector<10x16x384xbf16> to vector<160x384xbf16>
    %c1_41 = arith.constant 1 : index
    %c0_42 = arith.constant 0 : index
    %c0_43 = arith.constant 0 : index
    %69 = vector.load %arg5[%c1_41, %c0_42, %c0_43] : memref<3x384x128xbf16, #tpu.memory_space<vmem>>, vector<1x384x128xbf16>
    %70 = vector.shape_cast %69 : vector<1x384x128xbf16> to vector<384x128xbf16>
    %cst_44 = arith.constant dense<0.000000e+00> : vector<160x128xf32>
    %71 = tpu.matmul %68, %70, %cst_44 {dimension_numbers = #tpu.dot_dimension_numbers<[1], [0], [0], [1], [0, 0, 1, 1], [], []>} : vector<160x384xbf16>, vector<384x128xbf16>, vector<160x128xf32> -> vector<160x128xf32>
    %72 = arith.addf %63, %71 : vector<160x128xf32>
    %73 = vector.extract_strided_slice %54 {offsets = [2, 0, 0], sizes = [10, 16, 128], strides = [1, 1, 1]} : vector<12x18x128xbf16> to vector<10x16x128xbf16>
    %74 = vector.extract_strided_slice %54 {offsets = [2, 1, 0], sizes = [10, 16, 128], strides = [1, 1, 1]} : vector<12x18x128xbf16> to vector<10x16x128xbf16>
    %75 = vector.extract_strided_slice %54 {offsets = [2, 2, 0], sizes = [10, 16, 128], strides = [1, 1, 1]} : vector<12x18x128xbf16> to vector<10x16x128xbf16>
    %76 = tpu.concatenate %73, %74, %75 in 2 : vector<10x16x128xbf16>, vector<10x16x128xbf16>, vector<10x16x128xbf16> -> vector<10x16x384xbf16>
    %77 = vector.shape_cast %76 : vector<10x16x384xbf16> to vector<160x384xbf16>
    %c2_45 = arith.constant 2 : index
    %c0_46 = arith.constant 0 : index
    %c0_47 = arith.constant 0 : index
    %78 = vector.load %arg5[%c2_45, %c0_46, %c0_47] : memref<3x384x128xbf16, #tpu.memory_space<vmem>>, vector<1x384x128xbf16>
    %79 = vector.shape_cast %78 : vector<1x384x128xbf16> to vector<384x128xbf16>
    %cst_48 = arith.constant dense<0.000000e+00> : vector<160x128xf32>
    %80 = tpu.matmul %77, %79, %cst_48 {dimension_numbers = #tpu.dot_dimension_numbers<[1], [0], [0], [1], [0, 0, 1, 1], [], []>} : vector<160x384xbf16>, vector<384x128xbf16>, vector<160x128xf32> -> vector<160x128xf32>
    %81 = arith.addf %72, %80 : vector<160x128xf32>
    %82 = vector.broadcast %55 : vector<1x128xf32> to vector<160x128xf32>
    %83 = arith.addf %81, %82 : vector<160x128xf32>
    %cst_49 = arith.constant 0.000000e+00 : f32
    %84 = vector.broadcast %cst_49 : f32 to vector<160x128xf32>
    %85 = arith.maximumf %83, %84 : vector<160x128xf32>
    %86 = vector.shape_cast %85 : vector<160x128xf32> to vector<10x16x128xf32>
    %c0_50 = arith.constant 0 : index
    %c8_51 = arith.constant 8 : index
    %c0_52 = arith.constant 0 : index
    %87 = vector.load %arg12[%c0_50, %c8_51, %c0_52] : memref<10x32x128xf32, #tpu.memory_space<vmem>>, vector<10x16x128xf32>
    tpu.vector_store %arg12[%c0_50, %c8_51, %c0_52], %86 {strides = array<i32>} : memref<10x32x128xf32, #tpu.memory_space<vmem>>, vector<10x16x128xf32>,
    %c0_i32_53 = arith.constant 0 : i32
    %88 = arith.cmpi eq, %arg1, %c0_i32_53 : i32
    %89 = arith.extui %88 : i1 to i32
    %c0_i32_54 = arith.constant 0 : i32
    %90 = arith.cmpi ne, %89, %c0_i32_54 : i32
    scf.if %90 {
      %cst_84 = arith.constant 0.000000e+00 : f32
      %139 = vector.broadcast %cst_84 : f32 to vector<1x32x128xf32>
      %c0_85 = arith.constant 0 : index
      %c0_86 = arith.constant 0 : index
      %c0_87 = arith.constant 0 : index
      %140 = vector.load %arg12[%c0_85, %c0_86, %c0_87] : memref<10x32x128xf32, #tpu.memory_space<vmem>>, vector<1x32x128xf32>
      tpu.vector_store %arg12[%c0_85, %c0_86, %c0_87], %139 {strides = array<i32>} : memref<10x32x128xf32, #tpu.memory_space<vmem>>, vector<1x32x128xf32>,
    } else {
    }
    %c1_i32_55 = arith.constant 1 : i32
    %91 = arith.cmpi eq, %arg1, %c1_i32_55 : i32
    %92 = arith.extui %91 : i1 to i32
    %c0_i32_56 = arith.constant 0 : i32
    %93 = arith.cmpi ne, %92, %c0_i32_56 : i32
    scf.if %93 {
      %cst_84 = arith.constant 0.000000e+00 : f32
      %139 = vector.broadcast %cst_84 : f32 to vector<1x32x128xf32>
      %c9 = arith.constant 9 : index
      %c0_85 = arith.constant 0 : index
      %c0_86 = arith.constant 0 : index
      %140 = vector.load %arg12[%c9, %c0_85, %c0_86] : memref<10x32x128xf32, #tpu.memory_space<vmem>>, vector<1x32x128xf32>
      tpu.vector_store %arg12[%c9, %c0_85, %c0_86], %139 {strides = array<i32>} : memref<10x32x128xf32, #tpu.memory_space<vmem>>, vector<1x32x128xf32>,
    } else {
    }
    %c0_57 = arith.constant 0 : index
    %c7_58 = arith.constant 7 : index
    %c0_59 = arith.constant 0 : index
    %94 = vector.load %arg12[%c0_57, %c7_58, %c0_59] : memref<10x32x128xf32, #tpu.memory_space<vmem>>, vector<10x18x128xf32>
    %95 = arith.truncf %94 : vector<10x18x128xf32> to vector<10x18x128xbf16>
    %c0_60 = arith.constant 0 : index
    %c0_61 = arith.constant 0 : index
    %96 = vector.load %arg8[%c0_60, %c0_61] : memref<1x128xf32, #tpu.memory_space<vmem>>, vector<1x128xf32>
    %97 = vector.extract_strided_slice %95 {offsets = [0, 0, 0], sizes = [8, 16, 128], strides = [1, 1, 1]} : vector<10x18x128xbf16> to vector<8x16x128xbf16>
    %98 = vector.extract_strided_slice %95 {offsets = [0, 1, 0], sizes = [8, 16, 128], strides = [1, 1, 1]} : vector<10x18x128xbf16> to vector<8x16x128xbf16>
    %99 = vector.extract_strided_slice %95 {offsets = [0, 2, 0], sizes = [8, 16, 128], strides = [1, 1, 1]} : vector<10x18x128xbf16> to vector<8x16x128xbf16>
    %100 = tpu.concatenate %97, %98, %99 in 2 : vector<8x16x128xbf16>, vector<8x16x128xbf16>, vector<8x16x128xbf16> -> vector<8x16x384xbf16>
    %101 = vector.shape_cast %100 : vector<8x16x384xbf16> to vector<128x384xbf16>
    %c0_62 = arith.constant 0 : index
    %c0_63 = arith.constant 0 : index
    %c0_64 = arith.constant 0 : index
    %102 = vector.load %arg7[%c0_62, %c0_63, %c0_64] : memref<3x384x128xbf16, #tpu.memory_space<vmem>>, vector<1x384x128xbf16>
    %103 = vector.shape_cast %102 : vector<1x384x128xbf16> to vector<384x128xbf16>
    %cst_65 = arith.constant dense<0.000000e+00> : vector<128x128xf32>
    %104 = tpu.matmul %101, %103, %cst_65 {dimension_numbers = #tpu.dot_dimension_numbers<[1], [0], [0], [1], [0, 0, 1, 1], [], []>} : vector<128x384xbf16>, vector<384x128xbf16>, vector<128x128xf32> -> vector<128x128xf32>
    %105 = vector.extract_strided_slice %95 {offsets = [1, 0, 0], sizes = [8, 16, 128], strides = [1, 1, 1]} : vector<10x18x128xbf16> to vector<8x16x128xbf16>
    %106 = vector.extract_strided_slice %95 {offsets = [1, 1, 0], sizes = [8, 16, 128], strides = [1, 1, 1]} : vector<10x18x128xbf16> to vector<8x16x128xbf16>
    %107 = vector.extract_strided_slice %95 {offsets = [1, 2, 0], sizes = [8, 16, 128], strides = [1, 1, 1]} : vector<10x18x128xbf16> to vector<8x16x128xbf16>
    %108 = tpu.concatenate %105, %106, %107 in 2 : vector<8x16x128xbf16>, vector<8x16x128xbf16>, vector<8x16x128xbf16> -> vector<8x16x384xbf16>
    %109 = vector.shape_cast %108 : vector<8x16x384xbf16> to vector<128x384xbf16>
    %c1_66 = arith.constant 1 : index
    %c0_67 = arith.constant 0 : index
    %c0_68 = arith.constant 0 : index
    %110 = vector.load %arg7[%c1_66, %c0_67, %c0_68] : memref<3x384x128xbf16, #tpu.memory_space<vmem>>, vector<1x384x128xbf16>
    %111 = vector.shape_cast %110 : vector<1x384x128xbf16> to vector<384x128xbf16>
    %cst_69 = arith.constant dense<0.000000e+00> : vector<128x128xf32>
    %112 = tpu.matmul %109, %111, %cst_69 {dimension_numbers = #tpu.dot_dimension_numbers<[1], [0], [0], [1], [0, 0, 1, 1], [], []>} : vector<128x384xbf16>, vector<384x128xbf16>, vector<128x128xf32> -> vector<128x128xf32>
    %113 = arith.addf %104, %112 : vector<128x128xf32>
    %114 = vector.extract_strided_slice %95 {offsets = [2, 0, 0], sizes = [8, 16, 128], strides = [1, 1, 1]} : vector<10x18x128xbf16> to vector<8x16x128xbf16>
    %115 = vector.extract_strided_slice %95 {offsets = [2, 1, 0], sizes = [8, 16, 128], strides = [1, 1, 1]} : vector<10x18x128xbf16> to vector<8x16x128xbf16>
    %116 = vector.extract_strided_slice %95 {offsets = [2, 2, 0], sizes = [8, 16, 128], strides = [1, 1, 1]} : vector<10x18x128xbf16> to vector<8x16x128xbf16>
    %117 = tpu.concatenate %114, %115, %116 in 2 : vector<8x16x128xbf16>, vector<8x16x128xbf16>, vector<8x16x128xbf16> -> vector<8x16x384xbf16>
    %118 = vector.shape_cast %117 : vector<8x16x384xbf16> to vector<128x384xbf16>
    %c2_70 = arith.constant 2 : index
    %c0_71 = arith.constant 0 : index
    %c0_72 = arith.constant 0 : index
    %119 = vector.load %arg7[%c2_70, %c0_71, %c0_72] : memref<3x384x128xbf16, #tpu.memory_space<vmem>>, vector<1x384x128xbf16>
    %120 = vector.shape_cast %119 : vector<1x384x128xbf16> to vector<384x128xbf16>
    %cst_73 = arith.constant dense<0.000000e+00> : vector<128x128xf32>
    %121 = tpu.matmul %118, %120, %cst_73 {dimension_numbers = #tpu.dot_dimension_numbers<[1], [0], [0], [1], [0, 0, 1, 1], [], []>} : vector<128x384xbf16>, vector<384x128xbf16>, vector<128x128xf32> -> vector<128x128xf32>
    %122 = arith.addf %113, %121 : vector<128x128xf32>
    %123 = vector.broadcast %96 : vector<1x128xf32> to vector<128x128xf32>
    %124 = arith.addf %122, %123 : vector<128x128xf32>
    %cst_74 = arith.constant dense<0.000000e+00> : vector<128xf32>
    %125 = vector.multi_reduction <add>, %124, %cst_74 [0] : vector<128x128xf32> to vector<128xf32>
    %126 = vector.shape_cast %125 : vector<128xf32> to vector<1x128xf32>
    %127 = arith.mulf %124, %124 : vector<128x128xf32>
    %cst_75 = arith.constant dense<0.000000e+00> : vector<128xf32>
    %128 = vector.multi_reduction <add>, %127, %cst_75 [0] : vector<128x128xf32> to vector<128xf32>
    %129 = vector.shape_cast %128 : vector<128xf32> to vector<1x128xf32>
    %130 = tpu.concatenate %126, %129 in 0 : vector<1x128xf32>, vector<1x128xf32> -> vector<2x128xf32>
    %c0_76 = arith.constant 0 : index
    %c0_77 = arith.constant 0 : index
    %c0_78 = arith.constant 0 : index
    %c0_79 = arith.constant 0 : index
    %131 = vector.load %arg10[%c0_76, %c0_77, %c0_78, %c0_79] : memref<1x1x2x128xf32, #tpu.memory_space<vmem>>, vector<1x1x2x128xf32>
    %132 = vector.shape_cast %131 : vector<1x1x2x128xf32> to vector<2x128xf32>
    %133 = vector.shape_cast %130 : vector<2x128xf32> to vector<1x1x2x128xf32>
    tpu.vector_store %arg10[%c0_76, %c0_77, %c0_78, %c0_79], %133 {strides = array<i32>} : memref<1x1x2x128xf32, #tpu.memory_space<vmem>>, vector<1x1x2x128xf32>,
    %134 = vector.shape_cast %124 : vector<128x128xf32> to vector<8x16x128xf32>
    %135 = arith.truncf %134 : vector<8x16x128xf32> to vector<8x16x128xbf16>
    %c0_80 = arith.constant 0 : index
    %c0_81 = arith.constant 0 : index
    %c0_82 = arith.constant 0 : index
    %c0_83 = arith.constant 0 : index
    %136 = vector.load %arg9[%c0_80, %c0_81, %c0_82, %c0_83] : memref<1x8x16x128xbf16, #tpu.memory_space<vmem>>, vector<1x8x16x128xbf16>
    %137 = vector.shape_cast %136 : vector<1x8x16x128xbf16> to vector<8x16x128xbf16>
    %138 = vector.shape_cast %135 : vector<8x16x128xbf16> to vector<1x8x16x128xbf16>
    tpu.vector_store %arg9[%c0_80, %c0_81, %c0_82, %c0_83], %138 {strides = array<i32>} : memref<1x8x16x128xbf16, #tpu.memory_space<vmem>>, vector<1x8x16x128xbf16>,
    return
  }
  func.func @transform_0(%arg0: i32, %arg1: i32) -> (i32, i32, i32, i32) {
    %c0_i32 = arith.constant 0 : i32
    %c0_i32_0 = arith.constant 0 : i32
    %c0_i32_1 = arith.constant 0 : i32
    %c0_i32_2 = arith.constant 0 : i32
    return %arg0, %c0_i32, %c0_i32_0, %c0_i32_1 : i32, i32, i32, i32
  }
  func.func @transform_1(%arg0: i32, %arg1: i32) -> (i32, i32, i32) {
    %c0_i32 = arith.constant 0 : i32
    %c0_i32_0 = arith.constant 0 : i32
    %c0_i32_1 = arith.constant 0 : i32
    %c0_i32_2 = arith.constant 0 : i32
    return %c0_i32, %c0_i32_0, %c0_i32_1 : i32, i32, i32
  }
  func.func @transform_2(%arg0: i32, %arg1: i32) -> (i32, i32) {
    %c0_i32 = arith.constant 0 : i32
    %c0_i32_0 = arith.constant 0 : i32
    %c0_i32_1 = arith.constant 0 : i32
    return %c0_i32, %c0_i32_0 : i32, i32
  }
  func.func @transform_3(%arg0: i32, %arg1: i32) -> (i32, i32, i32) {
    %c0_i32 = arith.constant 0 : i32
    %c0_i32_0 = arith.constant 0 : i32
    %c0_i32_1 = arith.constant 0 : i32
    %c0_i32_2 = arith.constant 0 : i32
    return %c0_i32, %c0_i32_0, %c0_i32_1 : i32, i32, i32
  }
  func.func @transform_4(%arg0: i32, %arg1: i32) -> (i32, i32) {
    %c0_i32 = arith.constant 0 : i32
    %c0_i32_0 = arith.constant 0 : i32
    %c0_i32_1 = arith.constant 0 : i32
    return %c0_i32, %c0_i32_0 : i32, i32
  }
  func.func @transform_5(%arg0: i32, %arg1: i32) -> (i32, i32, i32) {
    %c0_i32 = arith.constant 0 : i32
    %c0_i32_0 = arith.constant 0 : i32
    %c0_i32_1 = arith.constant 0 : i32
    %c0_i32_2 = arith.constant 0 : i32
    return %c0_i32, %c0_i32_0, %c0_i32_1 : i32, i32, i32
  }
  func.func @transform_6(%arg0: i32, %arg1: i32) -> (i32, i32) {
    %c0_i32 = arith.constant 0 : i32
    %c0_i32_0 = arith.constant 0 : i32
    %c0_i32_1 = arith.constant 0 : i32
    return %c0_i32, %c0_i32_0 : i32, i32
  }
  func.func @transform_7(%arg0: i32, %arg1: i32) -> (i32, i32, i32, i32) {
    %c0_i32 = arith.constant 0 : i32
    %c0_i32_0 = arith.constant 0 : i32
    %c0_i32_1 = arith.constant 0 : i32
    return %arg0, %arg1, %c0_i32, %c0_i32_0 : i32, i32, i32, i32
  }
  func.func @transform_8(%arg0: i32, %arg1: i32) -> (i32, i32, i32, i32) {
    %c0_i32 = arith.constant 0 : i32
    %c0_i32_0 = arith.constant 0 : i32
    %c0_i32_1 = arith.constant 0 : i32
    return %arg0, %arg1, %c0_i32, %c0_i32_0 : i32, i32, i32, i32
  }
}

module attributes {stable_mosaic.version = 11 : i64} {
  func.func @kernel(%arg0: i32, %arg1: i32, %arg2: memref<1x8x16x128xbf16, #tpu.memory_space<vmem>>, %arg3: memref<1x22x18x128xf32, #tpu.memory_space<vmem>>, %arg4: memref<128x128xbf16, #tpu.memory_space<vmem>>, %arg5: memref<1x128xf32, #tpu.memory_space<vmem>>, %arg6: memref<1x128xf32, #tpu.memory_space<vmem>>, %arg7: memref<1x128xf32, #tpu.memory_space<vmem>>, %arg8: memref<1x8x16x128xf32, #tpu.memory_space<vmem>>) attributes {dimension_semantics = [#tpu.dimension_semantics<parallel>, #tpu.dimension_semantics<parallel>], iteration_bounds = array<i64: 2, 2>, scalar_prefetch = 0 : i64, scratch_operands = 0 : i64, tpu.core_type = #tpu.core_type<tc>, window_params = [{transform_indices = @transform_0, window_bounds = array<i64: 1, 8, 16, 128>}, {transform_indices = @transform_1, window_bounds = array<i64: 1, 22, 18, 128>}, {pipeline_mode = #tpu.pipeline_mode<synchronous>, transform_indices = @transform_2, window_bounds = array<i64: 128, 128>}, {pipeline_mode = #tpu.pipeline_mode<synchronous>, transform_indices = @transform_3, window_bounds = array<i64: 1, 128>}, {pipeline_mode = #tpu.pipeline_mode<synchronous>, transform_indices = @transform_4, window_bounds = array<i64: 1, 128>}, {pipeline_mode = #tpu.pipeline_mode<synchronous>, transform_indices = @transform_5, window_bounds = array<i64: 1, 128>}, {transform_indices = @transform_6, window_bounds = array<i64: 1, 8, 16, 128>}]} {
    %c8_i32 = arith.constant 8 : i32
    %0 = arith.muli %arg1, %c8_i32 : i32
    %1 = tpu.assume_multiple %0, 8 : i32
    %c0 = arith.constant 0 : index
    %c0_0 = arith.constant 0 : index
    %c0_1 = arith.constant 0 : index
    %c0_2 = arith.constant 0 : index
    %2 = vector.load %arg2[%c0, %c0_0, %c0_1, %c0_2] : memref<1x8x16x128xbf16, #tpu.memory_space<vmem>>, vector<1x8x16x128xbf16>
    %3 = vector.shape_cast %2 : vector<1x8x16x128xbf16> to vector<8x16x128xbf16>
    %4 = arith.extf %3 : vector<8x16x128xbf16> to vector<8x16x128xf32>
    %5 = vector.shape_cast %4 : vector<8x16x128xf32> to vector<128x128xf32>
    %c3_i32 = arith.constant 3 : i32
    %6 = arith.addi %1, %c3_i32 : i32
    %c0_3 = arith.constant 0 : index
    %7 = arith.index_cast %6 : i32 to index
    %c0_4 = arith.constant 0 : index
    %c0_5 = arith.constant 0 : index
    %8 = vector.load %arg3[%c0_3, %7, %c0_4, %c0_5] : memref<1x22x18x128xf32, #tpu.memory_space<vmem>>, vector<1x8x18x128xf32>
    %9 = vector.shape_cast %8 : vector<1x8x18x128xf32> to vector<8x18x128xf32>
    %10 = vector.extract_strided_slice %9 {offsets = [0, 1, 0], sizes = [8, 16, 128], strides = [1, 1, 1]} : vector<8x18x128xf32> to vector<8x16x128xf32>
    %11 = arith.truncf %10 : vector<8x16x128xf32> to vector<8x16x128xbf16>
    %12 = vector.shape_cast %11 : vector<8x16x128xbf16> to vector<128x128xbf16>
    %c0_6 = arith.constant 0 : index
    %c0_7 = arith.constant 0 : index
    %13 = vector.load %arg4[%c0_6, %c0_7] : memref<128x128xbf16, #tpu.memory_space<vmem>>, vector<128x128xbf16>
    %cst = arith.constant dense<0.000000e+00> : vector<128x128xf32>
    %14 = tpu.matmul %12, %13, %cst {dimension_numbers = #tpu.dot_dimension_numbers<[1], [0], [0], [1], [0, 0, 1, 1], [], []>} : vector<128x128xbf16>, vector<128x128xbf16>, vector<128x128xf32> -> vector<128x128xf32>
    %c0_8 = arith.constant 0 : index
    %c0_9 = arith.constant 0 : index
    %15 = vector.load %arg5[%c0_8, %c0_9] : memref<1x128xf32, #tpu.memory_space<vmem>>, vector<1x128xf32>
    %16 = vector.broadcast %15 : vector<1x128xf32> to vector<128x128xf32>
    %17 = arith.addf %14, %16 : vector<128x128xf32>
    %c0_10 = arith.constant 0 : index
    %c0_11 = arith.constant 0 : index
    %18 = vector.load %arg6[%c0_10, %c0_11] : memref<1x128xf32, #tpu.memory_space<vmem>>, vector<1x128xf32>
    %19 = vector.broadcast %18 : vector<1x128xf32> to vector<128x128xf32>
    %20 = arith.mulf %5, %19 : vector<128x128xf32>
    %c0_12 = arith.constant 0 : index
    %c0_13 = arith.constant 0 : index
    %21 = vector.load %arg7[%c0_12, %c0_13] : memref<1x128xf32, #tpu.memory_space<vmem>>, vector<1x128xf32>
    %22 = vector.broadcast %21 : vector<1x128xf32> to vector<128x128xf32>
    %23 = arith.addf %20, %22 : vector<128x128xf32>
    %24 = arith.addf %23, %17 : vector<128x128xf32>
    %cst_14 = arith.constant 0.000000e+00 : f32
    %25 = vector.broadcast %cst_14 : f32 to vector<128x128xf32>
    %26 = arith.maximumf %24, %25 : vector<128x128xf32>
    %27 = vector.shape_cast %26 : vector<128x128xf32> to vector<8x16x128xf32>
    %c0_15 = arith.constant 0 : index
    %c0_16 = arith.constant 0 : index
    %c0_17 = arith.constant 0 : index
    %c0_18 = arith.constant 0 : index
    %28 = vector.load %arg8[%c0_15, %c0_16, %c0_17, %c0_18] : memref<1x8x16x128xf32, #tpu.memory_space<vmem>>, vector<1x8x16x128xf32>
    %29 = vector.shape_cast %28 : vector<1x8x16x128xf32> to vector<8x16x128xf32>
    %30 = vector.shape_cast %27 : vector<8x16x128xf32> to vector<1x8x16x128xf32>
    tpu.vector_store %arg8[%c0_15, %c0_16, %c0_17, %c0_18], %30 {strides = array<i32>} : memref<1x8x16x128xf32, #tpu.memory_space<vmem>>, vector<1x8x16x128xf32>,
    return
  }
  func.func @transform_0(%arg0: i32, %arg1: i32) -> (i32, i32, i32, i32) {
    %c0_i32 = arith.constant 0 : i32
    %c0_i32_0 = arith.constant 0 : i32
    %c0_i32_1 = arith.constant 0 : i32
    return %arg0, %arg1, %c0_i32, %c0_i32_0 : i32, i32, i32, i32
  }
  func.func @transform_1(%arg0: i32, %arg1: i32) -> (i32, i32, i32, i32) {
    %c0_i32 = arith.constant 0 : i32
    %c0_i32_0 = arith.constant 0 : i32
    %c0_i32_1 = arith.constant 0 : i32
    %c0_i32_2 = arith.constant 0 : i32
    return %arg0, %c0_i32, %c0_i32_0, %c0_i32_1 : i32, i32, i32, i32
  }
  func.func @transform_2(%arg0: i32, %arg1: i32) -> (i32, i32) {
    %c0_i32 = arith.constant 0 : i32
    %c0_i32_0 = arith.constant 0 : i32
    %c0_i32_1 = arith.constant 0 : i32
    return %c0_i32, %c0_i32_0 : i32, i32
  }
  func.func @transform_3(%arg0: i32, %arg1: i32) -> (i32, i32) {
    %c0_i32 = arith.constant 0 : i32
    %c0_i32_0 = arith.constant 0 : i32
    %c0_i32_1 = arith.constant 0 : i32
    return %c0_i32, %c0_i32_0 : i32, i32
  }
  func.func @transform_4(%arg0: i32, %arg1: i32) -> (i32, i32) {
    %c0_i32 = arith.constant 0 : i32
    %c0_i32_0 = arith.constant 0 : i32
    %c0_i32_1 = arith.constant 0 : i32
    return %c0_i32, %c0_i32_0 : i32, i32
  }
  func.func @transform_5(%arg0: i32, %arg1: i32) -> (i32, i32) {
    %c0_i32 = arith.constant 0 : i32
    %c0_i32_0 = arith.constant 0 : i32
    %c0_i32_1 = arith.constant 0 : i32
    return %c0_i32, %c0_i32_0 : i32, i32
  }
  func.func @transform_6(%arg0: i32, %arg1: i32) -> (i32, i32, i32, i32) {
    %c0_i32 = arith.constant 0 : i32
    %c0_i32_0 = arith.constant 0 : i32
    %c0_i32_1 = arith.constant 0 : i32
    return %arg0, %arg1, %c0_i32, %c0_i32_0 : i32, i32, i32, i32
  }
}

</mosaic_0001>

<llo_original>
// kernel: resnet_bottleneck_forward.3
$region0: #{resnet_bottleneck_forward.3}
  #allocation0 [shape = 'u32[]', space=smem, size = 0x4, offset = 0x4, fixed_abs, tag = 'smem constant byte address 0x4 - core index']
  #allocation1 [shape = 'u32[72,128]{1,0:T(1,128)}', space=vmem, size = 0x9000, scoped, tag = 'internal scratch']
  %s0 = inlined_call_operand.vmem [shape: bf16[2,16,16,128], index: 0, kind: input, shape index: {}]
  %s1 = inlined_call_operand.vmem [shape: f32[2,22,18,128], index: 1, kind: input, shape index: {}]
  %s2 = inlined_call_operand.vmem [shape: bf16[128,128], index: 2, kind: input, shape index: {}]
  %s3 = inlined_call_operand.vmem [shape: f32[1,128], index: 3, kind: input, shape index: {}]
  %s4 = inlined_call_operand.vmem [shape: f32[1,128], index: 4, kind: input, shape index: {}]
  %s5 = inlined_call_operand.vmem [shape: f32[1,128], index: 5, kind: input, shape index: {}]
  %s6 = inlined_call_operand.vmem [shape: f32[2,16,16,128], index: 6, kind: output, shape index: {}]
  %s7 = sld [smem:[#allocation0]]
  $region57: #{resnet_bottleneck_forward.3} parent=0
    _
  %s9 = ssub.s32 1, %s7
  %s10 = scalar_select 0, %s9, %s7
  loop: start=0, step=1, limit=6
  $region2: #{resnet_bottleneck_forward.3} parent=0 // loop_pre_header
    _
  $region3: #{resnet_bottleneck_forward.3} parent=0 // loop_header
    %s12 = sphi 0, %s16
    %p13 = scmp.ge.s32.totalorder %s12, 6
    %s19 = sphi 0, %s31
    %s20 = sphi 0, %s27
    %s21 = sphi 0, %s19
    %s22 = sphi 0, %s20
    %s23 = sphi 0, %s21
    %s24 = sphi 0, %s22
    %s36 = sphi 0, %s38
    %s39 = sphi 0, %s36
    %s40 = sphi 0, %s39
    %s56 = sphi 0, %s40
    %s62 = sphi 0, %s64
    %s65 = sphi 0, %s62
    %s66 = sphi 0, %s65
    %s82 = sphi 0, %s66
    %s86 = sphi 0, %s86
    %s88 = sphi 0, %s86
    %s89 = sphi 0, %s88
    %s103 = sphi 0, %s89
    %s107 = sphi 0, %s107
    %s109 = sphi 0, %s107
    %s110 = sphi 0, %s109
    %s124 = sphi 0, %s110
    %s128 = sphi 0, %s128
    %s130 = sphi 0, %s128
    %s131 = sphi 0, %s130
    %s145 = sphi 0, %s131
    %s149 = sphi 0, %s149
    %s151 = sphi 0, %s149
    %s152 = sphi 0, %s151
    %s166 = sphi 0, %s152
    %s174 = sphi 0, %s176
    %s177 = sphi 0, %s174
    %s178 = sphi 0, %s177
    %s194 = sphi 0, %s178
  $region4: #{resnet_bottleneck_forward.3} parent=0 // loop_header_branch
    %15 = sbr.rel (%p13) target = $region8
  $region5: #{resnet_bottleneck_forward.3} parent=0 // loop_body
    %s17 = ssub.s32 %s12, 1
    %s18 = ssub.s32 %s12, 2
    %s25 = sadd.s32 1, %s20
    %p26 = scmp.ge.s32.totalorder %s25, 2
    %s27 = scalar_select %p26, 0, %s25
    %s28 = sadd.s32 1, %s19
    %s29 = scalar_select %p26, %s28, %s19
    %p30 = scmp.ge.s32.totalorder %s29, 2
    %s31 = scalar_select %p30, 0, %s29
    %s32 = ssub.s32 %s19, %s31
    %s33 = ssub.s32 %s20, %s27
    %s34 = sor.u32 %s32, %s33
    %p35 = scmp.eq.s32.totalorder %s34, 0
    %s37 = sadd.s32 %s36, 1
    %s38 = scalar_select %p35, %s36, %s37
    %p41 = pneg %p35
    %p42 = scmp.eq.s32.totalorder %s12, 3
    %p43 = por %p41, %p42
    %p44 = scmp.ne.s32.totalorder %s36, %s39
    %p45 = scmp.eq.s32.totalorder %s12, 0
    %p46 = por %p44, %p45
    %p47 = scmp.ne.s32.totalorder %s36, %s39
    %p48 = scmp.eq.s32.totalorder %s17, 3
    %p49 = por %p47, %p48
    %p50 = scmp.ne.s32.totalorder %s39, %s40
    %p51 = scmp.eq.s32.totalorder %s17, 0
    %p52 = por %p50, %p51
    %p53 = scmp.ne.s32.totalorder %s39, %s40
    %p54 = scmp.eq.s32.totalorder %s18, 3
    %p55 = por %p53, %p54
    %p57 = scmp.ne.s32.totalorder %s40, %s56
    %p58 = scmp.eq.s32.totalorder %s18, 0
    %p59 = por %p57, %p58
    %s60 = ssub.s32 %s19, %s31
    %p61 = scmp.eq.s32.totalorder %s60, 0
    %s63 = sadd.s32 %s62, 1
    %s64 = scalar_select %p61, %s62, %s63
    %p67 = pneg %p61
    %p68 = scmp.eq.s32.totalorder %s12, 3
    %p69 = por %p67, %p68
    %p70 = scmp.ne.s32.totalorder %s62, %s65
    %p71 = scmp.eq.s32.totalorder %s12, 0
    %p72 = por %p70, %p71
    %p73 = scmp.ne.s32.totalorder %s62, %s65
    %p74 = scmp.eq.s32.totalorder %s17, 3
    %p75 = por %p73, %p74
    %p76 = scmp.ne.s32.totalorder %s65, %s66
    %p77 = scmp.eq.s32.totalorder %s17, 0
    %p78 = por %p76, %p77
    %p79 = scmp.ne.s32.totalorder %s65, %s66
    %p80 = scmp.eq.s32.totalorder %s18, 3
    %p81 = por %p79, %p80
    %p83 = scmp.ne.s32.totalorder %s66, %s82
    %p84 = scmp.eq.s32.totalorder %s18, 0
    %p85 = por %p83, %p84
    %s87 = sadd.s32 %s86, 1
    %p90 = scmp.eq.s32.totalorder %s12, 3
    %p91 = scmp.ne.s32.totalorder %s86, %s88
    %p92 = scmp.eq.s32.totalorder %s12, 0
    %p93 = por %p91, %p92
    %p94 = scmp.ne.s32.totalorder %s86, %s88
    %p95 = scmp.eq.s32.totalorder %s17, 3
    %p96 = por %p94, %p95
    %p97 = scmp.ne.s32.totalorder %s88, %s89
    %p98 = scmp.eq.s32.totalorder %s17, 0
    %p99 = por %p97, %p98
    %p100 = scmp.ne.s32.totalorder %s88, %s89
    %p101 = scmp.eq.s32.totalorder %s18, 3
    %p102 = por %p100, %p101
    %p104 = scmp.ne.s32.totalorder %s89, %s103
    %p105 = scmp.eq.s32.totalorder %s18, 0
    %p106 = por %p104, %p105
    %s108 = sadd.s32 %s107, 1
    %p111 = scmp.eq.s32.totalorder %s12, 3
    %p112 = scmp.ne.s32.totalorder %s107, %s109
    %p113 = scmp.eq.s32.totalorder %s12, 0
    %p114 = por %p112, %p113
    %p115 = scmp.ne.s32.totalorder %s107, %s109
    %p116 = scmp.eq.s32.totalorder %s17, 3
    %p117 = por %p115, %p116
    %p118 = scmp.ne.s32.totalorder %s109, %s110
    %p119 = scmp.eq.s32.totalorder %s17, 0
    %p120 = por %p118, %p119
    %p121 = scmp.ne.s32.totalorder %s109, %s110
    %p122 = scmp.eq.s32.totalorder %s18, 3
    %p123 = por %p121, %p122
    %p125 = scmp.ne.s32.totalorder %s110, %s124
    %p126 = scmp.eq.s32.totalorder %s18, 0
    %p127 = por %p125, %p126
    %s129 = sadd.s32 %s128, 1
    %p132 = scmp.eq.s32.totalorder %s12, 3
    %p133 = scmp.ne.s32.totalorder %s128, %s130
    %p134 = scmp.eq.s32.totalorder %s12, 0
    %p135 = por %p133, %p134
    %p136 = scmp.ne.s32.totalorder %s128, %s130
    %p137 = scmp.eq.s32.totalorder %s17, 3
    %p138 = por %p136, %p137
    %p139 = scmp.ne.s32.totalorder %s130, %s131
    %p140 = scmp.eq.s32.totalorder %s17, 0
    %p141 = por %p139, %p140
    %p142 = scmp.ne.s32.totalorder %s130, %s131
    %p143 = scmp.eq.s32.totalorder %s18, 3
    %p144 = por %p142, %p143
    %p146 = scmp.ne.s32.totalorder %s131, %s145
    %p147 = scmp.eq.s32.totalorder %s18, 0
    %p148 = por %p146, %p147
    %s150 = sadd.s32 %s149, 1
    %p153 = scmp.eq.s32.totalorder %s12, 3
    %p154 = scmp.ne.s32.totalorder %s149, %s151
    %p155 = scmp.eq.s32.totalorder %s12, 0
    %p156 = por %p154, %p155
    %p157 = scmp.ne.s32.totalorder %s149, %s151
    %p158 = scmp.eq.s32.totalorder %s17, 3
    %p159 = por %p157, %p158
    %p160 = scmp.ne.s32.totalorder %s151, %s152
    %p161 = scmp.eq.s32.totalorder %s17, 0
    %p162 = por %p160, %p161
    %p163 = scmp.ne.s32.totalorder %s151, %s152
    %p164 = scmp.eq.s32.totalorder %s18, 3
    %p165 = por %p163, %p164
    %p167 = scmp.ne.s32.totalorder %s152, %s166
    %p168 = scmp.eq.s32.totalorder %s18, 0
    %p169 = por %p167, %p168
    %s170 = ssub.s32 %s19, %s31
    %s171 = ssub.s32 %s20, %s27
    %s172 = sor.u32 %s170, %s171
    %p173 = scmp.eq.s32.totalorder %s172, 0
    %s175 = sadd.s32 %s174, 1
    %s176 = scalar_select %p173, %s174, %s175
    %p179 = pneg %p173
    %p180 = scmp.eq.s32.totalorder %s12, 3
    %p181 = por %p179, %p180
    %p182 = scmp.ne.s32.totalorder %s174, %s177
    %p183 = scmp.eq.s32.totalorder %s12, 0
    %p184 = por %p182, %p183
    %p185 = scmp.ne.s32.totalorder %s174, %s177
    %p186 = scmp.eq.s32.totalorder %s17, 3
    %p187 = por %p185, %p186
    %p188 = scmp.ne.s32.totalorder %s177, %s178
    %p189 = scmp.eq.s32.totalorder %s17, 0
    %p190 = por %p188, %p189
    %p191 = scmp.ne.s32.totalorder %s177, %s178
    %p192 = scmp.eq.s32.totalorder %s18, 3
    %p193 = por %p191, %p192
    %p195 = scmp.ne.s32.totalorder %s178, %s194
    %p196 = scmp.eq.s32.totalorder %s18, 0
    %p197 = por %p195, %p196
    %p198 = scmp.le.s32.totalorder 1, %s12
    %p199 = scmp.lt.s32.totalorder %s12, 5
    %p200 = pnand %p198, %p199
    %p201 = pneg %p200
    // Predicated region
    $region9: #{resnet_bottleneck_forward.3} parent=5 // pred_check
      _
    $region10: #{resnet_bottleneck_forward.3} parent=5 // pred_check_branch
      %203 = sbr.rel (%p200) target = $region12
    $region11: #{resnet_bottleneck_forward.3} parent=5 // pred_region
      %s204 = ssub.s32 %s12, 1
      // Predicated region
      $region13: #{resnet_bottleneck_forward.3} parent=11 // pred_check
        %p205 = pneg %p99
      $region14: #{resnet_bottleneck_forward.3} parent=11 // pred_check_branch
        %207 = sbr.rel (%p205) target = $region16
      $region15: #{resnet_bottleneck_forward.3} parent=11 // pred_region
        _
      $region16: #{resnet_bottleneck_forward.3} parent=11 // pred_fallthru
        _
      // Predicated region
      $region17: #{resnet_bottleneck_forward.3} parent=11 // pred_check
        %p208 = pneg %p120
      $region18: #{resnet_bottleneck_forward.3} parent=11 // pred_check_branch
        %210 = sbr.rel (%p208) target = $region20
      $region19: #{resnet_bottleneck_forward.3} parent=11 // pred_region
        _
      $region20: #{resnet_bottleneck_forward.3} parent=11 // pred_fallthru
        _
      // Predicated region
      $region21: #{resnet_bottleneck_forward.3} parent=11 // pred_check
        %p211 = pneg %p141
      $region22: #{resnet_bottleneck_forward.3} parent=11 // pred_check_branch
        %213 = sbr.rel (%p211) target = $region24
      $region23: #{resnet_bottleneck_forward.3} parent=11 // pred_region
        _
      $region24: #{resnet_bottleneck_forward.3} parent=11 // pred_fallthru
        _
      // Predicated region
      $region25: #{resnet_bottleneck_forward.3} parent=11 // pred_check
        %p214 = pneg %p162
      $region26: #{resnet_bottleneck_forward.3} parent=11 // pred_check_branch
        %216 = sbr.rel (%p214) target = $region28
      $region27: #{resnet_bottleneck_forward.3} parent=11 // pred_region
        _
      $region28: #{resnet_bottleneck_forward.3} parent=11 // pred_fallthru
        _
    $region12: #{resnet_bottleneck_forward.3} parent=5 // pred_fallthru
      _
    %p217 = scmp.lt.s32.totalorder %s12, 4
    // Predicated region
    $region29: #{resnet_bottleneck_forward.3} parent=5 // pred_check
      %p218 = pneg %p217
    $region30: #{resnet_bottleneck_forward.3} parent=5 // pred_check_branch
      %220 = sbr.rel (%p218) target = $region32
    $region31: #{resnet_bottleneck_forward.3} parent=5 // pred_region
      // Predicated region
      $region33: #{resnet_bottleneck_forward.3} parent=31 // pred_check
        %p221 = pneg %p46
      $region34: #{resnet_bottleneck_forward.3} parent=31 // pred_check_branch
        %223 = sbr.rel (%p221) target = $region36
      $region35: #{resnet_bottleneck_forward.3} parent=31 // pred_region
        %s224 = smul.u32 8, %s20
        %p225 = scmp.lt.s32.totalorder %s19, 1
        %s226 = scalar_select %p225, %s19, 1
        %p227 = scmp.lt.s32.totalorder %s224, 15
        %s228 = scalar_select %p227, %s224, 15
        %s229 = smul.addr %s228, 2
        %s230 = smul.addr %s226, 32
        %s231 = sadd.s32 %s229, %s230
        %s232 = smul.addr %s231, 4
        %s233 = scalar_lea.vmem %s0, %s232
        %s234 = smul.u32 8, %s20
      $region36: #{resnet_bottleneck_forward.3} parent=31 // pred_fallthru
        _
      // Predicated region
      $region37: #{resnet_bottleneck_forward.3} parent=31 // pred_check
        %p235 = pneg %p72
      $region38: #{resnet_bottleneck_forward.3} parent=31 // pred_check_branch
        %237 = sbr.rel (%p235) target = $region40
      $region39: #{resnet_bottleneck_forward.3} parent=31 // pred_region
        %p238 = scmp.lt.s32.totalorder %s19, 1
        %s239 = scalar_select %p238, %s19, 1
        %s240 = smul.addr %s239, 66
        %s241 = smul.addr %s240, 8
        %s242 = scalar_lea.vmem %s1, %s241
      $region40: #{resnet_bottleneck_forward.3} parent=31 // pred_fallthru
        _
    $region32: #{resnet_bottleneck_forward.3} parent=5 // pred_fallthru
      _
    %p243 = scmp.le.s32.totalorder 1, %s12
    %p244 = scmp.lt.s32.totalorder %s12, 5
    %p245 = pnand %p243, %p244
    %p246 = pneg %p245
    // Predicated region
    $region41: #{resnet_bottleneck_forward.3} parent=5 // pred_check
      _
    $region42: #{resnet_bottleneck_forward.3} parent=5 // pred_check_branch
      %248 = sbr.rel (%p245) target = $region44
    $region43: #{resnet_bottleneck_forward.3} parent=5 // pred_region
      %s249 = ssub.s32 %s12, 1
      %s250 = smul.u32 8, %s22
      %p251 = scmp.lt.s32.totalorder %s21, 1
      %s252 = scalar_select %p251, %s21, 1
      %p253 = scmp.lt.s32.totalorder %s250, 15
      %s254 = scalar_select %p253, %s250, 15
      %s255 = smul.addr %s254, 2
      %s256 = smul.addr %s252, 32
      %s257 = sadd.s32 %s255, %s256
      %s258 = smul.addr %s257, 4
      %s259 = scalar_lea.vmem %s0, %s258
      %p260 = pneg %p52
      %p261 = pneg %p49
      %p262 = scmp.lt.s32.totalorder %s21, 1
      %s263 = scalar_select %p262, %s21, 1
      %s264 = smul.addr %s263, 66
      %s265 = smul.addr %s264, 8
      %s266 = scalar_lea.vmem %s1, %s265
      %p267 = pneg %p78
      %p268 = pneg %p75
      %p269 = pneg %p99
      %p270 = pneg %p96
      %p271 = pneg %p120
      %p272 = pneg %p117
      %p273 = pneg %p141
      %p274 = pneg %p138
      %p275 = pneg %p162
      %p276 = pneg %p159
      %p277 = pneg %p190
      %p278 = pneg %p187
      %s279 = smul.u32 8, %s22
      %p280 = scmp.lt.s32.totalorder %s21, 1
      %s281 = scalar_select %p280, %s21, 1
      %p282 = scmp.lt.s32.totalorder %s279, 15
      %s283 = scalar_select %p282, %s279, 15
      %s284 = smul.addr %s283, 2
      %s285 = smul.addr %s281, 32
      %s286 = sadd.s32 %s284, %s285
      %s287 = smul.addr %s286, 8
      %s288 = scalar_lea.vmem %s6, %s287
      %s289 = smul.u32 8, %s22
      %p290 = scmp.lt.s32.totalorder %s21, 1
      %s291 = scalar_select %p290, %s21, 1
      %p292 = scmp.lt.s32.totalorder %s289, 15
      %s293 = scalar_select %p292, %s289, 15
      %s294 = smul.addr %s293, 2
      %s295 = smul.addr %s291, 32
      %s296 = sadd.s32 %s294, %s295
      %s297 = smul.addr %s296, 4
      %s298 = scalar_lea.vmem %s0, %s297
      %s299 = smul.u32 8, %s22
      %p300 = scmp.lt.s32.totalorder %s21, 1
      %s301 = scalar_select %p300, %s21, 1
      %s302 = smul.addr %s301, 66
      %s303 = smul.addr %s302, 8
      %s304 = scalar_lea.vmem %s1, %s303
      %s305 = smul.u32 8, %s22
      %p306 = scmp.lt.s32.totalorder %s21, 1
      %s307 = scalar_select %p306, %s21, 1
      %p308 = scmp.lt.s32.totalorder %s305, 15
      %s309 = scalar_select %p308, %s305, 15
      %s310 = smul.addr %s309, 2
      %s311 = smul.addr %s307, 32
      %s312 = sadd.s32 %s310, %s311
      %s313 = smul.addr %s312, 8
      %s314 = scalar_lea.vmem %s6, %s313
      %s315 = smul.u32 8, %s22
      %s316 = smul.u32 %s22, 8
      %v317 = vld [vmem:[%s298] sm:$0xf]
      %v318 = vld [vmem:[%s298 + $0x4] sm:$0xf]
      %v319 = vld [vmem:[%s298 + $0x8] sm:$0xf]
      %v320 = vld [vmem:[%s298 + $0xc] sm:$0xf]
      %v321 = vld [vmem:[%s298 + $0x10] sm:$0xf]
      %v322 = vld [vmem:[%s298 + $0x14] sm:$0xf]
      %v323 = vld [vmem:[%s298 + $0x18] sm:$0xf]
      %v324 = vld [vmem:[%s298 + $0x1c] sm:$0xf]
      %v325 = vld [vmem:[%s298 + $0x20] sm:$0xf]
      %v326 = vld [vmem:[%s298 + $0x24] sm:$0xf]
      %v327 = vld [vmem:[%s298 + $0x28] sm:$0xf]
      %v328 = vld [vmem:[%s298 + $0x2c] sm:$0xf]
      %v329 = vld [vmem:[%s298 + $0x30] sm:$0xf]
      %v330 = vld [vmem:[%s298 + $0x34] sm:$0xf]
      %v331 = vld [vmem:[%s298 + $0x38] sm:$0xf]
      %v332 = vld [vmem:[%s298 + $0x3c] sm:$0xf]
      %v333 = vunpack.c.l.bf16 %v317
      %v334 = vunpack.c.l.bf16 %v318
      %v335 = vunpack.c.l.bf16 %v319
      %v336 = vunpack.c.l.bf16 %v320
      %v337 = vunpack.c.l.bf16 %v321
      %v338 = vunpack.c.l.bf16 %v322
      %v339 = vunpack.c.l.bf16 %v323
      %v340 = vunpack.c.l.bf16 %v324
      %v341 = vunpack.c.l.bf16 %v325
      %v342 = vunpack.c.l.bf16 %v326
      %v343 = vunpack.c.l.bf16 %v327
      %v344 = vunpack.c.l.bf16 %v328
      %v345 = vunpack.c.l.bf16 %v329
      %v346 = vunpack.c.l.bf16 %v330
      %v347 = vunpack.c.l.bf16 %v331
      %v348 = vunpack.c.l.bf16 %v332
      %s349 = sadd.s32 %s316, 3
      %s350 = smul.u32 %s349, 24
      %s351 = scalar_lea.vmem %s304, %s350
      %v352 = vld [vmem:[%s351] sm:$0xff]
      %v353 = vld [vmem:[%s351 + $0x8] sm:$0xff]
      %v354 = vld [vmem:[%s351 + $0x10] sm:$0x3]
      %v355 = vld [vmem:[%s351 + $0x18] sm:$0xff]
      %v356 = vld [vmem:[%s351 + $0x20] sm:$0xff]
      %v357 = vld [vmem:[%s351 + $0x28] sm:$0x3]
      %v358 = vld [vmem:[%s351 + $0x30] sm:$0xff]
      %v359 = vld [vmem:[%s351 + $0x38] sm:$0xff]
      %v360 = vld [vmem:[%s351 + $0x40] sm:$0x3]
      %v361 = vld [vmem:[%s351 + $0x48] sm:$0xff]
      %v362 = vld [vmem:[%s351 + $0x50] sm:$0xff]
      %v363 = vld [vmem:[%s351 + $0x58] sm:$0x3]
      %v364 = vld [vmem:[%s351 + $0x60] sm:$0xff]
      %v365 = vld [vmem:[%s351 + $0x68] sm:$0xff]
      %v366 = vld [vmem:[%s351 + $0x70] sm:$0x3]
      %v367 = vld [vmem:[%s351 + $0x78] sm:$0xff]
      %v368 = vld [vmem:[%s351 + $0x80] sm:$0xff]
      %v369 = vld [vmem:[%s351 + $0x88] sm:$0x3]
      %v370 = vld [vmem:[%s351 + $0x90] sm:$0xff]
      %v371 = vld [vmem:[%s351 + $0x98] sm:$0xff]
      %v372 = vld [vmem:[%s351 + $0xa0] sm:$0x3]
      %v373 = vld [vmem:[%s351 + $0xa8] sm:$0xff]
      %v374 = vld [vmem:[%s351 + $0xb0] sm:$0xff]
      %v375 = vld [vmem:[%s351 + $0xb8] sm:$0x3]
      %v376 = vpack.c.bf16 %v352, %v352
      %v377 = vpack.c.bf16 %v353, %v353
      %v378 = vpack.c.bf16 %v354, %v354
      %v379 = vpack.c.bf16 %v355, %v355
      %v380 = vpack.c.bf16 %v356, %v356
      %v381 = vpack.c.bf16 %v357, %v357
      %v382 = vpack.c.bf16 %v358, %v358
      %v383 = vpack.c.bf16 %v359, %v359
      %v384 = vpack.c.bf16 %v360, %v360
      %v385 = vpack.c.bf16 %v361, %v361
      %v386 = vpack.c.bf16 %v362, %v362
      %v387 = vpack.c.bf16 %v363, %v363
      %v388 = vpack.c.bf16 %v364, %v364
      %v389 = vpack.c.bf16 %v365, %v365
      %v390 = vpack.c.bf16 %v366, %v366
      %v391 = vpack.c.bf16 %v367, %v367
      %v392 = vpack.c.bf16 %v368, %v368
      %v393 = vpack.c.bf16 %v369, %v369
      %v394 = vpack.c.bf16 %v370, %v370
      %v395 = vpack.c.bf16 %v371, %v371
      %v396 = vpack.c.bf16 %v372, %v372
      %v397 = vpack.c.bf16 %v373, %v373
      %v398 = vpack.c.bf16 %v374, %v374
      %v399 = vpack.c.bf16 %v375, %v375
      %vm400 = vsmask.f32 3328
      %vm401 = vsmask.f32 7440
      %vm402 = vmor %vm400, %vm401
      %v404 = vshrl.u32 %v376, 16
      %v406 = vrot.slane %v404, 4
      %v407 = vshll.u32 %v376, 16
      %v409 = vrot.slane %v407, 5
      %v410 = vor.u32 %v406, %v409
      %v411 = vrot.slane %v410, 4
      %v413 = vshll.u32 %v377, 16
      %v415 = vrot.slane %v413, 5
      %v416 = vsel %vm402, %v411, %v415
      %v417 = vshrl.u32 %v377, 16
      %v419 = vrot.slane %v417, 4
      %v420 = vor.u32 %v419, %v415
      %v421 = vrot.slane %v420, 4
      %v423 = vshll.u32 %v378, 16
      %v425 = vrot.slane %v423, 5
      %v426 = vsel %vm402, %v421, %v425
      %v428 = vshrl.u32 %v379, 16
      %v430 = vrot.slane %v428, 4
      %v431 = vshll.u32 %v379, 16
      %v433 = vrot.slane %v431, 5
      %v434 = vor.u32 %v430, %v433
      %v435 = vrot.slane %v434, 4
      %v437 = vshll.u32 %v380, 16
      %v439 = vrot.slane %v437, 5
      %v440 = vsel %vm402, %v435, %v439
      %v441 = vshrl.u32 %v380, 16
      %v443 = vrot.slane %v441, 4
      %v444 = vor.u32 %v443, %v439
      %v445 = vrot.slane %v444, 4
      %v447 = vshll.u32 %v381, 16
      %v449 = vrot.slane %v447, 5
      %v450 = vsel %vm402, %v445, %v449
      %v452 = vshrl.u32 %v382, 16
      %v454 = vrot.slane %v452, 4
      %v455 = vshll.u32 %v382, 16
      %v457 = vrot.slane %v455, 5
      %v458 = vor.u32 %v454, %v457
      %v459 = vrot.slane %v458, 4
      %v461 = vshll.u32 %v383, 16
      %v463 = vrot.slane %v461, 5
      %v464 = vsel %vm402, %v459, %v463
      %v465 = vshrl.u32 %v383, 16
      %v467 = vrot.slane %v465, 4
      %v468 = vor.u32 %v467, %v463
      %v469 = vrot.slane %v468, 4
      %v471 = vshll.u32 %v384, 16
      %v473 = vrot.slane %v471, 5
      %v474 = vsel %vm402, %v469, %v473
      %v476 = vshrl.u32 %v385, 16
      %v478 = vrot.slane %v476, 4
      %v479 = vshll.u32 %v385, 16
      %v481 = vrot.slane %v479, 5
      %v482 = vor.u32 %v478, %v481
      %v483 = vrot.slane %v482, 4
      %v485 = vshll.u32 %v386, 16
      %v487 = vrot.slane %v485, 5
      %v488 = vsel %vm402, %v483, %v487
      %v489 = vshrl.u32 %v386, 16
      %v491 = vrot.slane %v489, 4
      %v492 = vor.u32 %v491, %v487
      %v493 = vrot.slane %v492, 4
      %v495 = vshll.u32 %v387, 16
      %v497 = vrot.slane %v495, 5
      %v498 = vsel %vm402, %v493, %v497
      %v500 = vshrl.u32 %v388, 16
      %v502 = vrot.slane %v500, 4
      %v503 = vshll.u32 %v388, 16
      %v505 = vrot.slane %v503, 5
      %v506 = vor.u32 %v502, %v505
      %v507 = vrot.slane %v506, 4
      %v509 = vshll.u32 %v389, 16
      %v511 = vrot.slane %v509, 5
      %v512 = vsel %vm402, %v507, %v511
      %v513 = vshrl.u32 %v389, 16
      %v515 = vrot.slane %v513, 4
      %v516 = vor.u32 %v515, %v511
      %v517 = vrot.slane %v516, 4
      %v519 = vshll.u32 %v390, 16
      %v521 = vrot.slane %v519, 5
      %v522 = vsel %vm402, %v517, %v521
      %v524 = vshrl.u32 %v391, 16
      %v526 = vrot.slane %v524, 4
      %v527 = vshll.u32 %v391, 16
      %v529 = vrot.slane %v527, 5
      %v530 = vor.u32 %v526, %v529
      %v531 = vrot.slane %v530, 4
      %v533 = vshll.u32 %v392, 16
      %v535 = vrot.slane %v533, 5
      %v536 = vsel %vm402, %v531, %v535
      %v537 = vshrl.u32 %v392, 16
      %v539 = vrot.slane %v537, 4
      %v540 = vor.u32 %v539, %v535
      %v541 = vrot.slane %v540, 4
      %v543 = vshll.u32 %v393, 16
      %v545 = vrot.slane %v543, 5
      %v546 = vsel %vm402, %v541, %v545
      %v548 = vshrl.u32 %v394, 16
      %v550 = vrot.slane %v548, 4
      %v551 = vshll.u32 %v394, 16
      %v553 = vrot.slane %v551, 5
      %v554 = vor.u32 %v550, %v553
      %v555 = vrot.slane %v554, 4
      %v557 = vshll.u32 %v395, 16
      %v559 = vrot.slane %v557, 5
      %v560 = vsel %vm402, %v555, %v559
      %v561 = vshrl.u32 %v395, 16
      %v563 = vrot.slane %v561, 4
      %v564 = vor.u32 %v563, %v559
      %v565 = vrot.slane %v564, 4
      %v567 = vshll.u32 %v396, 16
      %v569 = vrot.slane %v567, 5
      %v570 = vsel %vm402, %v565, %v569
      %v572 = vshrl.u32 %v397, 16
      %v574 = vrot.slane %v572, 4
      %v575 = vshll.u32 %v397, 16
      %v577 = vrot.slane %v575, 5
      %v578 = vor.u32 %v574, %v577
      %v579 = vrot.slane %v578, 4
      %v581 = vshll.u32 %v398, 16
      %v583 = vrot.slane %v581, 5
      %v584 = vsel %vm402, %v579, %v583
      %v585 = vshrl.u32 %v398, 16
      %v587 = vrot.slane %v585, 4
      %v588 = vor.u32 %v587, %v583
      %v589 = vrot.slane %v588, 4
      %v591 = vshll.u32 %v399, 16
      %v593 = vrot.slane %v591, 5
      %v594 = vsel %vm402, %v589, %v593
      %v595 = vld [vmem:[%s2] sm:$0xf]
      %v596 = vld [vmem:[%s2 + $0x4] sm:$0xf]
      %v597 = vld [vmem:[%s2 + $0x8] sm:$0xf]
      %v598 = vld [vmem:[%s2 + $0xc] sm:$0xf]
      %v599 = vld [vmem:[%s2 + $0x10] sm:$0xf]
      %v600 = vld [vmem:[%s2 + $0x14] sm:$0xf]
      %v601 = vld [vmem:[%s2 + $0x18] sm:$0xf]
      %v602 = vld [vmem:[%s2 + $0x1c] sm:$0xf]
      %v603 = vld [vmem:[%s2 + $0x20] sm:$0xf]
      %v604 = vld [vmem:[%s2 + $0x24] sm:$0xf]
      %v605 = vld [vmem:[%s2 + $0x28] sm:$0xf]
      %v606 = vld [vmem:[%s2 + $0x2c] sm:$0xf]
      %v607 = vld [vmem:[%s2 + $0x30] sm:$0xf]
      %v608 = vld [vmem:[%s2 + $0x34] sm:$0xf]
      %v609 = vld [vmem:[%s2 + $0x38] sm:$0xf]
      %v610 = vld [vmem:[%s2 + $0x3c] sm:$0xf]
      %v611 = vld [vmem:[%s3] sm:$0x1]
      %v613 = vperm.slane %v611, 0
      %v615 = vunpack.c.l.b16 %v416
      %v616 = vunpack.c.l.b16 %v426
      %v617 = vunpack.c.l.b16 %v440
      %v618 = vunpack.c.l.b16 %v450
      %v619 = vunpack.c.l.b16 %v464
      %v620 = vunpack.c.l.b16 %v474
      %v621 = vunpack.c.l.b16 %v488
      %v622 = vunpack.c.l.b16 %v498
      %v623 = vunpack.c.l.b16 %v512
      %v624 = vunpack.c.l.b16 %v522
      %v625 = vunpack.c.l.b16 %v536
      %v626 = vunpack.c.l.b16 %v546
      %v627 = vunpack.c.l.b16 %v560
      %v628 = vunpack.c.l.b16 %v570
      %v629 = vunpack.c.l.b16 %v584
      %v630 = vunpack.c.l.b16 %v594
      %v631 = vpack.c.b16 %v616, %v615
      %v632 = vpack.c.b16 %v618, %v617
      %v633 = vpack.c.b16 %v620, %v619
      %v634 = vpack.c.b16 %v622, %v621
      %v635 = vpack.c.b16 %v624, %v623
      %v636 = vpack.c.b16 %v626, %v625
      %v637 = vpack.c.b16 %v628, %v627
      %v638 = vpack.c.b16 %v630, %v629
      %v663 = vunpack.c.l.b16 %v595
      %v664 = vunpack.c.l.b16 %v596
      %v665 = vunpack.c.l.b16 %v597
      %v666 = vunpack.c.l.b16 %v598
      %v667 = vunpack.c.l.b16 %v599
      %v668 = vunpack.c.l.b16 %v600
      %v669 = vunpack.c.l.b16 %v601
      %v670 = vunpack.c.l.b16 %v602
      %v671 = vunpack.c.l.b16 %v603
      %v672 = vunpack.c.l.b16 %v604
      %v673 = vunpack.c.l.b16 %v605
      %v674 = vunpack.c.l.b16 %v606
      %v675 = vunpack.c.l.b16 %v607
      %v676 = vunpack.c.l.b16 %v608
      %v677 = vunpack.c.l.b16 %v609
      %v678 = vunpack.c.l.b16 %v610
      %v679 = vpack.c.b16 %v664, %v663
      %v680 = vpack.c.b16 %v666, %v665
      %v681 = vpack.c.b16 %v668, %v667
      %v682 = vpack.c.b16 %v670, %v669
      %v683 = vpack.c.b16 %v672, %v671
      %v684 = vpack.c.b16 %v674, %v673
      %v685 = vpack.c.b16 %v676, %v675
      %v686 = vpack.c.b16 %v678, %v677
      %695 = vmatpush.bf16.msra.mxu0 %v686
      %696 = vmatpush.bf16.msra.mxu0 %v685
      %697 = vmatpush.bf16.msra.mxu0 %v684
      %698 = vmatpush.bf16.msra.mxu0 %v683
      %699 = vmatpush.bf16.msra.mxu0 %v682
      %700 = vmatpush.bf16.msra.mxu0 %v681
      %701 = vmatpush.bf16.msra.mxu0 %v680
      %702 = vmatpush.bf16.msra.mxu0 %v679
      %703 = vmatmul.bf16.gmra.mxu0 %v631
      %v704 = vpop.f32.mrf.mxu0
      %v705 = vadd.f32 %v613, %v704
      %v706 = vpop.f32.mrf.mxu0
      %v707 = vadd.f32 %v613, %v706
      %708 = vmatmul.bf16.gmra.mxu0 %v632
      %v709 = vpop.f32.mrf.mxu0
      %v710 = vadd.f32 %v613, %v709
      %v711 = vpop.f32.mrf.mxu0
      %v712 = vadd.f32 %v613, %v711
      %713 = vmatmul.bf16.gmra.mxu0 %v633
      %v714 = vpop.f32.mrf.mxu0
      %v715 = vadd.f32 %v613, %v714
      %v716 = vpop.f32.mrf.mxu0
      %v717 = vadd.f32 %v613, %v716
      %718 = vmatmul.bf16.gmra.mxu0 %v634
      %v719 = vpop.f32.mrf.mxu0
      %v720 = vadd.f32 %v613, %v719
      %v721 = vpop.f32.mrf.mxu0
      %v722 = vadd.f32 %v613, %v721
      %723 = vmatmul.bf16.gmra.mxu0 %v635
      %v724 = vpop.f32.mrf.mxu0
      %v725 = vadd.f32 %v613, %v724
      %v726 = vpop.f32.mrf.mxu0
      %v727 = vadd.f32 %v613, %v726
      %728 = vmatmul.bf16.gmra.mxu0 %v636
      %v729 = vpop.f32.mrf.mxu0
      %v730 = vadd.f32 %v613, %v729
      %v731 = vpop.f32.mrf.mxu0
      %v732 = vadd.f32 %v613, %v731
      %733 = vmatmul.bf16.gmra.mxu0 %v637
      %v734 = vpop.f32.mrf.mxu0
      %v735 = vadd.f32 %v613, %v734
      %v736 = vpop.f32.mrf.mxu0
      %v737 = vadd.f32 %v613, %v736
      %738 = vmatmul.bf16.gmra.mxu0 %v638
      %v739 = vpop.f32.mrf.mxu0
      %v740 = vadd.f32 %v613, %v739
      %v741 = vpop.f32.mrf.mxu0
      %v742 = vadd.f32 %v613, %v741
      %743 = vdwg.mxu0
      %v744 = vld [vmem:[%s4] sm:$0x1]
      %v746 = vperm.slane %v744, 0
      %v748 = vmul.f32 %v333, %v746
      %v749 = vmul.f32 %v334, %v746
      %v750 = vmul.f32 %v335, %v746
      %v751 = vmul.f32 %v336, %v746
      %v752 = vmul.f32 %v337, %v746
      %v753 = vmul.f32 %v338, %v746
      %v754 = vmul.f32 %v339, %v746
      %v755 = vmul.f32 %v340, %v746
      %v756 = vmul.f32 %v341, %v746
      %v757 = vmul.f32 %v342, %v746
      %v758 = vmul.f32 %v343, %v746
      %v759 = vmul.f32 %v344, %v746
      %v760 = vmul.f32 %v345, %v746
      %v761 = vmul.f32 %v346, %v746
      %v762 = vmul.f32 %v347, %v746
      %v763 = vmul.f32 %v348, %v746
      %v764 = vld [vmem:[%s5] sm:$0x1]
      %v766 = vperm.slane %v764, 0
      %v768 = vadd.f32 %v748, %v766
      %v769 = vadd.f32 %v749, %v766
      %v770 = vadd.f32 %v750, %v766
      %v771 = vadd.f32 %v751, %v766
      %v772 = vadd.f32 %v752, %v766
      %v773 = vadd.f32 %v753, %v766
      %v774 = vadd.f32 %v754, %v766
      %v775 = vadd.f32 %v755, %v766
      %v776 = vadd.f32 %v756, %v766
      %v777 = vadd.f32 %v757, %v766
      %v778 = vadd.f32 %v758, %v766
      %v779 = vadd.f32 %v759, %v766
      %v780 = vadd.f32 %v760, %v766
      %v781 = vadd.f32 %v761, %v766
      %v782 = vadd.f32 %v762, %v766
      %v783 = vadd.f32 %v763, %v766
      %v784 = vadd.f32 %v768, %v705
      %v785 = vadd.f32 %v769, %v707
      %v786 = vadd.f32 %v770, %v710
      %v787 = vadd.f32 %v771, %v712
      %v788 = vadd.f32 %v772, %v715
      %v789 = vadd.f32 %v773, %v717
      %v790 = vadd.f32 %v774, %v720
      %v791 = vadd.f32 %v775, %v722
      %v792 = vadd.f32 %v776, %v725
      %v793 = vadd.f32 %v777, %v727
      %v794 = vadd.f32 %v778, %v730
      %v795 = vadd.f32 %v779, %v732
      %v796 = vadd.f32 %v780, %v735
      %v797 = vadd.f32 %v781, %v737
      %v798 = vadd.f32 %v782, %v740
      %v799 = vadd.f32 %v783, %v742
      %v800 = vmax.f32 %v784, 0.0
      %v801 = vmax.f32 %v785, 0.0
      %v802 = vmax.f32 %v786, 0.0
      %v803 = vmax.f32 %v787, 0.0
      %v804 = vmax.f32 %v788, 0.0
      %v805 = vmax.f32 %v789, 0.0
      %v806 = vmax.f32 %v790, 0.0
      %v807 = vmax.f32 %v791, 0.0
      %v808 = vmax.f32 %v792, 0.0
      %v809 = vmax.f32 %v793, 0.0
      %v810 = vmax.f32 %v794, 0.0
      %v811 = vmax.f32 %v795, 0.0
      %v812 = vmax.f32 %v796, 0.0
      %v813 = vmax.f32 %v797, 0.0
      %v814 = vmax.f32 %v798, 0.0
      %v815 = vmax.f32 %v799, 0.0
      %816 = vst [vmem:[%s314] sm:$0xff] %v800
      %817 = vst [vmem:[%s314 + $0x8] sm:$0xff] %v801
      %818 = vst [vmem:[%s314 + $0x10] sm:$0xff] %v802
      %819 = vst [vmem:[%s314 + $0x18] sm:$0xff] %v803
      %820 = vst [vmem:[%s314 + $0x20] sm:$0xff] %v804
      %821 = vst [vmem:[%s314 + $0x28] sm:$0xff] %v805
      %822 = vst [vmem:[%s314 + $0x30] sm:$0xff] %v806
      %823 = vst [vmem:[%s314 + $0x38] sm:$0xff] %v807
      %824 = vst [vmem:[%s314 + $0x40] sm:$0xff] %v808
      %825 = vst [vmem:[%s314 + $0x48] sm:$0xff] %v809
      %826 = vst [vmem:[%s314 + $0x50] sm:$0xff] %v810
      %827 = vst [vmem:[%s314 + $0x58] sm:$0xff] %v811
      %828 = vst [vmem:[%s314 + $0x60] sm:$0xff] %v812
      %829 = vst [vmem:[%s314 + $0x68] sm:$0xff] %v813
      %830 = vst [vmem:[%s314 + $0x70] sm:$0xff] %v814
      %831 = vst [vmem:[%s314 + $0x78] sm:$0xff] %v815
      %s832 = smul.u32 8, %s22
      %p833 = scmp.lt.s32.totalorder %s21, 1
      %s834 = scalar_select %p833, %s21, 1
      %p835 = scmp.lt.s32.totalorder %s832, 15
      %s836 = scalar_select %p835, %s832, 15
      %s837 = smul.addr %s836, 2
      %s838 = smul.addr %s834, 32
      %s839 = sadd.s32 %s837, %s838
      %s840 = smul.addr %s839, 8
      %s841 = scalar_lea.vmem %s6, %s840
      // Predicated region
      $region45: #{resnet_bottleneck_forward.3} parent=43 // pred_check
        %p842 = pneg %p187
      $region46: #{resnet_bottleneck_forward.3} parent=43 // pred_check_branch
        %844 = sbr.rel (%p842) target = $region48
      $region47: #{resnet_bottleneck_forward.3} parent=43 // pred_region
        %s845 = smul.u32 8, %s22
      $region48: #{resnet_bottleneck_forward.3} parent=43 // pred_fallthru
        _
    $region44: #{resnet_bottleneck_forward.3} parent=5 // pred_fallthru
      _
    %p846 = scmp.le.s32.totalorder 2, %s12
    // Predicated region
    $region49: #{resnet_bottleneck_forward.3} parent=5 // pred_check
      %p847 = pneg %p846
    $region50: #{resnet_bottleneck_forward.3} parent=5 // pred_check_branch
      %849 = sbr.rel (%p847) target = $region52
    $region51: #{resnet_bottleneck_forward.3} parent=5 // pred_region
      %s850 = ssub.s32 %s12, 2
      // Predicated region
      $region53: #{resnet_bottleneck_forward.3} parent=51 // pred_check
        %p851 = pneg %p193
      $region54: #{resnet_bottleneck_forward.3} parent=51 // pred_check_branch
        %853 = sbr.rel (%p851) target = $region56
      $region55: #{resnet_bottleneck_forward.3} parent=51 // pred_region
        %s854 = smul.u32 8, %s24
        %p855 = scmp.lt.s32.totalorder %s23, 1
        %s856 = scalar_select %p855, %s23, 1
        %p857 = scmp.lt.s32.totalorder %s854, 15
        %s858 = scalar_select %p857, %s854, 15
        %s859 = smul.addr %s858, 2
        %s860 = smul.addr %s856, 32
        %s861 = sadd.s32 %s859, %s860
        %s862 = smul.addr %s861, 8
        %s863 = scalar_lea.vmem %s6, %s862
      $region56: #{resnet_bottleneck_forward.3} parent=51 // pred_fallthru
        _
    $region52: #{resnet_bottleneck_forward.3} parent=5 // pred_fallthru
      _
  $region6: #{resnet_bottleneck_forward.3} parent=0 // loop_footer
    %s16 = sadd.s32 1, %s12
  $region7: #{resnet_bottleneck_forward.3} parent=0 // loop_footer_branch
    %11 = sbr.rel target = $region3
  $region8: #{resnet_bottleneck_forward.3} parent=0 // loop_exit
    _

// kernel: resnet_bottleneck_forward.2
$region0: #{resnet_bottleneck_forward.2}
  #allocation0 [shape = 'u32[]', space=smem, size = 0x4, offset = 0x4, fixed_abs, tag = 'smem constant byte address 0x4 - core index']
  #allocation1 [shape = 'u32[72,128]{1,0:T(1,128)}', space=vmem, size = 0x9000, scoped, tag = 'internal scratch']
  #allocation2 [shape = 'f32[12,32,128]{2,1,0:T(8,128)}', space=vmem, size = 0x30000, scoped, tag = 'scratch operand']
  #allocation3 [shape = 'f32[10,32,128]{2,1,0:T(8,128)}', space=vmem, size = 0x28000, scoped, tag = 'scratch operand']
  %s0 = inlined_call_operand.vmem [shape: f32[2,22,18,128], index: 0, kind: input, shape index: {}]
  %s1 = inlined_call_operand.vmem [shape: bf16[3,384,128], index: 1, kind: input, shape index: {}]
  %s2 = inlined_call_operand.vmem [shape: f32[1,128], index: 2, kind: input, shape index: {}]
  %s3 = inlined_call_operand.vmem [shape: bf16[3,384,128], index: 3, kind: input, shape index: {}]
  %s4 = inlined_call_operand.vmem [shape: f32[1,128], index: 4, kind: input, shape index: {}]
  %s5 = inlined_call_operand.vmem [shape: bf16[3,384,128], index: 5, kind: input, shape index: {}]
  %s6 = inlined_call_operand.vmem [shape: f32[1,128], index: 6, kind: input, shape index: {}]
  %s7 = inlined_call_operand.vmem [shape: bf16[2,16,16,128], index: 7, kind: output, shape index: {0}]
  %s8 = inlined_call_operand.vmem [shape: f32[2,2,2,128], index: 8, kind: output, shape index: {1}]
  %9 = xla_tuple %s7, %s8
  %s10 = sld [smem:[#allocation0]]
  $region85: #{resnet_bottleneck_forward.2} parent=0
    _
  %s12 = ssub.s32 1, %s10
  %s13 = scalar_select 0, %s12, %s10
  loop: start=0, step=1, limit=6
  $region2: #{resnet_bottleneck_forward.2} parent=0 // loop_pre_header
    _
  $region3: #{resnet_bottleneck_forward.2} parent=0 // loop_header
    %s15 = sphi 0, %s19
    %p16 = scmp.ge.s32.totalorder %s15, 6
    %s22 = sphi 0, %s34
    %s23 = sphi 0, %s30
    %s24 = sphi 0, %s22
    %s25 = sphi 0, %s23
    %s26 = sphi 0, %s24
    %s27 = sphi 0, %s25
    %s37 = sphi 0, %s39
    %s40 = sphi 0, %s37
    %s41 = sphi 0, %s40
    %s57 = sphi 0, %s41
    %s61 = sphi 0, %s61
    %s63 = sphi 0, %s61
    %s64 = sphi 0, %s63
    %s78 = sphi 0, %s64
    %s82 = sphi 0, %s82
    %s84 = sphi 0, %s82
    %s85 = sphi 0, %s84
    %s99 = sphi 0, %s85
    %s103 = sphi 0, %s103
    %s105 = sphi 0, %s103
    %s106 = sphi 0, %s105
    %s120 = sphi 0, %s106
    %s124 = sphi 0, %s124
    %s126 = sphi 0, %s124
    %s127 = sphi 0, %s126
    %s141 = sphi 0, %s127
    %s145 = sphi 0, %s145
    %s147 = sphi 0, %s145
    %s148 = sphi 0, %s147
    %s162 = sphi 0, %s148
    %s166 = sphi 0, %s166
    %s168 = sphi 0, %s166
    %s169 = sphi 0, %s168
    %s183 = sphi 0, %s169
    %s191 = sphi 0, %s193
    %s194 = sphi 0, %s191
    %s195 = sphi 0, %s194
    %s211 = sphi 0, %s195
    %s219 = sphi 0, %s221
    %s222 = sphi 0, %s219
    %s223 = sphi 0, %s222
    %s239 = sphi 0, %s223
  $region4: #{resnet_bottleneck_forward.2} parent=0 // loop_header_branch
    %18 = sbr.rel (%p16) target = $region8
  $region5: #{resnet_bottleneck_forward.2} parent=0 // loop_body
    %s20 = ssub.s32 %s15, 1
    %s21 = ssub.s32 %s15, 2
    %s28 = sadd.s32 1, %s23
    %p29 = scmp.ge.s32.totalorder %s28, 2
    %s30 = scalar_select %p29, 0, %s28
    %s31 = sadd.s32 1, %s22
    %s32 = scalar_select %p29, %s31, %s22
    %p33 = scmp.ge.s32.totalorder %s32, 2
    %s34 = scalar_select %p33, 0, %s32
    %s35 = ssub.s32 %s22, %s34
    %p36 = scmp.eq.s32.totalorder %s35, 0
    %s38 = sadd.s32 %s37, 1
    %s39 = scalar_select %p36, %s37, %s38
    %p42 = pneg %p36
    %p43 = scmp.eq.s32.totalorder %s15, 3
    %p44 = por %p42, %p43
    %p45 = scmp.ne.s32.totalorder %s37, %s40
    %p46 = scmp.eq.s32.totalorder %s15, 0
    %p47 = por %p45, %p46
    %p48 = scmp.ne.s32.totalorder %s37, %s40
    %p49 = scmp.eq.s32.totalorder %s20, 3
    %p50 = por %p48, %p49
    %p51 = scmp.ne.s32.totalorder %s40, %s41
    %p52 = scmp.eq.s32.totalorder %s20, 0
    %p53 = por %p51, %p52
    %p54 = scmp.ne.s32.totalorder %s40, %s41
    %p55 = scmp.eq.s32.totalorder %s21, 3
    %p56 = por %p54, %p55
    %p58 = scmp.ne.s32.totalorder %s41, %s57
    %p59 = scmp.eq.s32.totalorder %s21, 0
    %p60 = por %p58, %p59
    %s62 = sadd.s32 %s61, 1
    %p65 = scmp.eq.s32.totalorder %s15, 3
    %p66 = scmp.ne.s32.totalorder %s61, %s63
    %p67 = scmp.eq.s32.totalorder %s15, 0
    %p68 = por %p66, %p67
    %p69 = scmp.ne.s32.totalorder %s61, %s63
    %p70 = scmp.eq.s32.totalorder %s20, 3
    %p71 = por %p69, %p70
    %p72 = scmp.ne.s32.totalorder %s63, %s64
    %p73 = scmp.eq.s32.totalorder %s20, 0
    %p74 = por %p72, %p73
    %p75 = scmp.ne.s32.totalorder %s63, %s64
    %p76 = scmp.eq.s32.totalorder %s21, 3
    %p77 = por %p75, %p76
    %p79 = scmp.ne.s32.totalorder %s64, %s78
    %p80 = scmp.eq.s32.totalorder %s21, 0
    %p81 = por %p79, %p80
    %s83 = sadd.s32 %s82, 1
    %p86 = scmp.eq.s32.totalorder %s15, 3
    %p87 = scmp.ne.s32.totalorder %s82, %s84
    %p88 = scmp.eq.s32.totalorder %s15, 0
    %p89 = por %p87, %p88
    %p90 = scmp.ne.s32.totalorder %s82, %s84
    %p91 = scmp.eq.s32.totalorder %s20, 3
    %p92 = por %p90, %p91
    %p93 = scmp.ne.s32.totalorder %s84, %s85
    %p94 = scmp.eq.s32.totalorder %s20, 0
    %p95 = por %p93, %p94
    %p96 = scmp.ne.s32.totalorder %s84, %s85
    %p97 = scmp.eq.s32.totalorder %s21, 3
    %p98 = por %p96, %p97
    %p100 = scmp.ne.s32.totalorder %s85, %s99
    %p101 = scmp.eq.s32.totalorder %s21, 0
    %p102 = por %p100, %p101
    %s104 = sadd.s32 %s103, 1
    %p107 = scmp.eq.s32.totalorder %s15, 3
    %p108 = scmp.ne.s32.totalorder %s103, %s105
    %p109 = scmp.eq.s32.totalorder %s15, 0
    %p110 = por %p108, %p109
    %p111 = scmp.ne.s32.totalorder %s103, %s105
    %p112 = scmp.eq.s32.totalorder %s20, 3
    %p113 = por %p111, %p112
    %p114 = scmp.ne.s32.totalorder %s105, %s106
    %p115 = scmp.eq.s32.totalorder %s20, 0
    %p116 = por %p114, %p115
    %p117 = scmp.ne.s32.totalorder %s105, %s106
    %p118 = scmp.eq.s32.totalorder %s21, 3
    %p119 = por %p117, %p118
    %p121 = scmp.ne.s32.totalorder %s106, %s120
    %p122 = scmp.eq.s32.totalorder %s21, 0
    %p123 = por %p121, %p122
    %s125 = sadd.s32 %s124, 1
    %p128 = scmp.eq.s32.totalorder %s15, 3
    %p129 = scmp.ne.s32.totalorder %s124, %s126
    %p130 = scmp.eq.s32.totalorder %s15, 0
    %p131 = por %p129, %p130
    %p132 = scmp.ne.s32.totalorder %s124, %s126
    %p133 = scmp.eq.s32.totalorder %s20, 3
    %p134 = por %p132, %p133
    %p135 = scmp.ne.s32.totalorder %s126, %s127
    %p136 = scmp.eq.s32.totalorder %s20, 0
    %p137 = por %p135, %p136
    %p138 = scmp.ne.s32.totalorder %s126, %s127
    %p139 = scmp.eq.s32.totalorder %s21, 3
    %p140 = por %p138, %p139
    %p142 = scmp.ne.s32.totalorder %s127, %s141
    %p143 = scmp.eq.s32.totalorder %s21, 0
    %p144 = por %p142, %p143
    %s146 = sadd.s32 %s145, 1
    %p149 = scmp.eq.s32.totalorder %s15, 3
    %p150 = scmp.ne.s32.totalorder %s145, %s147
    %p151 = scmp.eq.s32.totalorder %s15, 0
    %p152 = por %p150, %p151
    %p153 = scmp.ne.s32.totalorder %s145, %s147
    %p154 = scmp.eq.s32.totalorder %s20, 3
    %p155 = por %p153, %p154
    %p156 = scmp.ne.s32.totalorder %s147, %s148
    %p157 = scmp.eq.s32.totalorder %s20, 0
    %p158 = por %p156, %p157
    %p159 = scmp.ne.s32.totalorder %s147, %s148
    %p160 = scmp.eq.s32.totalorder %s21, 3
    %p161 = por %p159, %p160
    %p163 = scmp.ne.s32.totalorder %s148, %s162
    %p164 = scmp.eq.s32.totalorder %s21, 0
    %p165 = por %p163, %p164
    %s167 = sadd.s32 %s166, 1
    %p170 = scmp.eq.s32.totalorder %s15, 3
    %p171 = scmp.ne.s32.totalorder %s166, %s168
    %p172 = scmp.eq.s32.totalorder %s15, 0
    %p173 = por %p171, %p172
    %p174 = scmp.ne.s32.totalorder %s166, %s168
    %p175 = scmp.eq.s32.totalorder %s20, 3
    %p176 = por %p174, %p175
    %p177 = scmp.ne.s32.totalorder %s168, %s169
    %p178 = scmp.eq.s32.totalorder %s20, 0
    %p179 = por %p177, %p178
    %p180 = scmp.ne.s32.totalorder %s168, %s169
    %p181 = scmp.eq.s32.totalorder %s21, 3
    %p182 = por %p180, %p181
    %p184 = scmp.ne.s32.totalorder %s169, %s183
    %p185 = scmp.eq.s32.totalorder %s21, 0
    %p186 = por %p184, %p185
    %s187 = ssub.s32 %s22, %s34
    %s188 = ssub.s32 %s23, %s30
    %s189 = sor.u32 %s187, %s188
    %p190 = scmp.eq.s32.totalorder %s189, 0
    %s192 = sadd.s32 %s191, 1
    %s193 = scalar_select %p190, %s191, %s192
    %p196 = pneg %p190
    %p197 = scmp.eq.s32.totalorder %s15, 3
    %p198 = por %p196, %p197
    %p199 = scmp.ne.s32.totalorder %s191, %s194
    %p200 = scmp.eq.s32.totalorder %s15, 0
    %p201 = por %p199, %p200
    %p202 = scmp.ne.s32.totalorder %s191, %s194
    %p203 = scmp.eq.s32.totalorder %s20, 3
    %p204 = por %p202, %p203
    %p205 = scmp.ne.s32.totalorder %s194, %s195
    %p206 = scmp.eq.s32.totalorder %s20, 0
    %p207 = por %p205, %p206
    %p208 = scmp.ne.s32.totalorder %s194, %s195
    %p209 = scmp.eq.s32.totalorder %s21, 3
    %p210 = por %p208, %p209
    %p212 = scmp.ne.s32.totalorder %s195, %s211
    %p213 = scmp.eq.s32.totalorder %s21, 0
    %p214 = por %p212, %p213
    %s215 = ssub.s32 %s22, %s34
    %s216 = ssub.s32 %s23, %s30
    %s217 = sor.u32 %s215, %s216
    %p218 = scmp.eq.s32.totalorder %s217, 0
    %s220 = sadd.s32 %s219, 1
    %s221 = scalar_select %p218, %s219, %s220
    %p224 = pneg %p218
    %p225 = scmp.eq.s32.totalorder %s15, 3
    %p226 = por %p224, %p225
    %p227 = scmp.ne.s32.totalorder %s219, %s222
    %p228 = scmp.eq.s32.totalorder %s15, 0
    %p229 = por %p227, %p228
    %p230 = scmp.ne.s32.totalorder %s219, %s222
    %p231 = scmp.eq.s32.totalorder %s20, 3
    %p232 = por %p230, %p231
    %p233 = scmp.ne.s32.totalorder %s222, %s223
    %p234 = scmp.eq.s32.totalorder %s20, 0
    %p235 = por %p233, %p234
    %p236 = scmp.ne.s32.totalorder %s222, %s223
    %p237 = scmp.eq.s32.totalorder %s21, 3
    %p238 = por %p236, %p237
    %p240 = scmp.ne.s32.totalorder %s223, %s239
    %p241 = scmp.eq.s32.totalorder %s21, 0
    %p242 = por %p240, %p241
    %p243 = scmp.le.s32.totalorder 1, %s15
    %p244 = scmp.lt.s32.totalorder %s15, 5
    %p245 = pnand %p243, %p244
    %p246 = pneg %p245
    // Predicated region
    $region9: #{resnet_bottleneck_forward.2} parent=5 // pred_check
      _
    $region10: #{resnet_bottleneck_forward.2} parent=5 // pred_check_branch
      %248 = sbr.rel (%p245) target = $region12
    $region11: #{resnet_bottleneck_forward.2} parent=5 // pred_region
      %s249 = ssub.s32 %s15, 1
      // Predicated region
      $region13: #{resnet_bottleneck_forward.2} parent=11 // pred_check
        %p250 = pneg %p74
      $region14: #{resnet_bottleneck_forward.2} parent=11 // pred_check_branch
        %252 = sbr.rel (%p250) target = $region16
      $region15: #{resnet_bottleneck_forward.2} parent=11 // pred_region
        _
      $region16: #{resnet_bottleneck_forward.2} parent=11 // pred_fallthru
        _
      // Predicated region
      $region17: #{resnet_bottleneck_forward.2} parent=11 // pred_check
        %p253 = pneg %p95
      $region18: #{resnet_bottleneck_forward.2} parent=11 // pred_check_branch
        %255 = sbr.rel (%p253) target = $region20
      $region19: #{resnet_bottleneck_forward.2} parent=11 // pred_region
        _
      $region20: #{resnet_bottleneck_forward.2} parent=11 // pred_fallthru
        _
      // Predicated region
      $region21: #{resnet_bottleneck_forward.2} parent=11 // pred_check
        %p256 = pneg %p116
      $region22: #{resnet_bottleneck_forward.2} parent=11 // pred_check_branch
        %258 = sbr.rel (%p256) target = $region24
      $region23: #{resnet_bottleneck_forward.2} parent=11 // pred_region
        _
      $region24: #{resnet_bottleneck_forward.2} parent=11 // pred_fallthru
        _
      // Predicated region
      $region25: #{resnet_bottleneck_forward.2} parent=11 // pred_check
        %p259 = pneg %p137
      $region26: #{resnet_bottleneck_forward.2} parent=11 // pred_check_branch
        %261 = sbr.rel (%p259) target = $region28
      $region27: #{resnet_bottleneck_forward.2} parent=11 // pred_region
        _
      $region28: #{resnet_bottleneck_forward.2} parent=11 // pred_fallthru
        _
      // Predicated region
      $region29: #{resnet_bottleneck_forward.2} parent=11 // pred_check
        %p262 = pneg %p158
      $region30: #{resnet_bottleneck_forward.2} parent=11 // pred_check_branch
        %264 = sbr.rel (%p262) target = $region32
      $region31: #{resnet_bottleneck_forward.2} parent=11 // pred_region
        _
      $region32: #{resnet_bottleneck_forward.2} parent=11 // pred_fallthru
        _
      // Predicated region
      $region33: #{resnet_bottleneck_forward.2} parent=11 // pred_check
        %p265 = pneg %p179
      $region34: #{resnet_bottleneck_forward.2} parent=11 // pred_check_branch
        %267 = sbr.rel (%p265) target = $region36
      $region35: #{resnet_bottleneck_forward.2} parent=11 // pred_region
        _
      $region36: #{resnet_bottleneck_forward.2} parent=11 // pred_fallthru
        _
    $region12: #{resnet_bottleneck_forward.2} parent=5 // pred_fallthru
      _
    %p268 = scmp.lt.s32.totalorder %s15, 4
    // Predicated region
    $region37: #{resnet_bottleneck_forward.2} parent=5 // pred_check
      %p269 = pneg %p268
    $region38: #{resnet_bottleneck_forward.2} parent=5 // pred_check_branch
      %271 = sbr.rel (%p269) target = $region40
    $region39: #{resnet_bottleneck_forward.2} parent=5 // pred_region
      // Predicated region
      $region41: #{resnet_bottleneck_forward.2} parent=39 // pred_check
        %p272 = pneg %p47
      $region42: #{resnet_bottleneck_forward.2} parent=39 // pred_check_branch
        %274 = sbr.rel (%p272) target = $region44
      $region43: #{resnet_bottleneck_forward.2} parent=39 // pred_region
        %p275 = scmp.lt.s32.totalorder %s22, 1
        %s276 = scalar_select %p275, %s22, 1
        %s277 = smul.addr %s276, 66
        %s278 = smul.addr %s277, 8
        %s279 = scalar_lea.vmem %s0, %s278
      $region44: #{resnet_bottleneck_forward.2} parent=39 // pred_fallthru
        _
    $region40: #{resnet_bottleneck_forward.2} parent=5 // pred_fallthru
      _
    %p280 = scmp.le.s32.totalorder 1, %s15
    %p281 = scmp.lt.s32.totalorder %s15, 5
    %p282 = pnand %p280, %p281
    %p283 = pneg %p282
    // Predicated region
    $region45: #{resnet_bottleneck_forward.2} parent=5 // pred_check
      _
    $region46: #{resnet_bottleneck_forward.2} parent=5 // pred_check_branch
      %285 = sbr.rel (%p282) target = $region48
    $region47: #{resnet_bottleneck_forward.2} parent=5 // pred_region
      %s286 = ssub.s32 %s15, 1
      %p287 = scmp.lt.s32.totalorder %s24, 1
      %s288 = scalar_select %p287, %s24, 1
      %s289 = smul.addr %s288, 66
      %s290 = smul.addr %s289, 8
      %s291 = scalar_lea.vmem %s0, %s290
      %p292 = pneg %p53
      %p293 = pneg %p50
      %p294 = pneg %p74
      %p295 = pneg %p71
      %p296 = pneg %p95
      %p297 = pneg %p92
      %p298 = pneg %p116
      %p299 = pneg %p113
      %p300 = pneg %p137
      %p301 = pneg %p134
      %p302 = pneg %p158
      %p303 = pneg %p155
      %p304 = pneg %p179
      %p305 = pneg %p176
      %p306 = pneg %p207
      %p307 = pneg %p204
      %s308 = smul.u32 8, %s25
      %p309 = scmp.lt.s32.totalorder %s24, 1
      %s310 = scalar_select %p309, %s24, 1
      %p311 = scmp.lt.s32.totalorder %s308, 15
      %s312 = scalar_select %p311, %s308, 15
      %s313 = smul.addr %s312, 2
      %s314 = smul.addr %s310, 32
      %s315 = sadd.s32 %s313, %s314
      %s316 = smul.addr %s315, 4
      %s317 = scalar_lea.vmem %s7, %s316
      %p318 = pneg %p235
      %p319 = pneg %p232
      %p320 = scmp.lt.s32.totalorder %s24, 1
      %s321 = scalar_select %p320, %s24, 1
      %p322 = scmp.lt.s32.totalorder %s25, 1
      %s323 = scalar_select %p322, %s25, 1
      %s324 = smul.addr %s321, 2
      %s325 = sadd.s32 %s323, %s324
      %s326 = smul.addr %s325, 2
      %s327 = scalar_lea.vmem %s8, %s326
      %p328 = scmp.lt.s32.totalorder %s24, 1
      %s329 = scalar_select %p328, %s24, 1
      %s330 = smul.addr %s329, 66
      %s331 = smul.addr %s330, 8
      %s332 = scalar_lea.vmem %s0, %s331
      %s333 = smul.u32 8, %s25
      %p334 = scmp.lt.s32.totalorder %s24, 1
      %s335 = scalar_select %p334, %s24, 1
      %p336 = scmp.lt.s32.totalorder %s333, 15
      %s337 = scalar_select %p336, %s333, 15
      %s338 = smul.addr %s337, 2
      %s339 = smul.addr %s335, 32
      %s340 = sadd.s32 %s338, %s339
      %s341 = smul.addr %s340, 4
      %s342 = scalar_lea.vmem %s7, %s341
      %s343 = smul.u32 8, %s25
      %p344 = scmp.lt.s32.totalorder %s24, 1
      %s345 = scalar_select %p344, %s24, 1
      %p346 = scmp.lt.s32.totalorder %s25, 1
      %s347 = scalar_select %p346, %s25, 1
      %s348 = smul.addr %s345, 2
      %s349 = sadd.s32 %s347, %s348
      %s350 = smul.addr %s349, 2
      %s351 = scalar_lea.vmem %s8, %s350
      %s352 = smul.u32 %s25, 8
      %353 = vst [vmem:[#allocation2] sm:$0xff] 0.0
      %354 = vst [vmem:[#allocation2 + $0x20] sm:$0xff] 0.0
      %355 = vst [vmem:[#allocation2 + $0x40] sm:$0xff] 0.0
      %356 = vst [vmem:[#allocation2 + $0x60] sm:$0xff] 0.0
      %357 = vst [vmem:[#allocation2 + $0x80] sm:$0xff] 0.0
      %358 = vst [vmem:[#allocation2 + $0xa0] sm:$0xff] 0.0
      %359 = vst [vmem:[#allocation2 + $0xc0] sm:$0xff] 0.0
      %360 = vst [vmem:[#allocation2 + $0xe0] sm:$0xff] 0.0
      %361 = vst [vmem:[#allocation2 + $0x100] sm:$0xff] 0.0
      %362 = vst [vmem:[#allocation2 + $0x120] sm:$0xff] 0.0
      %363 = vst [vmem:[#allocation2 + $0x140] sm:$0xff] 0.0
      %364 = vst [vmem:[#allocation2 + $0x160] sm:$0xff] 0.0
      %365 = vst [vmem:[#allocation2 + $0x18] sm:$0xff] 0.0
      %366 = vst [vmem:[#allocation2 + $0x38] sm:$0xff] 0.0
      %367 = vst [vmem:[#allocation2 + $0x58] sm:$0xff] 0.0
      %368 = vst [vmem:[#allocation2 + $0x78] sm:$0xff] 0.0
      %369 = vst [vmem:[#allocation2 + $0x98] sm:$0xff] 0.0
      %370 = vst [vmem:[#allocation2 + $0xb8] sm:$0xff] 0.0
      %371 = vst [vmem:[#allocation2 + $0xd8] sm:$0xff] 0.0
      %372 = vst [vmem:[#allocation2 + $0xf8] sm:$0xff] 0.0
      %373 = vst [vmem:[#allocation2 + $0x118] sm:$0xff] 0.0
      %374 = vst [vmem:[#allocation2 + $0x138] sm:$0xff] 0.0
      %375 = vst [vmem:[#allocation2 + $0x158] sm:$0xff] 0.0
      %376 = vst [vmem:[#allocation2 + $0x178] sm:$0xff] 0.0
      %377 = vst [vmem:[#allocation3] sm:$0xff] 0.0
      %378 = vst [vmem:[#allocation3 + $0x20] sm:$0xff] 0.0
      %379 = vst [vmem:[#allocation3 + $0x40] sm:$0xff] 0.0
      %380 = vst [vmem:[#allocation3 + $0x60] sm:$0xff] 0.0
      %381 = vst [vmem:[#allocation3 + $0x80] sm:$0xff] 0.0
      %382 = vst [vmem:[#allocation3 + $0xa0] sm:$0xff] 0.0
      %383 = vst [vmem:[#allocation3 + $0xc0] sm:$0xff] 0.0
      %384 = vst [vmem:[#allocation3 + $0xe0] sm:$0xff] 0.0
      %385 = vst [vmem:[#allocation3 + $0x100] sm:$0xff] 0.0
      %386 = vst [vmem:[#allocation3 + $0x120] sm:$0xff] 0.0
      %387 = vst [vmem:[#allocation3 + $0x18] sm:$0xff] 0.0
      %388 = vst [vmem:[#allocation3 + $0x38] sm:$0xff] 0.0
      %389 = vst [vmem:[#allocation3 + $0x58] sm:$0xff] 0.0
      %390 = vst [vmem:[#allocation3 + $0x78] sm:$0xff] 0.0
      %391 = vst [vmem:[#allocation3 + $0x98] sm:$0xff] 0.0
      %392 = vst [vmem:[#allocation3 + $0xb8] sm:$0xff] 0.0
      %393 = vst [vmem:[#allocation3 + $0xd8] sm:$0xff] 0.0
      %394 = vst [vmem:[#allocation3 + $0xf8] sm:$0xff] 0.0
      %395 = vst [vmem:[#allocation3 + $0x118] sm:$0xff] 0.0
      %396 = vst [vmem:[#allocation3 + $0x138] sm:$0xff] 0.0
      %s397 = smul.u32 %s352, 24
      %s398 = scalar_lea.vmem %s332, %s397
      %v399 = vld [vmem:[%s398] sm:$0xff]
      %v400 = vld [vmem:[%s398 + $0x8] sm:$0xff]
      %v401 = vld [vmem:[%s398 + $0x10] sm:$0x3]
      %v402 = vld [vmem:[%s398 + $0x18] sm:$0xff]
      %v403 = vld [vmem:[%s398 + $0x20] sm:$0xff]
      %v404 = vld [vmem:[%s398 + $0x28] sm:$0x3]
      %v405 = vld [vmem:[%s398 + $0x30] sm:$0xff]
      %v406 = vld [vmem:[%s398 + $0x38] sm:$0xff]
      %v407 = vld [vmem:[%s398 + $0x40] sm:$0x3]
      %v408 = vld [vmem:[%s398 + $0x48] sm:$0xff]
      %v409 = vld [vmem:[%s398 + $0x50] sm:$0xff]
      %v410 = vld [vmem:[%s398 + $0x58] sm:$0x3]
      %v411 = vld [vmem:[%s398 + $0x60] sm:$0xff]
      %v412 = vld [vmem:[%s398 + $0x68] sm:$0xff]
      %v413 = vld [vmem:[%s398 + $0x70] sm:$0x3]
      %v414 = vld [vmem:[%s398 + $0x78] sm:$0xff]
      %v415 = vld [vmem:[%s398 + $0x80] sm:$0xff]
      %v416 = vld [vmem:[%s398 + $0x88] sm:$0x3]
      %v417 = vld [vmem:[%s398 + $0x90] sm:$0xff]
      %v418 = vld [vmem:[%s398 + $0x98] sm:$0xff]
      %v419 = vld [vmem:[%s398 + $0xa0] sm:$0x3]
      %v420 = vld [vmem:[%s398 + $0xa8] sm:$0xff]
      %v421 = vld [vmem:[%s398 + $0xb0] sm:$0xff]
      %v422 = vld [vmem:[%s398 + $0xb8] sm:$0x3]
      %v423 = vld [vmem:[%s398 + $0xc0] sm:$0xff]
      %v424 = vld [vmem:[%s398 + $0xc8] sm:$0xff]
      %v425 = vld [vmem:[%s398 + $0xd0] sm:$0x3]
      %v426 = vld [vmem:[%s398 + $0xd8] sm:$0xff]
      %v427 = vld [vmem:[%s398 + $0xe0] sm:$0xff]
      %v428 = vld [vmem:[%s398 + $0xe8] sm:$0x3]
      %v429 = vld [vmem:[%s398 + $0xf0] sm:$0xff]
      %v430 = vld [vmem:[%s398 + $0xf8] sm:$0xff]
      %v431 = vld [vmem:[%s398 + $0x100] sm:$0x3]
      %v432 = vld [vmem:[%s398 + $0x108] sm:$0xff]
      %v433 = vld [vmem:[%s398 + $0x110] sm:$0xff]
      %v434 = vld [vmem:[%s398 + $0x118] sm:$0x3]
      %v435 = vld [vmem:[%s398 + $0x120] sm:$0xff]
      %v436 = vld [vmem:[%s398 + $0x128] sm:$0xff]
      %v437 = vld [vmem:[%s398 + $0x130] sm:$0x3]
      %v438 = vld [vmem:[%s398 + $0x138] sm:$0xff]
      %v439 = vld [vmem:[%s398 + $0x140] sm:$0xff]
      %v440 = vld [vmem:[%s398 + $0x148] sm:$0x3]
      %v441 = vpack.c.bf16 %v399, %v399
      %v442 = vpack.c.bf16 %v400, %v400
      %v443 = vpack.c.bf16 %v401, %v401
      %v444 = vpack.c.bf16 %v402, %v402
      %v445 = vpack.c.bf16 %v403, %v403
      %v446 = vpack.c.bf16 %v404, %v404
      %v447 = vpack.c.bf16 %v405, %v405
      %v448 = vpack.c.bf16 %v406, %v406
      %v449 = vpack.c.bf16 %v407, %v407
      %v450 = vpack.c.bf16 %v408, %v408
      %v451 = vpack.c.bf16 %v409, %v409
      %v452 = vpack.c.bf16 %v410, %v410
      %v453 = vpack.c.bf16 %v411, %v411
      %v454 = vpack.c.bf16 %v412, %v412
      %v455 = vpack.c.bf16 %v413, %v413
      %v456 = vpack.c.bf16 %v414, %v414
      %v457 = vpack.c.bf16 %v415, %v415
      %v458 = vpack.c.bf16 %v416, %v416
      %v459 = vpack.c.bf16 %v417, %v417
      %v460 = vpack.c.bf16 %v418, %v418
      %v461 = vpack.c.bf16 %v419, %v419
      %v462 = vpack.c.bf16 %v420, %v420
      %v463 = vpack.c.bf16 %v421, %v421
      %v464 = vpack.c.bf16 %v422, %v422
      %v465 = vpack.c.bf16 %v423, %v423
      %v466 = vpack.c.bf16 %v424, %v424
      %v467 = vpack.c.bf16 %v425, %v425
      %v468 = vpack.c.bf16 %v426, %v426
      %v469 = vpack.c.bf16 %v427, %v427
      %v470 = vpack.c.bf16 %v428, %v428
      %v471 = vpack.c.bf16 %v429, %v429
      %v472 = vpack.c.bf16 %v430, %v430
      %v473 = vpack.c.bf16 %v431, %v431
      %v474 = vpack.c.bf16 %v432, %v432
      %v475 = vpack.c.bf16 %v433, %v433
      %v476 = vpack.c.bf16 %v434, %v434
      %v477 = vpack.c.bf16 %v435, %v435
      %v478 = vpack.c.bf16 %v436, %v436
      %v479 = vpack.c.bf16 %v437, %v437
      %v480 = vpack.c.bf16 %v438, %v438
      %v481 = vpack.c.bf16 %v439, %v439
      %v482 = vpack.c.bf16 %v440, %v440
      %v483 = vld [vmem:[%s2] sm:$0x1]
      %v508 = vunpack.c.l.b16 %v441
      %v509 = vunpack.c.l.b16 %v442
      %v510 = vunpack.c.l.b16 %v444
      %v511 = vunpack.c.l.b16 %v445
      %v512 = vunpack.c.l.b16 %v447
      %v513 = vunpack.c.l.b16 %v448
      %v514 = vunpack.c.l.b16 %v450
      %v515 = vunpack.c.l.b16 %v451
      %v516 = vunpack.c.l.b16 %v453
      %v517 = vunpack.c.l.b16 %v454
      %v518 = vunpack.c.l.b16 %v456
      %v519 = vunpack.c.l.b16 %v457
      %v520 = vunpack.c.l.b16 %v459
      %v521 = vunpack.c.l.b16 %v460
      %v522 = vunpack.c.l.b16 %v462
      %v523 = vunpack.c.l.b16 %v463
      %v524 = vunpack.c.l.b16 %v465
      %v525 = vunpack.c.l.b16 %v466
      %v526 = vunpack.c.l.b16 %v468
      %v527 = vunpack.c.l.b16 %v469
      %v528 = vunpack.c.l.b16 %v471
      %v529 = vunpack.c.l.b16 %v472
      %v530 = vunpack.c.l.b16 %v474
      %v531 = vunpack.c.l.b16 %v475
      %v532 = vpack.c.b16 %v509, %v508
      %v533 = vpack.c.b16 %v511, %v510
      %v534 = vpack.c.b16 %v513, %v512
      %v535 = vpack.c.b16 %v515, %v514
      %v536 = vpack.c.b16 %v517, %v516
      %v537 = vpack.c.b16 %v519, %v518
      %v538 = vpack.c.b16 %v521, %v520
      %v539 = vpack.c.b16 %v523, %v522
      %v540 = vpack.c.b16 %v525, %v524
      %v541 = vpack.c.b16 %v527, %v526
      %v542 = vpack.c.b16 %v529, %v528
      %v543 = vpack.c.b16 %v531, %v530
      %v568 = vunpack.c.l.b16 %v443
      %v569 = vunpack.c.l.b16 %v446
      %v570 = vunpack.c.l.b16 %v449
      %v571 = vunpack.c.l.b16 %v452
      %v572 = vunpack.c.l.b16 %v455
      %v573 = vunpack.c.l.b16 %v458
      %v574 = vunpack.c.l.b16 %v461
      %v575 = vunpack.c.l.b16 %v464
      %v576 = vunpack.c.l.b16 %v467
      %v577 = vunpack.c.l.b16 %v470
      %v578 = vunpack.c.l.b16 %v473
      %v579 = vunpack.c.l.b16 %v476
      %v580 = vpack.c.b16 %v568, %v568
      %v581 = vpack.c.b16 %v569, %v569
      %v582 = vpack.c.b16 %v570, %v570
      %v583 = vpack.c.b16 %v571, %v571
      %v584 = vpack.c.b16 %v572, %v572
      %v585 = vpack.c.b16 %v573, %v573
      %v586 = vpack.c.b16 %v574, %v574
      %v587 = vpack.c.b16 %v575, %v575
      %v588 = vpack.c.b16 %v576, %v576
      %v589 = vpack.c.b16 %v577, %v577
      %v590 = vpack.c.b16 %v578, %v578
      %v591 = vpack.c.b16 %v579, %v579
      %vm592 = vsmask.f32 7424
      %v594 = vshrl.u32 %v532, 16
      %v596 = vshll.u32 %v532, 16
      %v598 = vrot.slane %v596, 1
      %v599 = vor.u32 %v594, %v598
      %v601 = vshll.u32 %v580, 16
      %v603 = vrot.slane %v601, 1
      %v604 = vsel %vm592, %v599, %v603
      %v606 = vshrl.u32 %v533, 16
      %v608 = vshll.u32 %v533, 16
      %v610 = vrot.slane %v608, 1
      %v611 = vor.u32 %v606, %v610
      %v613 = vshll.u32 %v581, 16
      %v615 = vrot.slane %v613, 1
      %v616 = vsel %vm592, %v611, %v615
      %v618 = vshrl.u32 %v534, 16
      %v620 = vshll.u32 %v534, 16
      %v622 = vrot.slane %v620, 1
      %v623 = vor.u32 %v618, %v622
      %v625 = vshll.u32 %v582, 16
      %v627 = vrot.slane %v625, 1
      %v628 = vsel %vm592, %v623, %v627
      %v630 = vshrl.u32 %v535, 16
      %v632 = vshll.u32 %v535, 16
      %v634 = vrot.slane %v632, 1
      %v635 = vor.u32 %v630, %v634
      %v637 = vshll.u32 %v583, 16
      %v639 = vrot.slane %v637, 1
      %v640 = vsel %vm592, %v635, %v639
      %v642 = vshrl.u32 %v536, 16
      %v644 = vshll.u32 %v536, 16
      %v646 = vrot.slane %v644, 1
      %v647 = vor.u32 %v642, %v646
      %v649 = vshll.u32 %v584, 16
      %v651 = vrot.slane %v649, 1
      %v652 = vsel %vm592, %v647, %v651
      %v654 = vshrl.u32 %v537, 16
      %v656 = vshll.u32 %v537, 16
      %v658 = vrot.slane %v656, 1
      %v659 = vor.u32 %v654, %v658
      %v661 = vshll.u32 %v585, 16
      %v663 = vrot.slane %v661, 1
      %v664 = vsel %vm592, %v659, %v663
      %v666 = vshrl.u32 %v538, 16
      %v668 = vshll.u32 %v538, 16
      %v670 = vrot.slane %v668, 1
      %v671 = vor.u32 %v666, %v670
      %v673 = vshll.u32 %v586, 16
      %v675 = vrot.slane %v673, 1
      %v676 = vsel %vm592, %v671, %v675
      %v678 = vshrl.u32 %v539, 16
      %v680 = vshll.u32 %v539, 16
      %v682 = vrot.slane %v680, 1
      %v683 = vor.u32 %v678, %v682
      %v685 = vshll.u32 %v587, 16
      %v687 = vrot.slane %v685, 1
      %v688 = vsel %vm592, %v683, %v687
      %v690 = vshrl.u32 %v540, 16
      %v692 = vshll.u32 %v540, 16
      %v694 = vrot.slane %v692, 1
      %v695 = vor.u32 %v690, %v694
      %v697 = vshll.u32 %v588, 16
      %v699 = vrot.slane %v697, 1
      %v700 = vsel %vm592, %v695, %v699
      %v702 = vshrl.u32 %v541, 16
      %v704 = vshll.u32 %v541, 16
      %v706 = vrot.slane %v704, 1
      %v707 = vor.u32 %v702, %v706
      %v709 = vshll.u32 %v589, 16
      %v711 = vrot.slane %v709, 1
      %v712 = vsel %vm592, %v707, %v711
      %v714 = vshrl.u32 %v542, 16
      %v716 = vshll.u32 %v542, 16
      %v718 = vrot.slane %v716, 1
      %v719 = vor.u32 %v714, %v718
      %v721 = vshll.u32 %v590, 16
      %v723 = vrot.slane %v721, 1
      %v724 = vsel %vm592, %v719, %v723
      %v726 = vshrl.u32 %v543, 16
      %v728 = vshll.u32 %v543, 16
      %v730 = vrot.slane %v728, 1
      %v731 = vor.u32 %v726, %v730
      %v733 = vshll.u32 %v591, 16
      %v735 = vrot.slane %v733, 1
      %v736 = vsel %vm592, %v731, %v735
      %vm749 = vcmask 1046528
      %v750 = vrot.slane %v532, 1
      %v751 = vrot.slane %v580, 1
      %v752 = vsel %vm749, %v750, %v751
      %v753 = vrot.slane %v533, 1
      %v754 = vrot.slane %v581, 1
      %v755 = vsel %vm749, %v753, %v754
      %v756 = vrot.slane %v534, 1
      %v757 = vrot.slane %v582, 1
      %v758 = vsel %vm749, %v756, %v757
      %v759 = vrot.slane %v535, 1
      %v760 = vrot.slane %v583, 1
      %v761 = vsel %vm749, %v759, %v760
      %v762 = vrot.slane %v536, 1
      %v763 = vrot.slane %v584, 1
      %v764 = vsel %vm749, %v762, %v763
      %v765 = vrot.slane %v537, 1
      %v766 = vrot.slane %v585, 1
      %v767 = vsel %vm749, %v765, %v766
      %v768 = vrot.slane %v538, 1
      %v769 = vrot.slane %v586, 1
      %v770 = vsel %vm749, %v768, %v769
      %v771 = vrot.slane %v539, 1
      %v772 = vrot.slane %v587, 1
      %v773 = vsel %vm749, %v771, %v772
      %v774 = vrot.slane %v540, 1
      %v775 = vrot.slane %v588, 1
      %v776 = vsel %vm749, %v774, %v775
      %v777 = vrot.slane %v541, 1
      %v778 = vrot.slane %v589, 1
      %v779 = vsel %vm749, %v777, %v778
      %v780 = vrot.slane %v542, 1
      %v781 = vrot.slane %v590, 1
      %v782 = vsel %vm749, %v780, %v781
      %v783 = vrot.slane %v543, 1
      %v784 = vrot.slane %v591, 1
      %v785 = vsel %vm749, %v783, %v784
      %v798 = vld [vmem:[%s1] sm:$0xf]
      %v799 = vld [vmem:[%s1 + $0x4] sm:$0xf]
      %v800 = vld [vmem:[%s1 + $0x8] sm:$0xf]
      %v801 = vld [vmem:[%s1 + $0xc] sm:$0xf]
      %v802 = vld [vmem:[%s1 + $0x10] sm:$0xf]
      %v803 = vld [vmem:[%s1 + $0x14] sm:$0xf]
      %v804 = vld [vmem:[%s1 + $0x18] sm:$0xf]
      %v805 = vld [vmem:[%s1 + $0x1c] sm:$0xf]
      %v806 = vld [vmem:[%s1 + $0x20] sm:$0xf]
      %v807 = vld [vmem:[%s1 + $0x24] sm:$0xf]
      %v808 = vld [vmem:[%s1 + $0x28] sm:$0xf]
      %v809 = vld [vmem:[%s1 + $0x2c] sm:$0xf]
      %v810 = vld [vmem:[%s1 + $0x30] sm:$0xf]
      %v811 = vld [vmem:[%s1 + $0x34] sm:$0xf]
      %v812 = vld [vmem:[%s1 + $0x38] sm:$0xf]
      %v813 = vld [vmem:[%s1 + $0x3c] sm:$0xf]
      %v814 = vld [vmem:[%s1 + $0x40] sm:$0xf]
      %v815 = vld [vmem:[%s1 + $0x44] sm:$0xf]
      %v816 = vld [vmem:[%s1 + $0x48] sm:$0xf]
      %v817 = vld [vmem:[%s1 + $0x4c] sm:$0xf]
      %v818 = vld [vmem:[%s1 + $0x50] sm:$0xf]
      %v819 = vld [vmem:[%s1 + $0x54] sm:$0xf]
      %v820 = vld [vmem:[%s1 + $0x58] sm:$0xf]
      %v821 = vld [vmem:[%s1 + $0x5c] sm:$0xf]
      %v822 = vld [vmem:[%s1 + $0x60] sm:$0xf]
      %v823 = vld [vmem:[%s1 + $0x64] sm:$0xf]
      %v824 = vld [vmem:[%s1 + $0x68] sm:$0xf]
      %v825 = vld [vmem:[%s1 + $0x6c] sm:$0xf]
      %v826 = vld [vmem:[%s1 + $0x70] sm:$0xf]
      %v827 = vld [vmem:[%s1 + $0x74] sm:$0xf]
      %v828 = vld [vmem:[%s1 + $0x78] sm:$0xf]
      %v829 = vld [vmem:[%s1 + $0x7c] sm:$0xf]
      %v830 = vld [vmem:[%s1 + $0x80] sm:$0xf]
      %v831 = vld [vmem:[%s1 + $0x84] sm:$0xf]
      %v832 = vld [vmem:[%s1 + $0x88] sm:$0xf]
      %v833 = vld [vmem:[%s1 + $0x8c] sm:$0xf]
      %v834 = vld [vmem:[%s1 + $0x90] sm:$0xf]
      %v835 = vld [vmem:[%s1 + $0x94] sm:$0xf]
      %v836 = vld [vmem:[%s1 + $0x98] sm:$0xf]
      %v837 = vld [vmem:[%s1 + $0x9c] sm:$0xf]
      %v838 = vld [vmem:[%s1 + $0xa0] sm:$0xf]
      %v839 = vld [vmem:[%s1 + $0xa4] sm:$0xf]
      %v840 = vld [vmem:[%s1 + $0xa8] sm:$0xf]
      %v841 = vld [vmem:[%s1 + $0xac] sm:$0xf]
      %v842 = vld [vmem:[%s1 + $0xb0] sm:$0xf]
      %v843 = vld [vmem:[%s1 + $0xb4] sm:$0xf]
      %v844 = vld [vmem:[%s1 + $0xb8] sm:$0xf]
      %v845 = vld [vmem:[%s1 + $0xbc] sm:$0xf]
      %v848 = vunpack.c.l.b16 %v477
      %v849 = vunpack.c.l.b16 %v478
      %v850 = vpack.c.b16 %v849, %v848
      %v853 = vunpack.c.l.b16 %v479
      %v854 = vpack.c.b16 %v853, %v853
      %v856 = vshrl.u32 %v850, 16
      %v858 = vshll.u32 %v850, 16
      %v860 = vrot.slane %v858, 1
      %v861 = vor.u32 %v856, %v860
      %v863 = vshll.u32 %v854, 16
      %v865 = vrot.slane %v863, 1
      %v866 = vsel %vm592, %v861, %v865
      %v868 = vrot.slane %v850, 1
      %v869 = vrot.slane %v854, 1
      %v870 = vsel %vm749, %v868, %v869
      %s872 = scalar_lea.vmem %s1, 192
      %v873 = vld [vmem:[%s872] sm:$0xf]
      %v874 = vld [vmem:[%s872 + $0x4] sm:$0xf]
      %v875 = vld [vmem:[%s872 + $0x8] sm:$0xf]
      %v876 = vld [vmem:[%s872 + $0xc] sm:$0xf]
      %v877 = vld [vmem:[%s872 + $0x10] sm:$0xf]
      %v878 = vld [vmem:[%s872 + $0x14] sm:$0xf]
      %v879 = vld [vmem:[%s872 + $0x18] sm:$0xf]
      %v880 = vld [vmem:[%s872 + $0x1c] sm:$0xf]
      %v881 = vld [vmem:[%s872 + $0x20] sm:$0xf]
      %v882 = vld [vmem:[%s872 + $0x24] sm:$0xf]
      %v883 = vld [vmem:[%s872 + $0x28] sm:$0xf]
      %v884 = vld [vmem:[%s872 + $0x2c] sm:$0xf]
      %v885 = vld [vmem:[%s872 + $0x30] sm:$0xf]
      %v886 = vld [vmem:[%s872 + $0x34] sm:$0xf]
      %v887 = vld [vmem:[%s872 + $0x38] sm:$0xf]
      %v888 = vld [vmem:[%s872 + $0x3c] sm:$0xf]
      %v889 = vld [vmem:[%s872 + $0x40] sm:$0xf]
      %v890 = vld [vmem:[%s872 + $0x44] sm:$0xf]
      %v891 = vld [vmem:[%s872 + $0x48] sm:$0xf]
      %v892 = vld [vmem:[%s872 + $0x4c] sm:$0xf]
      %v893 = vld [vmem:[%s872 + $0x50] sm:$0xf]
      %v894 = vld [vmem:[%s872 + $0x54] sm:$0xf]
      %v895 = vld [vmem:[%s872 + $0x58] sm:$0xf]
      %v896 = vld [vmem:[%s872 + $0x5c] sm:$0xf]
      %v897 = vld [vmem:[%s872 + $0x60] sm:$0xf]
      %v898 = vld [vmem:[%s872 + $0x64] sm:$0xf]
      %v899 = vld [vmem:[%s872 + $0x68] sm:$0xf]
      %v900 = vld [vmem:[%s872 + $0x6c] sm:$0xf]
      %v901 = vld [vmem:[%s872 + $0x70] sm:$0xf]
      %v902 = vld [vmem:[%s872 + $0x74] sm:$0xf]
      %v903 = vld [vmem:[%s872 + $0x78] sm:$0xf]
      %v904 = vld [vmem:[%s872 + $0x7c] sm:$0xf]
      %v905 = vld [vmem:[%s872 + $0x80] sm:$0xf]
      %v906 = vld [vmem:[%s872 + $0x84] sm:$0xf]
      %v907 = vld [vmem:[%s872 + $0x88] sm:$0xf]
      %v908 = vld [vmem:[%s872 + $0x8c] sm:$0xf]
      %v909 = vld [vmem:[%s872 + $0x90] sm:$0xf]
      %v910 = vld [vmem:[%s872 + $0x94] sm:$0xf]
      %v911 = vld [vmem:[%s872 + $0x98] sm:$0xf]
      %v912 = vld [vmem:[%s872 + $0x9c] sm:$0xf]
      %v913 = vld [vmem:[%s872 + $0xa0] sm:$0xf]
      %v914 = vld [vmem:[%s872 + $0xa4] sm:$0xf]
      %v915 = vld [vmem:[%s872 + $0xa8] sm:$0xf]
      %v916 = vld [vmem:[%s872 + $0xac] sm:$0xf]
      %v917 = vld [vmem:[%s872 + $0xb0] sm:$0xf]
      %v918 = vld [vmem:[%s872 + $0xb4] sm:$0xf]
      %v919 = vld [vmem:[%s872 + $0xb8] sm:$0xf]
      %v920 = vld [vmem:[%s872 + $0xbc] sm:$0xf]
      %v969 = vunpack.c.l.b16 %v873
      %v970 = vunpack.c.l.b16 %v874
      %v971 = vunpack.c.l.b16 %v875
      %v972 = vunpack.c.l.b16 %v876
      %v973 = vunpack.c.l.b16 %v877
      %v974 = vunpack.c.l.b16 %v878
      %v975 = vunpack.c.l.b16 %v879
      %v976 = vunpack.c.l.b16 %v880
      %v977 = vunpack.c.l.b16 %v881
      %v978 = vunpack.c.l.b16 %v882
      %v979 = vunpack.c.l.b16 %v883
      %v980 = vunpack.c.l.b16 %v884
      %v981 = vunpack.c.l.b16 %v885
      %v982 = vunpack.c.l.b16 %v886
      %v983 = vunpack.c.l.b16 %v887
      %v984 = vunpack.c.l.b16 %v888
      %v985 = vunpack.c.l.b16 %v889
      %v986 = vunpack.c.l.b16 %v890
      %v987 = vunpack.c.l.b16 %v891
      %v988 = vunpack.c.l.b16 %v892
      %v989 = vunpack.c.l.b16 %v893
      %v990 = vunpack.c.l.b16 %v894
      %v991 = vunpack.c.l.b16 %v895
      %v992 = vunpack.c.l.b16 %v896
      %v993 = vunpack.c.l.b16 %v897
      %v994 = vunpack.c.l.b16 %v898
      %v995 = vunpack.c.l.b16 %v899
      %v996 = vunpack.c.l.b16 %v900
      %v997 = vunpack.c.l.b16 %v901
      %v998 = vunpack.c.l.b16 %v902
      %v999 = vunpack.c.l.b16 %v903
      %v1000 = vunpack.c.l.b16 %v904
      %v1001 = vunpack.c.l.b16 %v905
      %v1002 = vunpack.c.l.b16 %v906
      %v1003 = vunpack.c.l.b16 %v907
      %v1004 = vunpack.c.l.b16 %v908
      %v1005 = vunpack.c.l.b16 %v909
      %v1006 = vunpack.c.l.b16 %v910
      %v1007 = vunpack.c.l.b16 %v911
      %v1008 = vunpack.c.l.b16 %v912
      %v1009 = vunpack.c.l.b16 %v913
      %v1010 = vunpack.c.l.b16 %v914
      %v1011 = vunpack.c.l.b16 %v915
      %v1012 = vunpack.c.l.b16 %v916
      %v1013 = vunpack.c.l.b16 %v917
      %v1014 = vunpack.c.l.b16 %v918
      %v1015 = vunpack.c.l.b16 %v919
      %v1016 = vunpack.c.l.b16 %v920
      %v1017 = vpack.c.b16 %v970, %v969
      %v1018 = vpack.c.b16 %v972, %v971
      %v1019 = vpack.c.b16 %v974, %v973
      %v1020 = vpack.c.b16 %v976, %v975
      %v1021 = vpack.c.b16 %v978, %v977
      %v1022 = vpack.c.b16 %v980, %v979
      %v1023 = vpack.c.b16 %v982, %v981
      %v1024 = vpack.c.b16 %v984, %v983
      %v1025 = vpack.c.b16 %v986, %v985
      %v1026 = vpack.c.b16 %v988, %v987
      %v1027 = vpack.c.b16 %v990, %v989
      %v1028 = vpack.c.b16 %v992, %v991
      %v1029 = vpack.c.b16 %v994, %v993
      %v1030 = vpack.c.b16 %v996, %v995
      %v1031 = vpack.c.b16 %v998, %v997
      %v1032 = vpack.c.b16 %v1000, %v999
      %v1033 = vpack.c.b16 %v1002, %v1001
      %v1034 = vpack.c.b16 %v1004, %v1003
      %v1035 = vpack.c.b16 %v1006, %v1005
      %v1036 = vpack.c.b16 %v1008, %v1007
      %v1037 = vpack.c.b16 %v1010, %v1009
      %v1038 = vpack.c.b16 %v1012, %v1011
      %v1039 = vpack.c.b16 %v1014, %v1013
      %v1040 = vpack.c.b16 %v1016, %v1015
      %1065 = vmatpush.bf16.msra.mxu0 %v1024
      %1066 = vmatpush.bf16.msra.mxu0 %v1023
      %1067 = vmatpush.bf16.msra.mxu0 %v1022
      %1068 = vmatpush.bf16.msra.mxu0 %v1021
      %1069 = vmatpush.bf16.msra.mxu0 %v1020
      %1070 = vmatpush.bf16.msra.mxu0 %v1019
      %1071 = vmatpush.bf16.msra.mxu0 %v1018
      %1072 = vmatpush.bf16.msra.mxu0 %v1017
      %1073 = vmatmul.bf16.gmra.mxu0 %v533
      %v1074 = vpop.f32.mrf.mxu0
      %v1075 = vadd.f32 0.0, %v1074
      %v1076 = vpop.f32.mrf.mxu0
      %v1077 = vadd.f32 0.0, %v1076
      %1078 = vmatmul.bf16.gmra.mxu0 %v534
      %v1079 = vpop.f32.mrf.mxu0
      %v1080 = vadd.f32 0.0, %v1079
      %v1081 = vpop.f32.mrf.mxu0
      %v1082 = vadd.f32 0.0, %v1081
      %1083 = vmatmul.bf16.gmra.mxu0 %v535
      %v1084 = vpop.f32.mrf.mxu0
      %v1085 = vadd.f32 0.0, %v1084
      %v1086 = vpop.f32.mrf.mxu0
      %v1087 = vadd.f32 0.0, %v1086
      %1088 = vmatmul.bf16.gmra.mxu0 %v536
      %v1089 = vpop.f32.mrf.mxu0
      %v1090 = vadd.f32 0.0, %v1089
      %v1091 = vpop.f32.mrf.mxu0
      %v1092 = vadd.f32 0.0, %v1091
      %1093 = vmatmul.bf16.gmra.mxu0 %v537
      %v1094 = vpop.f32.mrf.mxu0
      %v1095 = vadd.f32 0.0, %v1094
      %v1096 = vpop.f32.mrf.mxu0
      %v1097 = vadd.f32 0.0, %v1096
      %1098 = vmatmul.bf16.gmra.mxu0 %v538
      %v1099 = vpop.f32.mrf.mxu0
      %v1100 = vadd.f32 0.0, %v1099
      %v1101 = vpop.f32.mrf.mxu0
      %v1102 = vadd.f32 0.0, %v1101
      %1103 = vmatmul.bf16.gmra.mxu0 %v539
      %v1104 = vpop.f32.mrf.mxu0
      %v1105 = vadd.f32 0.0, %v1104
      %v1106 = vpop.f32.mrf.mxu0
      %v1107 = vadd.f32 0.0, %v1106
      %1108 = vmatmul.bf16.gmra.mxu0 %v540
      %v1109 = vpop.f32.mrf.mxu0
      %v1110 = vadd.f32 0.0, %v1109
      %v1111 = vpop.f32.mrf.mxu0
      %v1112 = vadd.f32 0.0, %v1111
      %1113 = vmatmul.bf16.gmra.mxu0 %v541
      %v1114 = vpop.f32.mrf.mxu0
      %v1115 = vadd.f32 0.0, %v1114
      %v1116 = vpop.f32.mrf.mxu0
      %v1117 = vadd.f32 0.0, %v1116
      %1118 = vmatmul.bf16.gmra.mxu0 %v542
      %v1119 = vpop.f32.mrf.mxu0
      %v1120 = vadd.f32 0.0, %v1119
      %v1121 = vpop.f32.mrf.mxu0
      %v1122 = vadd.f32 0.0, %v1121
      %1123 = vmatmul.bf16.gmra.mxu0 %v543
      %v1124 = vpop.f32.mrf.mxu0
      %v1125 = vadd.f32 0.0, %v1124
      %v1126 = vpop.f32.mrf.mxu0
      %v1127 = vadd.f32 0.0, %v1126
      %1128 = vmatmul.bf16.gmra.mxu0 %v850
      %v1129 = vpop.f32.mrf.mxu0
      %v1130 = vadd.f32 0.0, %v1129
      %v1131 = vpop.f32.mrf.mxu0
      %v1132 = vadd.f32 0.0, %v1131
      %1133 = vdwg.mxu0
      %1134 = vmatpush.bf16.msra.mxu0 %v1032
      %1135 = vmatpush.bf16.msra.mxu0 %v1031
      %1136 = vmatpush.bf16.msra.mxu0 %v1030
      %1137 = vmatpush.bf16.msra.mxu0 %v1029
      %1138 = vmatpush.bf16.msra.mxu0 %v1028
      %1139 = vmatpush.bf16.msra.mxu0 %v1027
      %1140 = vmatpush.bf16.msra.mxu0 %v1026
      %1141 = vmatpush.bf16.msra.mxu0 %v1025
      %1142 = vmatmul.bf16.gmra.mxu0 %v616
      %v1143 = vpop.f32.mrf.mxu0
      %v1144 = vadd.f32 %v1075, %v1143
      %v1145 = vpop.f32.mrf.mxu0
      %v1146 = vadd.f32 %v1077, %v1145
      %1147 = vmatmul.bf16.gmra.mxu0 %v628
      %v1148 = vpop.f32.mrf.mxu0
      %v1149 = vadd.f32 %v1080, %v1148
      %v1150 = vpop.f32.mrf.mxu0
      %v1151 = vadd.f32 %v1082, %v1150
      %1152 = vmatmul.bf16.gmra.mxu0 %v640
      %v1153 = vpop.f32.mrf.mxu0
      %v1154 = vadd.f32 %v1085, %v1153
      %v1155 = vpop.f32.mrf.mxu0
      %v1156 = vadd.f32 %v1087, %v1155
      %1157 = vmatmul.bf16.gmra.mxu0 %v652
      %v1158 = vpop.f32.mrf.mxu0
      %v1159 = vadd.f32 %v1090, %v1158
      %v1160 = vpop.f32.mrf.mxu0
      %v1161 = vadd.f32 %v1092, %v1160
      %1162 = vmatmul.bf16.gmra.mxu0 %v664
      %v1163 = vpop.f32.mrf.mxu0
      %v1164 = vadd.f32 %v1095, %v1163
      %v1165 = vpop.f32.mrf.mxu0
      %v1166 = vadd.f32 %v1097, %v1165
      %1167 = vmatmul.bf16.gmra.mxu0 %v676
      %v1168 = vpop.f32.mrf.mxu0
      %v1169 = vadd.f32 %v1100, %v1168
      %v1170 = vpop.f32.mrf.mxu0
      %v1171 = vadd.f32 %v1102, %v1170
      %1172 = vmatmul.bf16.gmra.mxu0 %v688
      %v1173 = vpop.f32.mrf.mxu0
      %v1174 = vadd.f32 %v1105, %v1173
      %v1175 = vpop.f32.mrf.mxu0
      %v1176 = vadd.f32 %v1107, %v1175
      %1177 = vmatmul.bf16.gmra.mxu0 %v700
      %v1178 = vpop.f32.mrf.mxu0
      %v1179 = vadd.f32 %v1110, %v1178
      %v1180 = vpop.f32.mrf.mxu0
      %v1181 = vadd.f32 %v1112, %v1180
      %1182 = vmatmul.bf16.gmra.mxu0 %v712
      %v1183 = vpop.f32.mrf.mxu0
      %v1184 = vadd.f32 %v1115, %v1183
      %v1185 = vpop.f32.mrf.mxu0
      %v1186 = vadd.f32 %v1117, %v1185
      %1187 = vmatmul.bf16.gmra.mxu0 %v724
      %v1188 = vpop.f32.mrf.mxu0
      %v1189 = vadd.f32 %v1120, %v1188
      %v1190 = vpop.f32.mrf.mxu0
      %v1191 = vadd.f32 %v1122, %v1190
      %1192 = vmatmul.bf16.gmra.mxu0 %v736
      %v1193 = vpop.f32.mrf.mxu0
      %v1194 = vadd.f32 %v1125, %v1193
      %v1195 = vpop.f32.mrf.mxu0
      %v1196 = vadd.f32 %v1127, %v1195
      %1197 = vmatmul.bf16.gmra.mxu0 %v866
      %v1198 = vpop.f32.mrf.mxu0
      %v1199 = vadd.f32 %v1130, %v1198
      %v1200 = vpop.f32.mrf.mxu0
      %v1201 = vadd.f32 %v1132, %v1200
      %1202 = vdwg.mxu0
      %1203 = vmatpush.bf16.msra.mxu0 %v1040
      %1204 = vmatpush.bf16.msra.mxu0 %v1039
      %1205 = vmatpush.bf16.msra.mxu0 %v1038
      %1206 = vmatpush.bf16.msra.mxu0 %v1037
      %1207 = vmatpush.bf16.msra.mxu0 %v1036
      %1208 = vmatpush.bf16.msra.mxu0 %v1035
      %1209 = vmatpush.bf16.msra.mxu0 %v1034
      %1210 = vmatpush.bf16.msra.mxu0 %v1033
      %1211 = vmatmul.bf16.gmra.mxu0 %v755
      %v1212 = vpop.f32.mrf.mxu0
      %v1213 = vadd.f32 %v1144, %v1212
      %v1214 = vpop.f32.mrf.mxu0
      %v1215 = vadd.f32 %v1146, %v1214
      %1216 = vmatmul.bf16.gmra.mxu0 %v758
      %v1217 = vpop.f32.mrf.mxu0
      %v1218 = vadd.f32 %v1149, %v1217
      %v1219 = vpop.f32.mrf.mxu0
      %v1220 = vadd.f32 %v1151, %v1219
      %1221 = vmatmul.bf16.gmra.mxu0 %v761
      %v1222 = vpop.f32.mrf.mxu0
      %v1223 = vadd.f32 %v1154, %v1222
      %v1224 = vpop.f32.mrf.mxu0
      %v1225 = vadd.f32 %v1156, %v1224
      %1226 = vmatmul.bf16.gmra.mxu0 %v764
      %v1227 = vpop.f32.mrf.mxu0
      %v1228 = vadd.f32 %v1159, %v1227
      %v1229 = vpop.f32.mrf.mxu0
      %v1230 = vadd.f32 %v1161, %v1229
      %1231 = vmatmul.bf16.gmra.mxu0 %v767
      %v1232 = vpop.f32.mrf.mxu0
      %v1233 = vadd.f32 %v1164, %v1232
      %v1234 = vpop.f32.mrf.mxu0
      %v1235 = vadd.f32 %v1166, %v1234
      %1236 = vmatmul.bf16.gmra.mxu0 %v770
      %v1237 = vpop.f32.mrf.mxu0
      %v1238 = vadd.f32 %v1169, %v1237
      %v1239 = vpop.f32.mrf.mxu0
      %v1240 = vadd.f32 %v1171, %v1239
      %1241 = vmatmul.bf16.gmra.mxu0 %v773
      %v1242 = vpop.f32.mrf.mxu0
      %v1243 = vadd.f32 %v1174, %v1242
      %v1244 = vpop.f32.mrf.mxu0
      %v1245 = vadd.f32 %v1176, %v1244
      %1246 = vmatmul.bf16.gmra.mxu0 %v776
      %v1247 = vpop.f32.mrf.mxu0
      %v1248 = vadd.f32 %v1179, %v1247
      %v1249 = vpop.f32.mrf.mxu0
      %v1250 = vadd.f32 %v1181, %v1249
      %1251 = vmatmul.bf16.gmra.mxu0 %v779
      %v1252 = vpop.f32.mrf.mxu0
      %v1253 = vadd.f32 %v1184, %v1252
      %v1254 = vpop.f32.mrf.mxu0
      %v1255 = vadd.f32 %v1186, %v1254
      %1256 = vmatmul.bf16.gmra.mxu0 %v782
      %v1257 = vpop.f32.mrf.mxu0
      %v1258 = vadd.f32 %v1189, %v1257
      %v1259 = vpop.f32.mrf.mxu0
      %v1260 = vadd.f32 %v1191, %v1259
      %1261 = vmatmul.bf16.gmra.mxu0 %v785
      %v1262 = vpop.f32.mrf.mxu0
      %v1263 = vadd.f32 %v1194, %v1262
      %v1264 = vpop.f32.mrf.mxu0
      %v1265 = vadd.f32 %v1196, %v1264
      %1266 = vmatmul.bf16.gmra.mxu0 %v870
      %v1267 = vpop.f32.mrf.mxu0
      %v1268 = vadd.f32 %v1199, %v1267
      %v1269 = vpop.f32.mrf.mxu0
      %v1270 = vadd.f32 %v1201, %v1269
      %1271 = vdwg.mxu0
      %v1320 = vunpack.c.l.b16 %v798
      %v1321 = vunpack.c.l.b16 %v799
      %v1322 = vunpack.c.l.b16 %v800
      %v1323 = vunpack.c.l.b16 %v801
      %v1324 = vunpack.c.l.b16 %v802
      %v1325 = vunpack.c.l.b16 %v803
      %v1326 = vunpack.c.l.b16 %v804
      %v1327 = vunpack.c.l.b16 %v805
      %v1328 = vunpack.c.l.b16 %v806
      %v1329 = vunpack.c.l.b16 %v807
      %v1330 = vunpack.c.l.b16 %v808
      %v1331 = vunpack.c.l.b16 %v809
      %v1332 = vunpack.c.l.b16 %v810
      %v1333 = vunpack.c.l.b16 %v811
      %v1334 = vunpack.c.l.b16 %v812
      %v1335 = vunpack.c.l.b16 %v813
      %v1336 = vunpack.c.l.b16 %v814
      %v1337 = vunpack.c.l.b16 %v815
      %v1338 = vunpack.c.l.b16 %v816
      %v1339 = vunpack.c.l.b16 %v817
      %v1340 = vunpack.c.l.b16 %v818
      %v1341 = vunpack.c.l.b16 %v819
      %v1342 = vunpack.c.l.b16 %v820
      %v1343 = vunpack.c.l.b16 %v821
      %v1344 = vunpack.c.l.b16 %v822
      %v1345 = vunpack.c.l.b16 %v823
      %v1346 = vunpack.c.l.b16 %v824
      %v1347 = vunpack.c.l.b16 %v825
      %v1348 = vunpack.c.l.b16 %v826
      %v1349 = vunpack.c.l.b16 %v827
      %v1350 = vunpack.c.l.b16 %v828
      %v1351 = vunpack.c.l.b16 %v829
      %v1352 = vunpack.c.l.b16 %v830
      %v1353 = vunpack.c.l.b16 %v831
      %v1354 = vunpack.c.l.b16 %v832
      %v1355 = vunpack.c.l.b16 %v833
      %v1356 = vunpack.c.l.b16 %v834
      %v1357 = vunpack.c.l.b16 %v835
      %v1358 = vunpack.c.l.b16 %v836
      %v1359 = vunpack.c.l.b16 %v837
      %v1360 = vunpack.c.l.b16 %v838
      %v1361 = vunpack.c.l.b16 %v839
      %v1362 = vunpack.c.l.b16 %v840
      %v1363 = vunpack.c.l.b16 %v841
      %v1364 = vunpack.c.l.b16 %v842
      %v1365 = vunpack.c.l.b16 %v843
      %v1366 = vunpack.c.l.b16 %v844
      %v1367 = vunpack.c.l.b16 %v845
      %v1368 = vpack.c.b16 %v1321, %v1320
      %v1369 = vpack.c.b16 %v1323, %v1322
      %v1370 = vpack.c.b16 %v1325, %v1324
      %v1371 = vpack.c.b16 %v1327, %v1326
      %v1372 = vpack.c.b16 %v1329, %v1328
      %v1373 = vpack.c.b16 %v1331, %v1330
      %v1374 = vpack.c.b16 %v1333, %v1332
      %v1375 = vpack.c.b16 %v1335, %v1334
      %v1376 = vpack.c.b16 %v1337, %v1336
      %v1377 = vpack.c.b16 %v1339, %v1338
      %v1378 = vpack.c.b16 %v1341, %v1340
      %v1379 = vpack.c.b16 %v1343, %v1342
      %v1380 = vpack.c.b16 %v1345, %v1344
      %v1381 = vpack.c.b16 %v1347, %v1346
      %v1382 = vpack.c.b16 %v1349, %v1348
      %v1383 = vpack.c.b16 %v1351, %v1350
      %v1384 = vpack.c.b16 %v1353, %v1352
      %v1385 = vpack.c.b16 %v1355, %v1354
      %v1386 = vpack.c.b16 %v1357, %v1356
      %v1387 = vpack.c.b16 %v1359, %v1358
      %v1388 = vpack.c.b16 %v1361, %v1360
      %v1389 = vpack.c.b16 %v1363, %v1362
      %v1390 = vpack.c.b16 %v1365, %v1364
      %v1391 = vpack.c.b16 %v1367, %v1366
      %1416 = vmatpush.bf16.msra.mxu0 %v1375
      %1417 = vmatpush.bf16.msra.mxu0 %v1374
      %1418 = vmatpush.bf16.msra.mxu0 %v1373
      %1419 = vmatpush.bf16.msra.mxu0 %v1372
      %1420 = vmatpush.bf16.msra.mxu0 %v1371
      %1421 = vmatpush.bf16.msra.mxu0 %v1370
      %1422 = vmatpush.bf16.msra.mxu0 %v1369
      %1423 = vmatpush.bf16.msra.mxu0 %v1368
      %1424 = vmatmul.bf16.gmra.mxu0 %v532
      %v1425 = vpop.f32.mrf.mxu0
      %v1426 = vadd.f32 %v1213, %v1425
      %v1427 = vpop.f32.mrf.mxu0
      %v1428 = vadd.f32 %v1215, %v1427
      %1429 = vmatmul.bf16.gmra.mxu0 %v533
      %v1430 = vpop.f32.mrf.mxu0
      %v1431 = vadd.f32 %v1218, %v1430
      %v1432 = vpop.f32.mrf.mxu0
      %v1433 = vadd.f32 %v1220, %v1432
      %1434 = vmatmul.bf16.gmra.mxu0 %v534
      %v1435 = vpop.f32.mrf.mxu0
      %v1436 = vadd.f32 %v1223, %v1435
      %v1437 = vpop.f32.mrf.mxu0
      %v1438 = vadd.f32 %v1225, %v1437
      %1439 = vmatmul.bf16.gmra.mxu0 %v535
      %v1440 = vpop.f32.mrf.mxu0
      %v1441 = vadd.f32 %v1228, %v1440
      %v1442 = vpop.f32.mrf.mxu0
      %v1443 = vadd.f32 %v1230, %v1442
      %1444 = vmatmul.bf16.gmra.mxu0 %v536
      %v1445 = vpop.f32.mrf.mxu0
      %v1446 = vadd.f32 %v1233, %v1445
      %v1447 = vpop.f32.mrf.mxu0
      %v1448 = vadd.f32 %v1235, %v1447
      %1449 = vmatmul.bf16.gmra.mxu0 %v537
      %v1450 = vpop.f32.mrf.mxu0
      %v1451 = vadd.f32 %v1238, %v1450
      %v1452 = vpop.f32.mrf.mxu0
      %v1453 = vadd.f32 %v1240, %v1452
      %1454 = vmatmul.bf16.gmra.mxu0 %v538
      %v1455 = vpop.f32.mrf.mxu0
      %v1456 = vadd.f32 %v1243, %v1455
      %v1457 = vpop.f32.mrf.mxu0
      %v1458 = vadd.f32 %v1245, %v1457
      %1459 = vmatmul.bf16.gmra.mxu0 %v539
      %v1460 = vpop.f32.mrf.mxu0
      %v1461 = vadd.f32 %v1248, %v1460
      %v1462 = vpop.f32.mrf.mxu0
      %v1463 = vadd.f32 %v1250, %v1462
      %1464 = vmatmul.bf16.gmra.mxu0 %v540
      %v1465 = vpop.f32.mrf.mxu0
      %v1466 = vadd.f32 %v1253, %v1465
      %v1467 = vpop.f32.mrf.mxu0
      %v1468 = vadd.f32 %v1255, %v1467
      %1469 = vmatmul.bf16.gmra.mxu0 %v541
      %v1470 = vpop.f32.mrf.mxu0
      %v1471 = vadd.f32 %v1258, %v1470
      %v1472 = vpop.f32.mrf.mxu0
      %v1473 = vadd.f32 %v1260, %v1472
      %1474 = vmatmul.bf16.gmra.mxu0 %v542
      %v1475 = vpop.f32.mrf.mxu0
      %v1476 = vadd.f32 %v1263, %v1475
      %v1477 = vpop.f32.mrf.mxu0
      %v1478 = vadd.f32 %v1265, %v1477
      %1479 = vmatmul.bf16.gmra.mxu0 %v543
      %v1480 = vpop.f32.mrf.mxu0
      %v1481 = vadd.f32 %v1268, %v1480
      %v1482 = vpop.f32.mrf.mxu0
      %v1483 = vadd.f32 %v1270, %v1482
      %1484 = vdwg.mxu0
      %1485 = vmatpush.bf16.msra.mxu0 %v1383
      %1486 = vmatpush.bf16.msra.mxu0 %v1382
      %1487 = vmatpush.bf16.msra.mxu0 %v1381
      %1488 = vmatpush.bf16.msra.mxu0 %v1380
      %1489 = vmatpush.bf16.msra.mxu0 %v1379
      %1490 = vmatpush.bf16.msra.mxu0 %v1378
      %1491 = vmatpush.bf16.msra.mxu0 %v1377
      %1492 = vmatpush.bf16.msra.mxu0 %v1376
      %1493 = vmatmul.bf16.gmra.mxu0 %v604
      %v1494 = vpop.f32.mrf.mxu0
      %v1495 = vadd.f32 %v1426, %v1494
      %v1496 = vpop.f32.mrf.mxu0
      %v1497 = vadd.f32 %v1428, %v1496
      %1498 = vmatmul.bf16.gmra.mxu0 %v616
      %v1499 = vpop.f32.mrf.mxu0
      %v1500 = vadd.f32 %v1431, %v1499
      %v1501 = vpop.f32.mrf.mxu0
      %v1502 = vadd.f32 %v1433, %v1501
      %1503 = vmatmul.bf16.gmra.mxu0 %v628
      %v1504 = vpop.f32.mrf.mxu0
      %v1505 = vadd.f32 %v1436, %v1504
      %v1506 = vpop.f32.mrf.mxu0
      %v1507 = vadd.f32 %v1438, %v1506
      %1508 = vmatmul.bf16.gmra.mxu0 %v640
      %v1509 = vpop.f32.mrf.mxu0
      %v1510 = vadd.f32 %v1441, %v1509
      %v1511 = vpop.f32.mrf.mxu0
      %v1512 = vadd.f32 %v1443, %v1511
      %1513 = vmatmul.bf16.gmra.mxu0 %v652
      %v1514 = vpop.f32.mrf.mxu0
      %v1515 = vadd.f32 %v1446, %v1514
      %v1516 = vpop.f32.mrf.mxu0
      %v1517 = vadd.f32 %v1448, %v1516
      %1518 = vmatmul.bf16.gmra.mxu0 %v664
      %v1519 = vpop.f32.mrf.mxu0
      %v1520 = vadd.f32 %v1451, %v1519
      %v1521 = vpop.f32.mrf.mxu0
      %v1522 = vadd.f32 %v1453, %v1521
      %1523 = vmatmul.bf16.gmra.mxu0 %v676
      %v1524 = vpop.f32.mrf.mxu0
      %v1525 = vadd.f32 %v1456, %v1524
      %v1526 = vpop.f32.mrf.mxu0
      %v1527 = vadd.f32 %v1458, %v1526
      %1528 = vmatmul.bf16.gmra.mxu0 %v688
      %v1529 = vpop.f32.mrf.mxu0
      %v1530 = vadd.f32 %v1461, %v1529
      %v1531 = vpop.f32.mrf.mxu0
      %v1532 = vadd.f32 %v1463, %v1531
      %1533 = vmatmul.bf16.gmra.mxu0 %v700
      %v1534 = vpop.f32.mrf.mxu0
      %v1535 = vadd.f32 %v1466, %v1534
      %v1536 = vpop.f32.mrf.mxu0
      %v1537 = vadd.f32 %v1468, %v1536
      %1538 = vmatmul.bf16.gmra.mxu0 %v712
      %v1539 = vpop.f32.mrf.mxu0
      %v1540 = vadd.f32 %v1471, %v1539
      %v1541 = vpop.f32.mrf.mxu0
      %v1542 = vadd.f32 %v1473, %v1541
      %1543 = vmatmul.bf16.gmra.mxu0 %v724
      %v1544 = vpop.f32.mrf.mxu0
      %v1545 = vadd.f32 %v1476, %v1544
      %v1546 = vpop.f32.mrf.mxu0
      %v1547 = vadd.f32 %v1478, %v1546
      %1548 = vmatmul.bf16.gmra.mxu0 %v736
      %v1549 = vpop.f32.mrf.mxu0
      %v1550 = vadd.f32 %v1481, %v1549
      %v1551 = vpop.f32.mrf.mxu0
      %v1552 = vadd.f32 %v1483, %v1551
      %1553 = vdwg.mxu0
      %1554 = vmatpush.bf16.msra.mxu0 %v1391
      %1555 = vmatpush.bf16.msra.mxu0 %v1390
      %1556 = vmatpush.bf16.msra.mxu0 %v1389
      %1557 = vmatpush.bf16.msra.mxu0 %v1388
      %1558 = vmatpush.bf16.msra.mxu0 %v1387
      %1559 = vmatpush.bf16.msra.mxu0 %v1386
      %1560 = vmatpush.bf16.msra.mxu0 %v1385
      %1561 = vmatpush.bf16.msra.mxu0 %v1384
      %1562 = vmatmul.bf16.gmra.mxu0 %v752
      %v1563 = vpop.f32.mrf.mxu0
      %v1564 = vadd.f32 %v1495, %v1563
      %v1565 = vpop.f32.mrf.mxu0
      %v1566 = vadd.f32 %v1497, %v1565
      %1567 = vmatmul.bf16.gmra.mxu0 %v755
      %v1568 = vpop.f32.mrf.mxu0
      %v1569 = vadd.f32 %v1500, %v1568
      %v1570 = vpop.f32.mrf.mxu0
      %v1571 = vadd.f32 %v1502, %v1570
      %1572 = vmatmul.bf16.gmra.mxu0 %v758
      %v1573 = vpop.f32.mrf.mxu0
      %v1574 = vadd.f32 %v1505, %v1573
      %v1575 = vpop.f32.mrf.mxu0
      %v1576 = vadd.f32 %v1507, %v1575
      %1577 = vmatmul.bf16.gmra.mxu0 %v761
      %v1578 = vpop.f32.mrf.mxu0
      %v1579 = vadd.f32 %v1510, %v1578
      %v1580 = vpop.f32.mrf.mxu0
      %v1581 = vadd.f32 %v1512, %v1580
      %1582 = vmatmul.bf16.gmra.mxu0 %v764
      %v1583 = vpop.f32.mrf.mxu0
      %v1584 = vadd.f32 %v1515, %v1583
      %v1585 = vpop.f32.mrf.mxu0
      %v1586 = vadd.f32 %v1517, %v1585
      %1587 = vmatmul.bf16.gmra.mxu0 %v767
      %v1588 = vpop.f32.mrf.mxu0
      %v1589 = vadd.f32 %v1520, %v1588
      %v1590 = vpop.f32.mrf.mxu0
      %v1591 = vadd.f32 %v1522, %v1590
      %1592 = vmatmul.bf16.gmra.mxu0 %v770
      %v1593 = vpop.f32.mrf.mxu0
      %v1594 = vadd.f32 %v1525, %v1593
      %v1595 = vpop.f32.mrf.mxu0
      %v1596 = vadd.f32 %v1527, %v1595
      %1597 = vmatmul.bf16.gmra.mxu0 %v773
      %v1598 = vpop.f32.mrf.mxu0
      %v1599 = vadd.f32 %v1530, %v1598
      %v1600 = vpop.f32.mrf.mxu0
      %v1601 = vadd.f32 %v1532, %v1600
      %1602 = vmatmul.bf16.gmra.mxu0 %v776
      %v1603 = vpop.f32.mrf.mxu0
      %v1604 = vadd.f32 %v1535, %v1603
      %v1605 = vpop.f32.mrf.mxu0
      %v1606 = vadd.f32 %v1537, %v1605
      %1607 = vmatmul.bf16.gmra.mxu0 %v779
      %v1608 = vpop.f32.mrf.mxu0
      %v1609 = vadd.f32 %v1540, %v1608
      %v1610 = vpop.f32.mrf.mxu0
      %v1611 = vadd.f32 %v1542, %v1610
      %1612 = vmatmul.bf16.gmra.mxu0 %v782
      %v1613 = vpop.f32.mrf.mxu0
      %v1614 = vadd.f32 %v1545, %v1613
      %v1615 = vpop.f32.mrf.mxu0
      %v1616 = vadd.f32 %v1547, %v1615
      %1617 = vmatmul.bf16.gmra.mxu0 %v785
      %v1618 = vpop.f32.mrf.mxu0
      %v1619 = vadd.f32 %v1550, %v1618
      %v1620 = vpop.f32.mrf.mxu0
      %v1621 = vadd.f32 %v1552, %v1620
      %1622 = vdwg.mxu0
      %v1625 = vunpack.c.l.b16 %v480
      %v1626 = vunpack.c.l.b16 %v481
      %v1627 = vpack.c.b16 %v1626, %v1625
      %v1630 = vunpack.c.l.b16 %v482
      %v1631 = vpack.c.b16 %v1630, %v1630
      %v1633 = vshrl.u32 %v1627, 16
      %v1635 = vshll.u32 %v1627, 16
      %v1637 = vrot.slane %v1635, 1
      %v1638 = vor.u32 %v1633, %v1637
      %v1640 = vshll.u32 %v1631, 16
      %v1642 = vrot.slane %v1640, 1
      %v1643 = vsel %vm592, %v1638, %v1642
      %v1645 = vrot.slane %v1627, 1
      %v1646 = vrot.slane %v1631, 1
      %v1647 = vsel %vm749, %v1645, %v1646
      %s1649 = scalar_lea.vmem %s1, 384
      %v1650 = vld [vmem:[%s1649] sm:$0xf]
      %v1651 = vld [vmem:[%s1649 + $0x4] sm:$0xf]
      %v1652 = vld [vmem:[%s1649 + $0x8] sm:$0xf]
      %v1653 = vld [vmem:[%s1649 + $0xc] sm:$0xf]
      %v1654 = vld [vmem:[%s1649 + $0x10] sm:$0xf]
      %v1655 = vld [vmem:[%s1649 + $0x14] sm:$0xf]
      %v1656 = vld [vmem:[%s1649 + $0x18] sm:$0xf]
      %v1657 = vld [vmem:[%s1649 + $0x1c] sm:$0xf]
      %v1658 = vld [vmem:[%s1649 + $0x20] sm:$0xf]
      %v1659 = vld [vmem:[%s1649 + $0x24] sm:$0xf]
      %v1660 = vld [vmem:[%s1649 + $0x28] sm:$0xf]
      %v1661 = vld [vmem:[%s1649 + $0x2c] sm:$0xf]
      %v1662 = vld [vmem:[%s1649 + $0x30] sm:$0xf]
      %v1663 = vld [vmem:[%s1649 + $0x34] sm:$0xf]
      %v1664 = vld [vmem:[%s1649 + $0x38] sm:$0xf]
      %v1665 = vld [vmem:[%s1649 + $0x3c] sm:$0xf]
      %v1666 = vld [vmem:[%s1649 + $0x40] sm:$0xf]
      %v1667 = vld [vmem:[%s1649 + $0x44] sm:$0xf]
      %v1668 = vld [vmem:[%s1649 + $0x48] sm:$0xf]
      %v1669 = vld [vmem:[%s1649 + $0x4c] sm:$0xf]
      %v1670 = vld [vmem:[%s1649 + $0x50] sm:$0xf]
      %v1671 = vld [vmem:[%s1649 + $0x54] sm:$0xf]
      %v1672 = vld [vmem:[%s1649 + $0x58] sm:$0xf]
      %v1673 = vld [vmem:[%s1649 + $0x5c] sm:$0xf]
      %v1674 = vld [vmem:[%s1649 + $0x60] sm:$0xf]
      %v1675 = vld [vmem:[%s1649 + $0x64] sm:$0xf]
      %v1676 = vld [vmem:[%s1649 + $0x68] sm:$0xf]
      %v1677 = vld [vmem:[%s1649 + $0x6c] sm:$0xf]
      %v1678 = vld [vmem:[%s1649 + $0x70] sm:$0xf]
      %v1679 = vld [vmem:[%s1649 + $0x74] sm:$0xf]
      %v1680 = vld [vmem:[%s1649 + $0x78] sm:$0xf]
      %v1681 = vld [vmem:[%s1649 + $0x7c] sm:$0xf]
      %v1682 = vld [vmem:[%s1649 + $0x80] sm:$0xf]
      %v1683 = vld [vmem:[%s1649 + $0x84] sm:$0xf]
      %v1684 = vld [vmem:[%s1649 + $0x88] sm:$0xf]
      %v1685 = vld [vmem:[%s1649 + $0x8c] sm:$0xf]
      %v1686 = vld [vmem:[%s1649 + $0x90] sm:$0xf]
      %v1687 = vld [vmem:[%s1649 + $0x94] sm:$0xf]
      %v1688 = vld [vmem:[%s1649 + $0x98] sm:$0xf]
      %v1689 = vld [vmem:[%s1649 + $0x9c] sm:$0xf]
      %v1690 = vld [vmem:[%s1649 + $0xa0] sm:$0xf]
      %v1691 = vld [vmem:[%s1649 + $0xa4] sm:$0xf]
      %v1692 = vld [vmem:[%s1649 + $0xa8] sm:$0xf]
      %v1693 = vld [vmem:[%s1649 + $0xac] sm:$0xf]
      %v1694 = vld [vmem:[%s1649 + $0xb0] sm:$0xf]
      %v1695 = vld [vmem:[%s1649 + $0xb4] sm:$0xf]
      %v1696 = vld [vmem:[%s1649 + $0xb8] sm:$0xf]
      %v1697 = vld [vmem:[%s1649 + $0xbc] sm:$0xf]
      %v1746 = vunpack.c.l.b16 %v1650
      %v1747 = vunpack.c.l.b16 %v1651
      %v1748 = vunpack.c.l.b16 %v1652
      %v1749 = vunpack.c.l.b16 %v1653
      %v1750 = vunpack.c.l.b16 %v1654
      %v1751 = vunpack.c.l.b16 %v1655
      %v1752 = vunpack.c.l.b16 %v1656
      %v1753 = vunpack.c.l.b16 %v1657
      %v1754 = vunpack.c.l.b16 %v1658
      %v1755 = vunpack.c.l.b16 %v1659
      %v1756 = vunpack.c.l.b16 %v1660
      %v1757 = vunpack.c.l.b16 %v1661
      %v1758 = vunpack.c.l.b16 %v1662
      %v1759 = vunpack.c.l.b16 %v1663
      %v1760 = vunpack.c.l.b16 %v1664
      %v1761 = vunpack.c.l.b16 %v1665
      %v1762 = vunpack.c.l.b16 %v1666
      %v1763 = vunpack.c.l.b16 %v1667
      %v1764 = vunpack.c.l.b16 %v1668
      %v1765 = vunpack.c.l.b16 %v1669
      %v1766 = vunpack.c.l.b16 %v1670
      %v1767 = vunpack.c.l.b16 %v1671
      %v1768 = vunpack.c.l.b16 %v1672
      %v1769 = vunpack.c.l.b16 %v1673
      %v1770 = vunpack.c.l.b16 %v1674
      %v1771 = vunpack.c.l.b16 %v1675
      %v1772 = vunpack.c.l.b16 %v1676
      %v1773 = vunpack.c.l.b16 %v1677
      %v1774 = vunpack.c.l.b16 %v1678
      %v1775 = vunpack.c.l.b16 %v1679
      %v1776 = vunpack.c.l.b16 %v1680
      %v1777 = vunpack.c.l.b16 %v1681
      %v1778 = vunpack.c.l.b16 %v1682
      %v1779 = vunpack.c.l.b16 %v1683
      %v1780 = vunpack.c.l.b16 %v1684
      %v1781 = vunpack.c.l.b16 %v1685
      %v1782 = vunpack.c.l.b16 %v1686
      %v1783 = vunpack.c.l.b16 %v1687
      %v1784 = vunpack.c.l.b16 %v1688
      %v1785 = vunpack.c.l.b16 %v1689
      %v1786 = vunpack.c.l.b16 %v1690
      %v1787 = vunpack.c.l.b16 %v1691
      %v1788 = vunpack.c.l.b16 %v1692
      %v1789 = vunpack.c.l.b16 %v1693
      %v1790 = vunpack.c.l.b16 %v1694
      %v1791 = vunpack.c.l.b16 %v1695
      %v1792 = vunpack.c.l.b16 %v1696
      %v1793 = vunpack.c.l.b16 %v1697
      %v1794 = vpack.c.b16 %v1747, %v1746
      %v1795 = vpack.c.b16 %v1749, %v1748
      %v1796 = vpack.c.b16 %v1751, %v1750
      %v1797 = vpack.c.b16 %v1753, %v1752
      %v1798 = vpack.c.b16 %v1755, %v1754
      %v1799 = vpack.c.b16 %v1757, %v1756
      %v1800 = vpack.c.b16 %v1759, %v1758
      %v1801 = vpack.c.b16 %v1761, %v1760
      %v1802 = vpack.c.b16 %v1763, %v1762
      %v1803 = vpack.c.b16 %v1765, %v1764
      %v1804 = vpack.c.b16 %v1767, %v1766
      %v1805 = vpack.c.b16 %v1769, %v1768
      %v1806 = vpack.c.b16 %v1771, %v1770
      %v1807 = vpack.c.b16 %v1773, %v1772
      %v1808 = vpack.c.b16 %v1775, %v1774
      %v1809 = vpack.c.b16 %v1777, %v1776
      %v1810 = vpack.c.b16 %v1779, %v1778
      %v1811 = vpack.c.b16 %v1781, %v1780
      %v1812 = vpack.c.b16 %v1783, %v1782
      %v1813 = vpack.c.b16 %v1785, %v1784
      %v1814 = vpack.c.b16 %v1787, %v1786
      %v1815 = vpack.c.b16 %v1789, %v1788
      %v1816 = vpack.c.b16 %v1791, %v1790
      %v1817 = vpack.c.b16 %v1793, %v1792
      %1842 = vmatpush.bf16.msra.mxu0 %v1801
      %1843 = vmatpush.bf16.msra.mxu0 %v1800
      %1844 = vmatpush.bf16.msra.mxu0 %v1799
      %1845 = vmatpush.bf16.msra.mxu0 %v1798
      %1846 = vmatpush.bf16.msra.mxu0 %v1797
      %1847 = vmatpush.bf16.msra.mxu0 %v1796
      %1848 = vmatpush.bf16.msra.mxu0 %v1795
      %1849 = vmatpush.bf16.msra.mxu0 %v1794
      %1850 = vmatmul.bf16.gmra.mxu0 %v534
      %v1851 = vpop.f32.mrf.mxu0
      %v1852 = vadd.f32 0.0, %v1851
      %v1853 = vpop.f32.mrf.mxu0
      %v1854 = vadd.f32 0.0, %v1853
      %1855 = vmatmul.bf16.gmra.mxu0 %v535
      %v1856 = vpop.f32.mrf.mxu0
      %v1857 = vadd.f32 0.0, %v1856
      %v1858 = vpop.f32.mrf.mxu0
      %v1859 = vadd.f32 0.0, %v1858
      %1860 = vmatmul.bf16.gmra.mxu0 %v536
      %v1861 = vpop.f32.mrf.mxu0
      %v1862 = vadd.f32 0.0, %v1861
      %v1863 = vpop.f32.mrf.mxu0
      %v1864 = vadd.f32 0.0, %v1863
      %1865 = vmatmul.bf16.gmra.mxu0 %v537
      %v1866 = vpop.f32.mrf.mxu0
      %v1867 = vadd.f32 0.0, %v1866
      %v1868 = vpop.f32.mrf.mxu0
      %v1869 = vadd.f32 0.0, %v1868
      %1870 = vmatmul.bf16.gmra.mxu0 %v538
      %v1871 = vpop.f32.mrf.mxu0
      %v1872 = vadd.f32 0.0, %v1871
      %v1873 = vpop.f32.mrf.mxu0
      %v1874 = vadd.f32 0.0, %v1873
      %1875 = vmatmul.bf16.gmra.mxu0 %v539
      %v1876 = vpop.f32.mrf.mxu0
      %v1877 = vadd.f32 0.0, %v1876
      %v1878 = vpop.f32.mrf.mxu0
      %v1879 = vadd.f32 0.0, %v1878
      %1880 = vmatmul.bf16.gmra.mxu0 %v540
      %v1881 = vpop.f32.mrf.mxu0
      %v1882 = vadd.f32 0.0, %v1881
      %v1883 = vpop.f32.mrf.mxu0
      %v1884 = vadd.f32 0.0, %v1883
      %1885 = vmatmul.bf16.gmra.mxu0 %v541
      %v1886 = vpop.f32.mrf.mxu0
      %v1887 = vadd.f32 0.0, %v1886
      %v1888 = vpop.f32.mrf.mxu0
      %v1889 = vadd.f32 0.0, %v1888
      %1890 = vmatmul.bf16.gmra.mxu0 %v542
      %v1891 = vpop.f32.mrf.mxu0
      %v1892 = vadd.f32 0.0, %v1891
      %v1893 = vpop.f32.mrf.mxu0
      %v1894 = vadd.f32 0.0, %v1893
      %1895 = vmatmul.bf16.gmra.mxu0 %v543
      %v1896 = vpop.f32.mrf.mxu0
      %v1897 = vadd.f32 0.0, %v1896
      %v1898 = vpop.f32.mrf.mxu0
      %v1899 = vadd.f32 0.0, %v1898
      %1900 = vmatmul.bf16.gmra.mxu0 %v850
      %v1901 = vpop.f32.mrf.mxu0
      %v1902 = vadd.f32 0.0, %v1901
      %v1903 = vpop.f32.mrf.mxu0
      %v1904 = vadd.f32 0.0, %v1903
      %1905 = vmatmul.bf16.gmra.mxu0 %v1627
      %v1906 = vpop.f32.mrf.mxu0
      %v1907 = vadd.f32 0.0, %v1906
      %v1908 = vpop.f32.mrf.mxu0
      %v1909 = vadd.f32 0.0, %v1908
      %1910 = vdwg.mxu0
      %1911 = vmatpush.bf16.msra.mxu0 %v1809
      %1912 = vmatpush.bf16.msra.mxu0 %v1808
      %1913 = vmatpush.bf16.msra.mxu0 %v1807
      %1914 = vmatpush.bf16.msra.mxu0 %v1806
      %1915 = vmatpush.bf16.msra.mxu0 %v1805
      %1916 = vmatpush.bf16.msra.mxu0 %v1804
      %1917 = vmatpush.bf16.msra.mxu0 %v1803
      %1918 = vmatpush.bf16.msra.mxu0 %v1802
      %1919 = vmatmul.bf16.gmra.mxu0 %v628
      %v1920 = vpop.f32.mrf.mxu0
      %v1921 = vadd.f32 %v1852, %v1920
      %v1922 = vpop.f32.mrf.mxu0
      %v1923 = vadd.f32 %v1854, %v1922
      %1924 = vmatmul.bf16.gmra.mxu0 %v640
      %v1925 = vpop.f32.mrf.mxu0
      %v1926 = vadd.f32 %v1857, %v1925
      %v1927 = vpop.f32.mrf.mxu0
      %v1928 = vadd.f32 %v1859, %v1927
      %1929 = vmatmul.bf16.gmra.mxu0 %v652
      %v1930 = vpop.f32.mrf.mxu0
      %v1931 = vadd.f32 %v1862, %v1930
      %v1932 = vpop.f32.mrf.mxu0
      %v1933 = vadd.f32 %v1864, %v1932
      %1934 = vmatmul.bf16.gmra.mxu0 %v664
      %v1935 = vpop.f32.mrf.mxu0
      %v1936 = vadd.f32 %v1867, %v1935
      %v1937 = vpop.f32.mrf.mxu0
      %v1938 = vadd.f32 %v1869, %v1937
      %1939 = vmatmul.bf16.gmra.mxu0 %v676
      %v1940 = vpop.f32.mrf.mxu0
      %v1941 = vadd.f32 %v1872, %v1940
      %v1942 = vpop.f32.mrf.mxu0
      %v1943 = vadd.f32 %v1874, %v1942
      %1944 = vmatmul.bf16.gmra.mxu0 %v688
      %v1945 = vpop.f32.mrf.mxu0
      %v1946 = vadd.f32 %v1877, %v1945
      %v1947 = vpop.f32.mrf.mxu0
      %v1948 = vadd.f32 %v1879, %v1947
      %1949 = vmatmul.bf16.gmra.mxu0 %v700
      %v1950 = vpop.f32.mrf.mxu0
      %v1951 = vadd.f32 %v1882, %v1950
      %v1952 = vpop.f32.mrf.mxu0
      %v1953 = vadd.f32 %v1884, %v1952
      %1954 = vmatmul.bf16.gmra.mxu0 %v712
      %v1955 = vpop.f32.mrf.mxu0
      %v1956 = vadd.f32 %v1887, %v1955
      %v1957 = vpop.f32.mrf.mxu0
      %v1958 = vadd.f32 %v1889, %v1957
      %1959 = vmatmul.bf16.gmra.mxu0 %v724
      %v1960 = vpop.f32.mrf.mxu0
      %v1961 = vadd.f32 %v1892, %v1960
      %v1962 = vpop.f32.mrf.mxu0
      %v1963 = vadd.f32 %v1894, %v1962
      %1964 = vmatmul.bf16.gmra.mxu0 %v736
      %v1965 = vpop.f32.mrf.mxu0
      %v1966 = vadd.f32 %v1897, %v1965
      %v1967 = vpop.f32.mrf.mxu0
      %v1968 = vadd.f32 %v1899, %v1967
      %1969 = vmatmul.bf16.gmra.mxu0 %v866
      %v1970 = vpop.f32.mrf.mxu0
      %v1971 = vadd.f32 %v1902, %v1970
      %v1972 = vpop.f32.mrf.mxu0
      %v1973 = vadd.f32 %v1904, %v1972
      %1974 = vmatmul.bf16.gmra.mxu0 %v1643
      %v1975 = vpop.f32.mrf.mxu0
      %v1976 = vadd.f32 %v1907, %v1975
      %v1977 = vpop.f32.mrf.mxu0
      %v1978 = vadd.f32 %v1909, %v1977
      %1979 = vdwg.mxu0
      %1980 = vmatpush.bf16.msra.mxu0 %v1817
      %1981 = vmatpush.bf16.msra.mxu0 %v1816
      %1982 = vmatpush.bf16.msra.mxu0 %v1815
      %1983 = vmatpush.bf16.msra.mxu0 %v1814
      %1984 = vmatpush.bf16.msra.mxu0 %v1813
      %1985 = vmatpush.bf16.msra.mxu0 %v1812
      %1986 = vmatpush.bf16.msra.mxu0 %v1811
      %1987 = vmatpush.bf16.msra.mxu0 %v1810
      %1988 = vmatmul.bf16.gmra.mxu0 %v758
      %v1989 = vpop.f32.mrf.mxu0
      %v1990 = vadd.f32 %v1921, %v1989
      %v1991 = vpop.f32.mrf.mxu0
      %v1992 = vadd.f32 %v1923, %v1991
      %1993 = vmatmul.bf16.gmra.mxu0 %v761
      %v1994 = vpop.f32.mrf.mxu0
      %v1995 = vadd.f32 %v1926, %v1994
      %v1996 = vpop.f32.mrf.mxu0
      %v1997 = vadd.f32 %v1928, %v1996
      %1998 = vmatmul.bf16.gmra.mxu0 %v764
      %v1999 = vpop.f32.mrf.mxu0
      %v2000 = vadd.f32 %v1931, %v1999
      %v2001 = vpop.f32.mrf.mxu0
      %v2002 = vadd.f32 %v1933, %v2001
      %2003 = vmatmul.bf16.gmra.mxu0 %v767
      %v2004 = vpop.f32.mrf.mxu0
      %v2005 = vadd.f32 %v1936, %v2004
      %v2006 = vpop.f32.mrf.mxu0
      %v2007 = vadd.f32 %v1938, %v2006
      %2008 = vmatmul.bf16.gmra.mxu0 %v770
      %v2009 = vpop.f32.mrf.mxu0
      %v2010 = vadd.f32 %v1941, %v2009
      %v2011 = vpop.f32.mrf.mxu0
      %v2012 = vadd.f32 %v1943, %v2011
      %2013 = vmatmul.bf16.gmra.mxu0 %v773
      %v2014 = vpop.f32.mrf.mxu0
      %v2015 = vadd.f32 %v1946, %v2014
      %v2016 = vpop.f32.mrf.mxu0
      %v2017 = vadd.f32 %v1948, %v2016
      %2018 = vmatmul.bf16.gmra.mxu0 %v776
      %v2019 = vpop.f32.mrf.mxu0
      %v2020 = vadd.f32 %v1951, %v2019
      %v2021 = vpop.f32.mrf.mxu0
      %v2022 = vadd.f32 %v1953, %v2021
      %2023 = vmatmul.bf16.gmra.mxu0 %v779
      %v2024 = vpop.f32.mrf.mxu0
      %v2025 = vadd.f32 %v1956, %v2024
      %v2026 = vpop.f32.mrf.mxu0
      %v2027 = vadd.f32 %v1958, %v2026
      %2028 = vmatmul.bf16.gmra.mxu0 %v782
      %v2029 = vpop.f32.mrf.mxu0
      %v2030 = vadd.f32 %v1961, %v2029
      %v2031 = vpop.f32.mrf.mxu0
      %v2032 = vadd.f32 %v1963, %v2031
      %2033 = vmatmul.bf16.gmra.mxu0 %v785
      %v2034 = vpop.f32.mrf.mxu0
      %v2035 = vadd.f32 %v1966, %v2034
      %v2036 = vpop.f32.mrf.mxu0
      %v2037 = vadd.f32 %v1968, %v2036
      %2038 = vmatmul.bf16.gmra.mxu0 %v870
      %v2039 = vpop.f32.mrf.mxu0
      %v2040 = vadd.f32 %v1971, %v2039
      %v2041 = vpop.f32.mrf.mxu0
      %v2042 = vadd.f32 %v1973, %v2041
      %2043 = vmatmul.bf16.gmra.mxu0 %v1647
      %v2044 = vpop.f32.mrf.mxu0
      %v2045 = vadd.f32 %v1976, %v2044
      %v2046 = vpop.f32.mrf.mxu0
      %v2047 = vadd.f32 %v1978, %v2046
      %2048 = vdwg.mxu0
      %v2049 = vadd.f32 %v1564, %v1990
      %v2050 = vadd.f32 %v1566, %v1992
      %v2051 = vadd.f32 %v1569, %v1995
      %v2052 = vadd.f32 %v1571, %v1997
      %v2053 = vadd.f32 %v1574, %v2000
      %v2054 = vadd.f32 %v1576, %v2002
      %v2055 = vadd.f32 %v1579, %v2005
      %v2056 = vadd.f32 %v1581, %v2007
      %v2057 = vadd.f32 %v1584, %v2010
      %v2058 = vadd.f32 %v1586, %v2012
      %v2059 = vadd.f32 %v1589, %v2015
      %v2060 = vadd.f32 %v1591, %v2017
      %v2061 = vadd.f32 %v1594, %v2020
      %v2062 = vadd.f32 %v1596, %v2022
      %v2063 = vadd.f32 %v1599, %v2025
      %v2064 = vadd.f32 %v1601, %v2027
      %v2065 = vadd.f32 %v1604, %v2030
      %v2066 = vadd.f32 %v1606, %v2032
      %v2067 = vadd.f32 %v1609, %v2035
      %v2068 = vadd.f32 %v1611, %v2037
      %v2069 = vadd.f32 %v1614, %v2040
      %v2070 = vadd.f32 %v1616, %v2042
      %v2071 = vadd.f32 %v1619, %v2045
      %v2072 = vadd.f32 %v1621, %v2047
      %v2074 = vperm.slane %v483, 0
      %v2076 = vadd.f32 %v2049, %v2074
      %v2077 = vadd.f32 %v2050, %v2074
      %v2078 = vadd.f32 %v2051, %v2074
      %v2079 = vadd.f32 %v2052, %v2074
      %v2080 = vadd.f32 %v2053, %v2074
      %v2081 = vadd.f32 %v2054, %v2074
      %v2082 = vadd.f32 %v2055, %v2074
      %v2083 = vadd.f32 %v2056, %v2074
      %v2084 = vadd.f32 %v2057, %v2074
      %v2085 = vadd.f32 %v2058, %v2074
      %v2086 = vadd.f32 %v2059, %v2074
      %v2087 = vadd.f32 %v2060, %v2074
      %v2088 = vadd.f32 %v2061, %v2074
      %v2089 = vadd.f32 %v2062, %v2074
      %v2090 = vadd.f32 %v2063, %v2074
      %v2091 = vadd.f32 %v2064, %v2074
      %v2092 = vadd.f32 %v2065, %v2074
      %v2093 = vadd.f32 %v2066, %v2074
      %v2094 = vadd.f32 %v2067, %v2074
      %v2095 = vadd.f32 %v2068, %v2074
      %v2096 = vadd.f32 %v2069, %v2074
      %v2097 = vadd.f32 %v2070, %v2074
      %v2098 = vadd.f32 %v2071, %v2074
      %v2099 = vadd.f32 %v2072, %v2074
      %v2100 = vmax.f32 %v2076, 0.0
      %v2101 = vmax.f32 %v2077, 0.0
      %v2102 = vmax.f32 %v2078, 0.0
      %v2103 = vmax.f32 %v2079, 0.0
      %v2104 = vmax.f32 %v2080, 0.0
      %v2105 = vmax.f32 %v2081, 0.0
      %v2106 = vmax.f32 %v2082, 0.0
      %v2107 = vmax.f32 %v2083, 0.0
      %v2108 = vmax.f32 %v2084, 0.0
      %v2109 = vmax.f32 %v2085, 0.0
      %v2110 = vmax.f32 %v2086, 0.0
      %v2111 = vmax.f32 %v2087, 0.0
      %v2112 = vmax.f32 %v2088, 0.0
      %v2113 = vmax.f32 %v2089, 0.0
      %v2114 = vmax.f32 %v2090, 0.0
      %v2115 = vmax.f32 %v2091, 0.0
      %v2116 = vmax.f32 %v2092, 0.0
      %v2117 = vmax.f32 %v2093, 0.0
      %v2118 = vmax.f32 %v2094, 0.0
      %v2119 = vmax.f32 %v2095, 0.0
      %v2120 = vmax.f32 %v2096, 0.0
      %v2121 = vmax.f32 %v2097, 0.0
      %v2122 = vmax.f32 %v2098, 0.0
      %v2123 = vmax.f32 %v2099, 0.0
      %2124 = vst [vmem:[#allocation2 + $0x8] sm:$0xff] %v2100
      %2125 = vst [vmem:[#allocation2 + $0x10] sm:$0xff] %v2101
      %2126 = vst [vmem:[#allocation2 + $0x28] sm:$0xff] %v2102
      %2127 = vst [vmem:[#allocation2 + $0x30] sm:$0xff] %v2103
      %2128 = vst [vmem:[#allocation2 + $0x48] sm:$0xff] %v2104
      %2129 = vst [vmem:[#allocation2 + $0x50] sm:$0xff] %v2105
      %2130 = vst [vmem:[#allocation2 + $0x68] sm:$0xff] %v2106
      %2131 = vst [vmem:[#allocation2 + $0x70] sm:$0xff] %v2107
      %2132 = vst [vmem:[#allocation2 + $0x88] sm:$0xff] %v2108
      %2133 = vst [vmem:[#allocation2 + $0x90] sm:$0xff] %v2109
      %2134 = vst [vmem:[#allocation2 + $0xa8] sm:$0xff] %v2110
      %2135 = vst [vmem:[#allocation2 + $0xb0] sm:$0xff] %v2111
      %2136 = vst [vmem:[#allocation2 + $0xc8] sm:$0xff] %v2112
      %2137 = vst [vmem:[#allocation2 + $0xd0] sm:$0xff] %v2113
      %2138 = vst [vmem:[#allocation2 + $0xe8] sm:$0xff] %v2114
      %2139 = vst [vmem:[#allocation2 + $0xf0] sm:$0xff] %v2115
      %2140 = vst [vmem:[#allocation2 + $0x108] sm:$0xff] %v2116
      %2141 = vst [vmem:[#allocation2 + $0x110] sm:$0xff] %v2117
      %2142 = vst [vmem:[#allocation2 + $0x128] sm:$0xff] %v2118
      %2143 = vst [vmem:[#allocation2 + $0x130] sm:$0xff] %v2119
      %2144 = vst [vmem:[#allocation2 + $0x148] sm:$0xff] %v2120
      %2145 = vst [vmem:[#allocation2 + $0x150] sm:$0xff] %v2121
      %2146 = vst [vmem:[#allocation2 + $0x168] sm:$0xff] %v2122
      %2147 = vst [vmem:[#allocation2 + $0x170] sm:$0xff] %v2123
      %p2148 = scmp.eq.s32.totalorder %s25, 0
      // Predicated region
      $region49: #{resnet_bottleneck_forward.2} parent=47 // pred_check
        %p2149 = pneg %p2148
      $region50: #{resnet_bottleneck_forward.2} parent=47 // pred_check_branch
        %2151 = sbr.rel (%p2149) target = $region52
      $region51: #{resnet_bottleneck_forward.2} parent=47 // pred_region
        %2152 = vst [vmem:[#allocation2] sm:$0xff] 0.0
        %2153 = vst [vmem:[#allocation2 + $0x8] sm:$0xff] 0.0
        %2154 = vst [vmem:[#allocation2 + $0x10] sm:$0xff] 0.0
        %2155 = vst [vmem:[#allocation2 + $0x18] sm:$0xff] 0.0
        %2156 = vst [vmem:[#allocation2 + $0x20] sm:$0xff] 0.0
        %2157 = vst [vmem:[#allocation2 + $0x28] sm:$0xff] 0.0
        %2158 = vst [vmem:[#allocation2 + $0x30] sm:$0xff] 0.0
        %2159 = vst [vmem:[#allocation2 + $0x38] sm:$0xff] 0.0
      $region52: #{resnet_bottleneck_forward.2} parent=47 // pred_fallthru
        _
      %p2160 = scmp.eq.s32.totalorder %s25, 1
      // Predicated region
      $region53: #{resnet_bottleneck_forward.2} parent=47 // pred_check
        %p2161 = pneg %p2160
      $region54: #{resnet_bottleneck_forward.2} parent=47 // pred_check_branch
        %2163 = sbr.rel (%p2161) target = $region56
      $region55: #{resnet_bottleneck_forward.2} parent=47 // pred_region
        %s2164 = scalar_lea.vmem [#allocation2], 320
        %2165 = vst [vmem:[%s2164] sm:$0xff] 0.0
        %2166 = vst [vmem:[%s2164 + $0x8] sm:$0xff] 0.0
        %2167 = vst [vmem:[%s2164 + $0x10] sm:$0xff] 0.0
        %2168 = vst [vmem:[%s2164 + $0x18] sm:$0xff] 0.0
        %2169 = vst [vmem:[%s2164 + $0x20] sm:$0xff] 0.0
        %2170 = vst [vmem:[%s2164 + $0x28] sm:$0xff] 0.0
        %2171 = vst [vmem:[%s2164 + $0x30] sm:$0xff] 0.0
        %2172 = vst [vmem:[%s2164 + $0x38] sm:$0xff] 0.0
      $region56: #{resnet_bottleneck_forward.2} parent=47 // pred_fallthru
        _
      %v2173 = vld [vmem:[#allocation2 + $0x7] sm:$0xff]
      %v2174 = vld [vmem:[#allocation2 + $0xf] sm:$0xff]
      %v2175 = vld [vmem:[#allocation2 + $0x17] sm:$0x3]
      %v2176 = vld [vmem:[#allocation2 + $0x27] sm:$0xff]
      %v2177 = vld [vmem:[#allocation2 + $0x2f] sm:$0xff]
      %v2178 = vld [vmem:[#allocation2 + $0x37] sm:$0x3]
      %v2179 = vld [vmem:[#allocation2 + $0x47] sm:$0xff]
      %v2180 = vld [vmem:[#allocation2 + $0x4f] sm:$0xff]
      %v2181 = vld [vmem:[#allocation2 + $0x57] sm:$0x3]
      %v2182 = vld [vmem:[#allocation2 + $0x67] sm:$0xff]
      %v2183 = vld [vmem:[#allocation2 + $0x6f] sm:$0xff]
      %v2184 = vld [vmem:[#allocation2 + $0x77] sm:$0x3]
      %v2185 = vld [vmem:[#allocation2 + $0x87] sm:$0xff]
      %v2186 = vld [vmem:[#allocation2 + $0x8f] sm:$0xff]
      %v2187 = vld [vmem:[#allocation2 + $0x97] sm:$0x3]
      %v2188 = vld [vmem:[#allocation2 + $0xa7] sm:$0xff]
      %v2189 = vld [vmem:[#allocation2 + $0xaf] sm:$0xff]
      %v2190 = vld [vmem:[#allocation2 + $0xb7] sm:$0x3]
      %v2191 = vld [vmem:[#allocation2 + $0xc7] sm:$0xff]
      %v2192 = vld [vmem:[#allocation2 + $0xcf] sm:$0xff]
      %v2193 = vld [vmem:[#allocation2 + $0xd7] sm:$0x3]
      %v2194 = vld [vmem:[#allocation2 + $0xe7] sm:$0xff]
      %v2195 = vld [vmem:[#allocation2 + $0xef] sm:$0xff]
      %v2196 = vld [vmem:[#allocation2 + $0xf7] sm:$0x3]
      %v2197 = vld [vmem:[#allocation2 + $0x107] sm:$0xff]
      %v2198 = vld [vmem:[#allocation2 + $0x10f] sm:$0xff]
      %v2199 = vld [vmem:[#allocation2 + $0x117] sm:$0x3]
      %v2200 = vld [vmem:[#allocation2 + $0x127] sm:$0xff]
      %v2201 = vld [vmem:[#allocation2 + $0x12f] sm:$0xff]
      %v2202 = vld [vmem:[#allocation2 + $0x137] sm:$0x3]
      %v2203 = vld [vmem:[#allocation2 + $0x147] sm:$0xff]
      %v2204 = vld [vmem:[#allocation2 + $0x14f] sm:$0xff]
      %v2205 = vld [vmem:[#allocation2 + $0x157] sm:$0x3]
      %v2206 = vld [vmem:[#allocation2 + $0x167] sm:$0xff]
      %v2207 = vld [vmem:[#allocation2 + $0x16f] sm:$0xff]
      %v2208 = vld [vmem:[#allocation2 + $0x177] sm:$0x3]
      %v2209 = vpack.c.bf16 %v2173, %v2173
      %v2210 = vpack.c.bf16 %v2174, %v2174
      %v2211 = vpack.c.bf16 %v2175, %v2175
      %v2212 = vpack.c.bf16 %v2176, %v2176
      %v2213 = vpack.c.bf16 %v2177, %v2177
      %v2214 = vpack.c.bf16 %v2178, %v2178
      %v2215 = vpack.c.bf16 %v2179, %v2179
      %v2216 = vpack.c.bf16 %v2180, %v2180
      %v2217 = vpack.c.bf16 %v2181, %v2181
      %v2218 = vpack.c.bf16 %v2182, %v2182
      %v2219 = vpack.c.bf16 %v2183, %v2183
      %v2220 = vpack.c.bf16 %v2184, %v2184
      %v2221 = vpack.c.bf16 %v2185, %v2185
      %v2222 = vpack.c.bf16 %v2186, %v2186
      %v2223 = vpack.c.bf16 %v2187, %v2187
      %v2224 = vpack.c.bf16 %v2188, %v2188
      %v2225 = vpack.c.bf16 %v2189, %v2189
      %v2226 = vpack.c.bf16 %v2190, %v2190
      %v2227 = vpack.c.bf16 %v2191, %v2191
      %v2228 = vpack.c.bf16 %v2192, %v2192
      %v2229 = vpack.c.bf16 %v2193, %v2193
      %v2230 = vpack.c.bf16 %v2194, %v2194
      %v2231 = vpack.c.bf16 %v2195, %v2195
      %v2232 = vpack.c.bf16 %v2196, %v2196
      %v2233 = vpack.c.bf16 %v2197, %v2197
      %v2234 = vpack.c.bf16 %v2198, %v2198
      %v2235 = vpack.c.bf16 %v2199, %v2199
      %v2236 = vpack.c.bf16 %v2200, %v2200
      %v2237 = vpack.c.bf16 %v2201, %v2201
      %v2238 = vpack.c.bf16 %v2202, %v2202
      %v2239 = vpack.c.bf16 %v2203, %v2203
      %v2240 = vpack.c.bf16 %v2204, %v2204
      %v2241 = vpack.c.bf16 %v2205, %v2205
      %v2242 = vpack.c.bf16 %v2206, %v2206
      %v2243 = vpack.c.bf16 %v2207, %v2207
      %v2244 = vpack.c.bf16 %v2208, %v2208
      %v2245 = vld [vmem:[%s4] sm:$0x1]
      %v2266 = vunpack.c.l.b16 %v2209
      %v2267 = vunpack.c.l.b16 %v2210
      %v2268 = vunpack.c.l.b16 %v2212
      %v2269 = vunpack.c.l.b16 %v2213
      %v2270 = vunpack.c.l.b16 %v2215
      %v2271 = vunpack.c.l.b16 %v2216
      %v2272 = vunpack.c.l.b16 %v2218
      %v2273 = vunpack.c.l.b16 %v2219
      %v2274 = vunpack.c.l.b16 %v2221
      %v2275 = vunpack.c.l.b16 %v2222
      %v2276 = vunpack.c.l.b16 %v2224
      %v2277 = vunpack.c.l.b16 %v2225
      %v2278 = vunpack.c.l.b16 %v2227
      %v2279 = vunpack.c.l.b16 %v2228
      %v2280 = vunpack.c.l.b16 %v2230
      %v2281 = vunpack.c.l.b16 %v2231
      %v2282 = vunpack.c.l.b16 %v2233
      %v2283 = vunpack.c.l.b16 %v2234
      %v2284 = vunpack.c.l.b16 %v2236
      %v2285 = vunpack.c.l.b16 %v2237
      %v2286 = vpack.c.b16 %v2267, %v2266
      %v2287 = vpack.c.b16 %v2269, %v2268
      %v2288 = vpack.c.b16 %v2271, %v2270
      %v2289 = vpack.c.b16 %v2273, %v2272
      %v2290 = vpack.c.b16 %v2275, %v2274
      %v2291 = vpack.c.b16 %v2277, %v2276
      %v2292 = vpack.c.b16 %v2279, %v2278
      %v2293 = vpack.c.b16 %v2281, %v2280
      %v2294 = vpack.c.b16 %v2283, %v2282
      %v2295 = vpack.c.b16 %v2285, %v2284
      %v2316 = vunpack.c.l.b16 %v2211
      %v2317 = vunpack.c.l.b16 %v2214
      %v2318 = vunpack.c.l.b16 %v2217
      %v2319 = vunpack.c.l.b16 %v2220
      %v2320 = vunpack.c.l.b16 %v2223
      %v2321 = vunpack.c.l.b16 %v2226
      %v2322 = vunpack.c.l.b16 %v2229
      %v2323 = vunpack.c.l.b16 %v2232
      %v2324 = vunpack.c.l.b16 %v2235
      %v2325 = vunpack.c.l.b16 %v2238
      %v2326 = vpack.c.b16 %v2316, %v2316
      %v2327 = vpack.c.b16 %v2317, %v2317
      %v2328 = vpack.c.b16 %v2318, %v2318
      %v2329 = vpack.c.b16 %v2319, %v2319
      %v2330 = vpack.c.b16 %v2320, %v2320
      %v2331 = vpack.c.b16 %v2321, %v2321
      %v2332 = vpack.c.b16 %v2322, %v2322
      %v2333 = vpack.c.b16 %v2323, %v2323
      %v2334 = vpack.c.b16 %v2324, %v2324
      %v2335 = vpack.c.b16 %v2325, %v2325
      %v2337 = vshrl.u32 %v2286, 16
      %v2339 = vshll.u32 %v2286, 16
      %v2341 = vrot.slane %v2339, 1
      %v2342 = vor.u32 %v2337, %v2341
      %v2344 = vshll.u32 %v2326, 16
      %v2346 = vrot.slane %v2344, 1
      %v2347 = vsel %vm592, %v2342, %v2346
      %v2349 = vshrl.u32 %v2287, 16
      %v2351 = vshll.u32 %v2287, 16
      %v2353 = vrot.slane %v2351, 1
      %v2354 = vor.u32 %v2349, %v2353
      %v2356 = vshll.u32 %v2327, 16
      %v2358 = vrot.slane %v2356, 1
      %v2359 = vsel %vm592, %v2354, %v2358
      %v2361 = vshrl.u32 %v2288, 16
      %v2363 = vshll.u32 %v2288, 16
      %v2365 = vrot.slane %v2363, 1
      %v2366 = vor.u32 %v2361, %v2365
      %v2368 = vshll.u32 %v2328, 16
      %v2370 = vrot.slane %v2368, 1
      %v2371 = vsel %vm592, %v2366, %v2370
      %v2373 = vshrl.u32 %v2289, 16
      %v2375 = vshll.u32 %v2289, 16
      %v2377 = vrot.slane %v2375, 1
      %v2378 = vor.u32 %v2373, %v2377
      %v2380 = vshll.u32 %v2329, 16
      %v2382 = vrot.slane %v2380, 1
      %v2383 = vsel %vm592, %v2378, %v2382
      %v2385 = vshrl.u32 %v2290, 16
      %v2387 = vshll.u32 %v2290, 16
      %v2389 = vrot.slane %v2387, 1
      %v2390 = vor.u32 %v2385, %v2389
      %v2392 = vshll.u32 %v2330, 16
      %v2394 = vrot.slane %v2392, 1
      %v2395 = vsel %vm592, %v2390, %v2394
      %v2397 = vshrl.u32 %v2291, 16
      %v2399 = vshll.u32 %v2291, 16
      %v2401 = vrot.slane %v2399, 1
      %v2402 = vor.u32 %v2397, %v2401
      %v2404 = vshll.u32 %v2331, 16
      %v2406 = vrot.slane %v2404, 1
      %v2407 = vsel %vm592, %v2402, %v2406
      %v2409 = vshrl.u32 %v2292, 16
      %v2411 = vshll.u32 %v2292, 16
      %v2413 = vrot.slane %v2411, 1
      %v2414 = vor.u32 %v2409, %v2413
      %v2416 = vshll.u32 %v2332, 16
      %v2418 = vrot.slane %v2416, 1
      %v2419 = vsel %vm592, %v2414, %v2418
      %v2421 = vshrl.u32 %v2293, 16
      %v2423 = vshll.u32 %v2293, 16
      %v2425 = vrot.slane %v2423, 1
      %v2426 = vor.u32 %v2421, %v2425
      %v2428 = vshll.u32 %v2333, 16
      %v2430 = vrot.slane %v2428, 1
      %v2431 = vsel %vm592, %v2426, %v2430
      %v2433 = vshrl.u32 %v2294, 16
      %v2435 = vshll.u32 %v2294, 16
      %v2437 = vrot.slane %v2435, 1
      %v2438 = vor.u32 %v2433, %v2437
      %v2440 = vshll.u32 %v2334, 16
      %v2442 = vrot.slane %v2440, 1
      %v2443 = vsel %vm592, %v2438, %v2442
      %v2445 = vshrl.u32 %v2295, 16
      %v2447 = vshll.u32 %v2295, 16
      %v2449 = vrot.slane %v2447, 1
      %v2450 = vor.u32 %v2445, %v2449
      %v2452 = vshll.u32 %v2335, 16
      %v2454 = vrot.slane %v2452, 1
      %v2455 = vsel %vm592, %v2450, %v2454
      %v2466 = vrot.slane %v2286, 1
      %v2467 = vrot.slane %v2326, 1
      %v2468 = vsel %vm749, %v2466, %v2467
      %v2469 = vrot.slane %v2287, 1
      %v2470 = vrot.slane %v2327, 1
      %v2471 = vsel %vm749, %v2469, %v2470
      %v2472 = vrot.slane %v2288, 1
      %v2473 = vrot.slane %v2328, 1
      %v2474 = vsel %vm749, %v2472, %v2473
      %v2475 = vrot.slane %v2289, 1
      %v2476 = vrot.slane %v2329, 1
      %v2477 = vsel %vm749, %v2475, %v2476
      %v2478 = vrot.slane %v2290, 1
      %v2479 = vrot.slane %v2330, 1
      %v2480 = vsel %vm749, %v2478, %v2479
      %v2481 = vrot.slane %v2291, 1
      %v2482 = vrot.slane %v2331, 1
      %v2483 = vsel %vm749, %v2481, %v2482
      %v2484 = vrot.slane %v2292, 1
      %v2485 = vrot.slane %v2332, 1
      %v2486 = vsel %vm749, %v2484, %v2485
      %v2487 = vrot.slane %v2293, 1
      %v2488 = vrot.slane %v2333, 1
      %v2489 = vsel %vm749, %v2487, %v2488
      %v2490 = vrot.slane %v2294, 1
      %v2491 = vrot.slane %v2334, 1
      %v2492 = vsel %vm749, %v2490, %v2491
      %v2493 = vrot.slane %v2295, 1
      %v2494 = vrot.slane %v2335, 1
      %v2495 = vsel %vm749, %v2493, %v2494
      %v2506 = vld [vmem:[%s3] sm:$0xf]
      %v2507 = vld [vmem:[%s3 + $0x4] sm:$0xf]
      %v2508 = vld [vmem:[%s3 + $0x8] sm:$0xf]
      %v2509 = vld [vmem:[%s3 + $0xc] sm:$0xf]
      %v2510 = vld [vmem:[%s3 + $0x10] sm:$0xf]
      %v2511 = vld [vmem:[%s3 + $0x14] sm:$0xf]
      %v2512 = vld [vmem:[%s3 + $0x18] sm:$0xf]
      %v2513 = vld [vmem:[%s3 + $0x1c] sm:$0xf]
      %v2514 = vld [vmem:[%s3 + $0x20] sm:$0xf]
      %v2515 = vld [vmem:[%s3 + $0x24] sm:$0xf]
      %v2516 = vld [vmem:[%s3 + $0x28] sm:$0xf]
      %v2517 = vld [vmem:[%s3 + $0x2c] sm:$0xf]
      %v2518 = vld [vmem:[%s3 + $0x30] sm:$0xf]
      %v2519 = vld [vmem:[%s3 + $0x34] sm:$0xf]
      %v2520 = vld [vmem:[%s3 + $0x38] sm:$0xf]
      %v2521 = vld [vmem:[%s3 + $0x3c] sm:$0xf]
      %v2522 = vld [vmem:[%s3 + $0x40] sm:$0xf]
      %v2523 = vld [vmem:[%s3 + $0x44] sm:$0xf]
      %v2524 = vld [vmem:[%s3 + $0x48] sm:$0xf]
      %v2525 = vld [vmem:[%s3 + $0x4c] sm:$0xf]
      %v2526 = vld [vmem:[%s3 + $0x50] sm:$0xf]
      %v2527 = vld [vmem:[%s3 + $0x54] sm:$0xf]
      %v2528 = vld [vmem:[%s3 + $0x58] sm:$0xf]
      %v2529 = vld [vmem:[%s3 + $0x5c] sm:$0xf]
      %v2530 = vld [vmem:[%s3 + $0x60] sm:$0xf]
      %v2531 = vld [vmem:[%s3 + $0x64] sm:$0xf]
      %v2532 = vld [vmem:[%s3 + $0x68] sm:$0xf]
      %v2533 = vld [vmem:[%s3 + $0x6c] sm:$0xf]
      %v2534 = vld [vmem:[%s3 + $0x70] sm:$0xf]
      %v2535 = vld [vmem:[%s3 + $0x74] sm:$0xf]
      %v2536 = vld [vmem:[%s3 + $0x78] sm:$0xf]
      %v2537 = vld [vmem:[%s3 + $0x7c] sm:$0xf]
      %v2538 = vld [vmem:[%s3 + $0x80] sm:$0xf]
      %v2539 = vld [vmem:[%s3 + $0x84] sm:$0xf]
      %v2540 = vld [vmem:[%s3 + $0x88] sm:$0xf]
      %v2541 = vld [vmem:[%s3 + $0x8c] sm:$0xf]
      %v2542 = vld [vmem:[%s3 + $0x90] sm:$0xf]
      %v2543 = vld [vmem:[%s3 + $0x94] sm:$0xf]
      %v2544 = vld [vmem:[%s3 + $0x98] sm:$0xf]
      %v2545 = vld [vmem:[%s3 + $0x9c] sm:$0xf]
      %v2546 = vld [vmem:[%s3 + $0xa0] sm:$0xf]
      %v2547 = vld [vmem:[%s3 + $0xa4] sm:$0xf]
      %v2548 = vld [vmem:[%s3 + $0xa8] sm:$0xf]
      %v2549 = vld [vmem:[%s3 + $0xac] sm:$0xf]
      %v2550 = vld [vmem:[%s3 + $0xb0] sm:$0xf]
      %v2551 = vld [vmem:[%s3 + $0xb4] sm:$0xf]
      %v2552 = vld [vmem:[%s3 + $0xb8] sm:$0xf]
      %v2553 = vld [vmem:[%s3 + $0xbc] sm:$0xf]
      %v2556 = vunpack.c.l.b16 %v2239
      %v2557 = vunpack.c.l.b16 %v2240
      %v2558 = vpack.c.b16 %v2557, %v2556
      %v2561 = vunpack.c.l.b16 %v2241
      %v2562 = vpack.c.b16 %v2561, %v2561
      %v2564 = vshrl.u32 %v2558, 16
      %v2566 = vshll.u32 %v2558, 16
      %v2568 = vrot.slane %v2566, 1
      %v2569 = vor.u32 %v2564, %v2568
      %v2571 = vshll.u32 %v2562, 16
      %v2573 = vrot.slane %v2571, 1
      %v2574 = vsel %vm592, %v2569, %v2573
      %v2576 = vrot.slane %v2558, 1
      %v2577 = vrot.slane %v2562, 1
      %v2578 = vsel %vm749, %v2576, %v2577
      %s2580 = scalar_lea.vmem %s3, 192
      %v2581 = vld [vmem:[%s2580] sm:$0xf]
      %v2582 = vld [vmem:[%s2580 + $0x4] sm:$0xf]
      %v2583 = vld [vmem:[%s2580 + $0x8] sm:$0xf]
      %v2584 = vld [vmem:[%s2580 + $0xc] sm:$0xf]
      %v2585 = vld [vmem:[%s2580 + $0x10] sm:$0xf]
      %v2586 = vld [vmem:[%s2580 + $0x14] sm:$0xf]
      %v2587 = vld [vmem:[%s2580 + $0x18] sm:$0xf]
      %v2588 = vld [vmem:[%s2580 + $0x1c] sm:$0xf]
      %v2589 = vld [vmem:[%s2580 + $0x20] sm:$0xf]
      %v2590 = vld [vmem:[%s2580 + $0x24] sm:$0xf]
      %v2591 = vld [vmem:[%s2580 + $0x28] sm:$0xf]
      %v2592 = vld [vmem:[%s2580 + $0x2c] sm:$0xf]
      %v2593 = vld [vmem:[%s2580 + $0x30] sm:$0xf]
      %v2594 = vld [vmem:[%s2580 + $0x34] sm:$0xf]
      %v2595 = vld [vmem:[%s2580 + $0x38] sm:$0xf]
      %v2596 = vld [vmem:[%s2580 + $0x3c] sm:$0xf]
      %v2597 = vld [vmem:[%s2580 + $0x40] sm:$0xf]
      %v2598 = vld [vmem:[%s2580 + $0x44] sm:$0xf]
      %v2599 = vld [vmem:[%s2580 + $0x48] sm:$0xf]
      %v2600 = vld [vmem:[%s2580 + $0x4c] sm:$0xf]
      %v2601 = vld [vmem:[%s2580 + $0x50] sm:$0xf]
      %v2602 = vld [vmem:[%s2580 + $0x54] sm:$0xf]
      %v2603 = vld [vmem:[%s2580 + $0x58] sm:$0xf]
      %v2604 = vld [vmem:[%s2580 + $0x5c] sm:$0xf]
      %v2605 = vld [vmem:[%s2580 + $0x60] sm:$0xf]
      %v2606 = vld [vmem:[%s2580 + $0x64] sm:$0xf]
      %v2607 = vld [vmem:[%s2580 + $0x68] sm:$0xf]
      %v2608 = vld [vmem:[%s2580 + $0x6c] sm:$0xf]
      %v2609 = vld [vmem:[%s2580 + $0x70] sm:$0xf]
      %v2610 = vld [vmem:[%s2580 + $0x74] sm:$0xf]
      %v2611 = vld [vmem:[%s2580 + $0x78] sm:$0xf]
      %v2612 = vld [vmem:[%s2580 + $0x7c] sm:$0xf]
      %v2613 = vld [vmem:[%s2580 + $0x80] sm:$0xf]
      %v2614 = vld [vmem:[%s2580 + $0x84] sm:$0xf]
      %v2615 = vld [vmem:[%s2580 + $0x88] sm:$0xf]
      %v2616 = vld [vmem:[%s2580 + $0x8c] sm:$0xf]
      %v2617 = vld [vmem:[%s2580 + $0x90] sm:$0xf]
      %v2618 = vld [vmem:[%s2580 + $0x94] sm:$0xf]
      %v2619 = vld [vmem:[%s2580 + $0x98] sm:$0xf]
      %v2620 = vld [vmem:[%s2580 + $0x9c] sm:$0xf]
      %v2621 = vld [vmem:[%s2580 + $0xa0] sm:$0xf]
      %v2622 = vld [vmem:[%s2580 + $0xa4] sm:$0xf]
      %v2623 = vld [vmem:[%s2580 + $0xa8] sm:$0xf]
      %v2624 = vld [vmem:[%s2580 + $0xac] sm:$0xf]
      %v2625 = vld [vmem:[%s2580 + $0xb0] sm:$0xf]
      %v2626 = vld [vmem:[%s2580 + $0xb4] sm:$0xf]
      %v2627 = vld [vmem:[%s2580 + $0xb8] sm:$0xf]
      %v2628 = vld [vmem:[%s2580 + $0xbc] sm:$0xf]
      %v2677 = vunpack.c.l.b16 %v2581
      %v2678 = vunpack.c.l.b16 %v2582
      %v2679 = vunpack.c.l.b16 %v2583
      %v2680 = vunpack.c.l.b16 %v2584
      %v2681 = vunpack.c.l.b16 %v2585
      %v2682 = vunpack.c.l.b16 %v2586
      %v2683 = vunpack.c.l.b16 %v2587
      %v2684 = vunpack.c.l.b16 %v2588
      %v2685 = vunpack.c.l.b16 %v2589
      %v2686 = vunpack.c.l.b16 %v2590
      %v2687 = vunpack.c.l.b16 %v2591
      %v2688 = vunpack.c.l.b16 %v2592
      %v2689 = vunpack.c.l.b16 %v2593
      %v2690 = vunpack.c.l.b16 %v2594
      %v2691 = vunpack.c.l.b16 %v2595
      %v2692 = vunpack.c.l.b16 %v2596
      %v2693 = vunpack.c.l.b16 %v2597
      %v2694 = vunpack.c.l.b16 %v2598
      %v2695 = vunpack.c.l.b16 %v2599
      %v2696 = vunpack.c.l.b16 %v2600
      %v2697 = vunpack.c.l.b16 %v2601
      %v2698 = vunpack.c.l.b16 %v2602
      %v2699 = vunpack.c.l.b16 %v2603
      %v2700 = vunpack.c.l.b16 %v2604
      %v2701 = vunpack.c.l.b16 %v2605
      %v2702 = vunpack.c.l.b16 %v2606
      %v2703 = vunpack.c.l.b16 %v2607
      %v2704 = vunpack.c.l.b16 %v2608
      %v2705 = vunpack.c.l.b16 %v2609
      %v2706 = vunpack.c.l.b16 %v2610
      %v2707 = vunpack.c.l.b16 %v2611
      %v2708 = vunpack.c.l.b16 %v2612
      %v2709 = vunpack.c.l.b16 %v2613
      %v2710 = vunpack.c.l.b16 %v2614
      %v2711 = vunpack.c.l.b16 %v2615
      %v2712 = vunpack.c.l.b16 %v2616
      %v2713 = vunpack.c.l.b16 %v2617
      %v2714 = vunpack.c.l.b16 %v2618
      %v2715 = vunpack.c.l.b16 %v2619
      %v2716 = vunpack.c.l.b16 %v2620
      %v2717 = vunpack.c.l.b16 %v2621
      %v2718 = vunpack.c.l.b16 %v2622
      %v2719 = vunpack.c.l.b16 %v2623
      %v2720 = vunpack.c.l.b16 %v2624
      %v2721 = vunpack.c.l.b16 %v2625
      %v2722 = vunpack.c.l.b16 %v2626
      %v2723 = vunpack.c.l.b16 %v2627
      %v2724 = vunpack.c.l.b16 %v2628
      %v2725 = vpack.c.b16 %v2678, %v2677
      %v2726 = vpack.c.b16 %v2680, %v2679
      %v2727 = vpack.c.b16 %v2682, %v2681
      %v2728 = vpack.c.b16 %v2684, %v2683
      %v2729 = vpack.c.b16 %v2686, %v2685
      %v2730 = vpack.c.b16 %v2688, %v2687
      %v2731 = vpack.c.b16 %v2690, %v2689
      %v2732 = vpack.c.b16 %v2692, %v2691
      %v2733 = vpack.c.b16 %v2694, %v2693
      %v2734 = vpack.c.b16 %v2696, %v2695
      %v2735 = vpack.c.b16 %v2698, %v2697
      %v2736 = vpack.c.b16 %v2700, %v2699
      %v2737 = vpack.c.b16 %v2702, %v2701
      %v2738 = vpack.c.b16 %v2704, %v2703
      %v2739 = vpack.c.b16 %v2706, %v2705
      %v2740 = vpack.c.b16 %v2708, %v2707
      %v2741 = vpack.c.b16 %v2710, %v2709
      %v2742 = vpack.c.b16 %v2712, %v2711
      %v2743 = vpack.c.b16 %v2714, %v2713
      %v2744 = vpack.c.b16 %v2716, %v2715
      %v2745 = vpack.c.b16 %v2718, %v2717
      %v2746 = vpack.c.b16 %v2720, %v2719
      %v2747 = vpack.c.b16 %v2722, %v2721
      %v2748 = vpack.c.b16 %v2724, %v2723
      %2773 = vmatpush.bf16.msra.mxu0 %v2732
      %2774 = vmatpush.bf16.msra.mxu0 %v2731
      %2775 = vmatpush.bf16.msra.mxu0 %v2730
      %2776 = vmatpush.bf16.msra.mxu0 %v2729
      %2777 = vmatpush.bf16.msra.mxu0 %v2728
      %2778 = vmatpush.bf16.msra.mxu0 %v2727
      %2779 = vmatpush.bf16.msra.mxu0 %v2726
      %2780 = vmatpush.bf16.msra.mxu0 %v2725
      %2781 = vmatmul.bf16.gmra.mxu0 %v2287
      %v2782 = vpop.f32.mrf.mxu0
      %v2783 = vadd.f32 0.0, %v2782
      %v2784 = vpop.f32.mrf.mxu0
      %v2785 = vadd.f32 0.0, %v2784
      %2786 = vmatmul.bf16.gmra.mxu0 %v2288
      %v2787 = vpop.f32.mrf.mxu0
      %v2788 = vadd.f32 0.0, %v2787
      %v2789 = vpop.f32.mrf.mxu0
      %v2790 = vadd.f32 0.0, %v2789
      %2791 = vmatmul.bf16.gmra.mxu0 %v2289
      %v2792 = vpop.f32.mrf.mxu0
      %v2793 = vadd.f32 0.0, %v2792
      %v2794 = vpop.f32.mrf.mxu0
      %v2795 = vadd.f32 0.0, %v2794
      %2796 = vmatmul.bf16.gmra.mxu0 %v2290
      %v2797 = vpop.f32.mrf.mxu0
      %v2798 = vadd.f32 0.0, %v2797
      %v2799 = vpop.f32.mrf.mxu0
      %v2800 = vadd.f32 0.0, %v2799
      %2801 = vmatmul.bf16.gmra.mxu0 %v2291
      %v2802 = vpop.f32.mrf.mxu0
      %v2803 = vadd.f32 0.0, %v2802
      %v2804 = vpop.f32.mrf.mxu0
      %v2805 = vadd.f32 0.0, %v2804
      %2806 = vmatmul.bf16.gmra.mxu0 %v2292
      %v2807 = vpop.f32.mrf.mxu0
      %v2808 = vadd.f32 0.0, %v2807
      %v2809 = vpop.f32.mrf.mxu0
      %v2810 = vadd.f32 0.0, %v2809
      %2811 = vmatmul.bf16.gmra.mxu0 %v2293
      %v2812 = vpop.f32.mrf.mxu0
      %v2813 = vadd.f32 0.0, %v2812
      %v2814 = vpop.f32.mrf.mxu0
      %v2815 = vadd.f32 0.0, %v2814
      %2816 = vmatmul.bf16.gmra.mxu0 %v2294
      %v2817 = vpop.f32.mrf.mxu0
      %v2818 = vadd.f32 0.0, %v2817
      %v2819 = vpop.f32.mrf.mxu0
      %v2820 = vadd.f32 0.0, %v2819
      %2821 = vmatmul.bf16.gmra.mxu0 %v2295
      %v2822 = vpop.f32.mrf.mxu0
      %v2823 = vadd.f32 0.0, %v2822
      %v2824 = vpop.f32.mrf.mxu0
      %v2825 = vadd.f32 0.0, %v2824
      %2826 = vmatmul.bf16.gmra.mxu0 %v2558
      %v2827 = vpop.f32.mrf.mxu0
      %v2828 = vadd.f32 0.0, %v2827
      %v2829 = vpop.f32.mrf.mxu0
      %v2830 = vadd.f32 0.0, %v2829
      %2831 = vdwg.mxu0
      %2832 = vmatpush.bf16.msra.mxu0 %v2740
      %2833 = vmatpush.bf16.msra.mxu0 %v2739
      %2834 = vmatpush.bf16.msra.mxu0 %v2738
      %2835 = vmatpush.bf16.msra.mxu0 %v2737
      %2836 = vmatpush.bf16.msra.mxu0 %v2736
      %2837 = vmatpush.bf16.msra.mxu0 %v2735
      %2838 = vmatpush.bf16.msra.mxu0 %v2734
      %2839 = vmatpush.bf16.msra.mxu0 %v2733
      %2840 = vmatmul.bf16.gmra.mxu0 %v2359
      %v2841 = vpop.f32.mrf.mxu0
      %v2842 = vadd.f32 %v2783, %v2841
      %v2843 = vpop.f32.mrf.mxu0
      %v2844 = vadd.f32 %v2785, %v2843
      %2845 = vmatmul.bf16.gmra.mxu0 %v2371
      %v2846 = vpop.f32.mrf.mxu0
      %v2847 = vadd.f32 %v2788, %v2846
      %v2848 = vpop.f32.mrf.mxu0
      %v2849 = vadd.f32 %v2790, %v2848
      %2850 = vmatmul.bf16.gmra.mxu0 %v2383
      %v2851 = vpop.f32.mrf.mxu0
      %v2852 = vadd.f32 %v2793, %v2851
      %v2853 = vpop.f32.mrf.mxu0
      %v2854 = vadd.f32 %v2795, %v2853
      %2855 = vmatmul.bf16.gmra.mxu0 %v2395
      %v2856 = vpop.f32.mrf.mxu0
      %v2857 = vadd.f32 %v2798, %v2856
      %v2858 = vpop.f32.mrf.mxu0
      %v2859 = vadd.f32 %v2800, %v2858
      %2860 = vmatmul.bf16.gmra.mxu0 %v2407
      %v2861 = vpop.f32.mrf.mxu0
      %v2862 = vadd.f32 %v2803, %v2861
      %v2863 = vpop.f32.mrf.mxu0
      %v2864 = vadd.f32 %v2805, %v2863
      %2865 = vmatmul.bf16.gmra.mxu0 %v2419
      %v2866 = vpop.f32.mrf.mxu0
      %v2867 = vadd.f32 %v2808, %v2866
      %v2868 = vpop.f32.mrf.mxu0
      %v2869 = vadd.f32 %v2810, %v2868
      %2870 = vmatmul.bf16.gmra.mxu0 %v2431
      %v2871 = vpop.f32.mrf.mxu0
      %v2872 = vadd.f32 %v2813, %v2871
      %v2873 = vpop.f32.mrf.mxu0
      %v2874 = vadd.f32 %v2815, %v2873
      %2875 = vmatmul.bf16.gmra.mxu0 %v2443
      %v2876 = vpop.f32.mrf.mxu0
      %v2877 = vadd.f32 %v2818, %v2876
      %v2878 = vpop.f32.mrf.mxu0
      %v2879 = vadd.f32 %v2820, %v2878
      %2880 = vmatmul.bf16.gmra.mxu0 %v2455
      %v2881 = vpop.f32.mrf.mxu0
      %v2882 = vadd.f32 %v2823, %v2881
      %v2883 = vpop.f32.mrf.mxu0
      %v2884 = vadd.f32 %v2825, %v2883
      %2885 = vmatmul.bf16.gmra.mxu0 %v2574
      %v2886 = vpop.f32.mrf.mxu0
      %v2887 = vadd.f32 %v2828, %v2886
      %v2888 = vpop.f32.mrf.mxu0
      %v2889 = vadd.f32 %v2830, %v2888
      %2890 = vdwg.mxu0
      %2891 = vmatpush.bf16.msra.mxu0 %v2748
      %2892 = vmatpush.bf16.msra.mxu0 %v2747
      %2893 = vmatpush.bf16.msra.mxu0 %v2746
      %2894 = vmatpush.bf16.msra.mxu0 %v2745
      %2895 = vmatpush.bf16.msra.mxu0 %v2744
      %2896 = vmatpush.bf16.msra.mxu0 %v2743
      %2897 = vmatpush.bf16.msra.mxu0 %v2742
      %2898 = vmatpush.bf16.msra.mxu0 %v2741
      %2899 = vmatmul.bf16.gmra.mxu0 %v2471
      %v2900 = vpop.f32.mrf.mxu0
      %v2901 = vadd.f32 %v2842, %v2900
      %v2902 = vpop.f32.mrf.mxu0
      %v2903 = vadd.f32 %v2844, %v2902
      %2904 = vmatmul.bf16.gmra.mxu0 %v2474
      %v2905 = vpop.f32.mrf.mxu0
      %v2906 = vadd.f32 %v2847, %v2905
      %v2907 = vpop.f32.mrf.mxu0
      %v2908 = vadd.f32 %v2849, %v2907
      %2909 = vmatmul.bf16.gmra.mxu0 %v2477
      %v2910 = vpop.f32.mrf.mxu0
      %v2911 = vadd.f32 %v2852, %v2910
      %v2912 = vpop.f32.mrf.mxu0
      %v2913 = vadd.f32 %v2854, %v2912
      %2914 = vmatmul.bf16.gmra.mxu0 %v2480
      %v2915 = vpop.f32.mrf.mxu0
      %v2916 = vadd.f32 %v2857, %v2915
      %v2917 = vpop.f32.mrf.mxu0
      %v2918 = vadd.f32 %v2859, %v2917
      %2919 = vmatmul.bf16.gmra.mxu0 %v2483
      %v2920 = vpop.f32.mrf.mxu0
      %v2921 = vadd.f32 %v2862, %v2920
      %v2922 = vpop.f32.mrf.mxu0
      %v2923 = vadd.f32 %v2864, %v2922
      %2924 = vmatmul.bf16.gmra.mxu0 %v2486
      %v2925 = vpop.f32.mrf.mxu0
      %v2926 = vadd.f32 %v2867, %v2925
      %v2927 = vpop.f32.mrf.mxu0
      %v2928 = vadd.f32 %v2869, %v2927
      %2929 = vmatmul.bf16.gmra.mxu0 %v2489
      %v2930 = vpop.f32.mrf.mxu0
      %v2931 = vadd.f32 %v2872, %v2930
      %v2932 = vpop.f32.mrf.mxu0
      %v2933 = vadd.f32 %v2874, %v2932
      %2934 = vmatmul.bf16.gmra.mxu0 %v2492
      %v2935 = vpop.f32.mrf.mxu0
      %v2936 = vadd.f32 %v2877, %v2935
      %v2937 = vpop.f32.mrf.mxu0
      %v2938 = vadd.f32 %v2879, %v2937
      %2939 = vmatmul.bf16.gmra.mxu0 %v2495
      %v2940 = vpop.f32.mrf.mxu0
      %v2941 = vadd.f32 %v2882, %v2940
      %v2942 = vpop.f32.mrf.mxu0
      %v2943 = vadd.f32 %v2884, %v2942
      %2944 = vmatmul.bf16.gmra.mxu0 %v2578
      %v2945 = vpop.f32.mrf.mxu0
      %v2946 = vadd.f32 %v2887, %v2945
      %v2947 = vpop.f32.mrf.mxu0
      %v2948 = vadd.f32 %v2889, %v2947
      %2949 = vdwg.mxu0
      %v2998 = vunpack.c.l.b16 %v2506
      %v2999 = vunpack.c.l.b16 %v2507
      %v3000 = vunpack.c.l.b16 %v2508
      %v3001 = vunpack.c.l.b16 %v2509
      %v3002 = vunpack.c.l.b16 %v2510
      %v3003 = vunpack.c.l.b16 %v2511
      %v3004 = vunpack.c.l.b16 %v2512
      %v3005 = vunpack.c.l.b16 %v2513
      %v3006 = vunpack.c.l.b16 %v2514
      %v3007 = vunpack.c.l.b16 %v2515
      %v3008 = vunpack.c.l.b16 %v2516
      %v3009 = vunpack.c.l.b16 %v2517
      %v3010 = vunpack.c.l.b16 %v2518
      %v3011 = vunpack.c.l.b16 %v2519
      %v3012 = vunpack.c.l.b16 %v2520
      %v3013 = vunpack.c.l.b16 %v2521
      %v3014 = vunpack.c.l.b16 %v2522
      %v3015 = vunpack.c.l.b16 %v2523
      %v3016 = vunpack.c.l.b16 %v2524
      %v3017 = vunpack.c.l.b16 %v2525
      %v3018 = vunpack.c.l.b16 %v2526
      %v3019 = vunpack.c.l.b16 %v2527
      %v3020 = vunpack.c.l.b16 %v2528
      %v3021 = vunpack.c.l.b16 %v2529
      %v3022 = vunpack.c.l.b16 %v2530
      %v3023 = vunpack.c.l.b16 %v2531
      %v3024 = vunpack.c.l.b16 %v2532
      %v3025 = vunpack.c.l.b16 %v2533
      %v3026 = vunpack.c.l.b16 %v2534
      %v3027 = vunpack.c.l.b16 %v2535
      %v3028 = vunpack.c.l.b16 %v2536
      %v3029 = vunpack.c.l.b16 %v2537
      %v3030 = vunpack.c.l.b16 %v2538
      %v3031 = vunpack.c.l.b16 %v2539
      %v3032 = vunpack.c.l.b16 %v2540
      %v3033 = vunpack.c.l.b16 %v2541
      %v3034 = vunpack.c.l.b16 %v2542
      %v3035 = vunpack.c.l.b16 %v2543
      %v3036 = vunpack.c.l.b16 %v2544
      %v3037 = vunpack.c.l.b16 %v2545
      %v3038 = vunpack.c.l.b16 %v2546
      %v3039 = vunpack.c.l.b16 %v2547
      %v3040 = vunpack.c.l.b16 %v2548
      %v3041 = vunpack.c.l.b16 %v2549
      %v3042 = vunpack.c.l.b16 %v2550
      %v3043 = vunpack.c.l.b16 %v2551
      %v3044 = vunpack.c.l.b16 %v2552
      %v3045 = vunpack.c.l.b16 %v2553
      %v3046 = vpack.c.b16 %v2999, %v2998
      %v3047 = vpack.c.b16 %v3001, %v3000
      %v3048 = vpack.c.b16 %v3003, %v3002
      %v3049 = vpack.c.b16 %v3005, %v3004
      %v3050 = vpack.c.b16 %v3007, %v3006
      %v3051 = vpack.c.b16 %v3009, %v3008
      %v3052 = vpack.c.b16 %v3011, %v3010
      %v3053 = vpack.c.b16 %v3013, %v3012
      %v3054 = vpack.c.b16 %v3015, %v3014
      %v3055 = vpack.c.b16 %v3017, %v3016
      %v3056 = vpack.c.b16 %v3019, %v3018
      %v3057 = vpack.c.b16 %v3021, %v3020
      %v3058 = vpack.c.b16 %v3023, %v3022
      %v3059 = vpack.c.b16 %v3025, %v3024
      %v3060 = vpack.c.b16 %v3027, %v3026
      %v3061 = vpack.c.b16 %v3029, %v3028
      %v3062 = vpack.c.b16 %v3031, %v3030
      %v3063 = vpack.c.b16 %v3033, %v3032
      %v3064 = vpack.c.b16 %v3035, %v3034
      %v3065 = vpack.c.b16 %v3037, %v3036
      %v3066 = vpack.c.b16 %v3039, %v3038
      %v3067 = vpack.c.b16 %v3041, %v3040
      %v3068 = vpack.c.b16 %v3043, %v3042
      %v3069 = vpack.c.b16 %v3045, %v3044
      %3094 = vmatpush.bf16.msra.mxu0 %v3053
      %3095 = vmatpush.bf16.msra.mxu0 %v3052
      %3096 = vmatpush.bf16.msra.mxu0 %v3051
      %3097 = vmatpush.bf16.msra.mxu0 %v3050
      %3098 = vmatpush.bf16.msra.mxu0 %v3049
      %3099 = vmatpush.bf16.msra.mxu0 %v3048
      %3100 = vmatpush.bf16.msra.mxu0 %v3047
      %3101 = vmatpush.bf16.msra.mxu0 %v3046
      %3102 = vmatmul.bf16.gmra.mxu0 %v2286
      %v3103 = vpop.f32.mrf.mxu0
      %v3104 = vadd.f32 %v2901, %v3103
      %v3105 = vpop.f32.mrf.mxu0
      %v3106 = vadd.f32 %v2903, %v3105
      %3107 = vmatmul.bf16.gmra.mxu0 %v2287
      %v3108 = vpop.f32.mrf.mxu0
      %v3109 = vadd.f32 %v2906, %v3108
      %v3110 = vpop.f32.mrf.mxu0
      %v3111 = vadd.f32 %v2908, %v3110
      %3112 = vmatmul.bf16.gmra.mxu0 %v2288
      %v3113 = vpop.f32.mrf.mxu0
      %v3114 = vadd.f32 %v2911, %v3113
      %v3115 = vpop.f32.mrf.mxu0
      %v3116 = vadd.f32 %v2913, %v3115
      %3117 = vmatmul.bf16.gmra.mxu0 %v2289
      %v3118 = vpop.f32.mrf.mxu0
      %v3119 = vadd.f32 %v2916, %v3118
      %v3120 = vpop.f32.mrf.mxu0
      %v3121 = vadd.f32 %v2918, %v3120
      %3122 = vmatmul.bf16.gmra.mxu0 %v2290
      %v3123 = vpop.f32.mrf.mxu0
      %v3124 = vadd.f32 %v2921, %v3123
      %v3125 = vpop.f32.mrf.mxu0
      %v3126 = vadd.f32 %v2923, %v3125
      %3127 = vmatmul.bf16.gmra.mxu0 %v2291
      %v3128 = vpop.f32.mrf.mxu0
      %v3129 = vadd.f32 %v2926, %v3128
      %v3130 = vpop.f32.mrf.mxu0
      %v3131 = vadd.f32 %v2928, %v3130
      %3132 = vmatmul.bf16.gmra.mxu0 %v2292
      %v3133 = vpop.f32.mrf.mxu0
      %v3134 = vadd.f32 %v2931, %v3133
      %v3135 = vpop.f32.mrf.mxu0
      %v3136 = vadd.f32 %v2933, %v3135
      %3137 = vmatmul.bf16.gmra.mxu0 %v2293
      %v3138 = vpop.f32.mrf.mxu0
      %v3139 = vadd.f32 %v2936, %v3138
      %v3140 = vpop.f32.mrf.mxu0
      %v3141 = vadd.f32 %v2938, %v3140
      %3142 = vmatmul.bf16.gmra.mxu0 %v2294
      %v3143 = vpop.f32.mrf.mxu0
      %v3144 = vadd.f32 %v2941, %v3143
      %v3145 = vpop.f32.mrf.mxu0
      %v3146 = vadd.f32 %v2943, %v3145
      %3147 = vmatmul.bf16.gmra.mxu0 %v2295
      %v3148 = vpop.f32.mrf.mxu0
      %v3149 = vadd.f32 %v2946, %v3148
      %v3150 = vpop.f32.mrf.mxu0
      %v3151 = vadd.f32 %v2948, %v3150
      %3152 = vdwg.mxu0
      %3153 = vmatpush.bf16.msra.mxu0 %v3061
      %3154 = vmatpush.bf16.msra.mxu0 %v3060
      %3155 = vmatpush.bf16.msra.mxu0 %v3059
      %3156 = vmatpush.bf16.msra.mxu0 %v3058
      %3157 = vmatpush.bf16.msra.mxu0 %v3057
      %3158 = vmatpush.bf16.msra.mxu0 %v3056
      %3159 = vmatpush.bf16.msra.mxu0 %v3055
      %3160 = vmatpush.bf16.msra.mxu0 %v3054
      %3161 = vmatmul.bf16.gmra.mxu0 %v2347
      %v3162 = vpop.f32.mrf.mxu0
      %v3163 = vadd.f32 %v3104, %v3162
      %v3164 = vpop.f32.mrf.mxu0
      %v3165 = vadd.f32 %v3106, %v3164
      %3166 = vmatmul.bf16.gmra.mxu0 %v2359
      %v3167 = vpop.f32.mrf.mxu0
      %v3168 = vadd.f32 %v3109, %v3167
      %v3169 = vpop.f32.mrf.mxu0
      %v3170 = vadd.f32 %v3111, %v3169
      %3171 = vmatmul.bf16.gmra.mxu0 %v2371
      %v3172 = vpop.f32.mrf.mxu0
      %v3173 = vadd.f32 %v3114, %v3172
      %v3174 = vpop.f32.mrf.mxu0
      %v3175 = vadd.f32 %v3116, %v3174
      %3176 = vmatmul.bf16.gmra.mxu0 %v2383
      %v3177 = vpop.f32.mrf.mxu0
      %v3178 = vadd.f32 %v3119, %v3177
      %v3179 = vpop.f32.mrf.mxu0
      %v3180 = vadd.f32 %v3121, %v3179
      %3181 = vmatmul.bf16.gmra.mxu0 %v2395
      %v3182 = vpop.f32.mrf.mxu0
      %v3183 = vadd.f32 %v3124, %v3182
      %v3184 = vpop.f32.mrf.mxu0
      %v3185 = vadd.f32 %v3126, %v3184
      %3186 = vmatmul.bf16.gmra.mxu0 %v2407
      %v3187 = vpop.f32.mrf.mxu0
      %v3188 = vadd.f32 %v3129, %v3187
      %v3189 = vpop.f32.mrf.mxu0
      %v3190 = vadd.f32 %v3131, %v3189
      %3191 = vmatmul.bf16.gmra.mxu0 %v2419
      %v3192 = vpop.f32.mrf.mxu0
      %v3193 = vadd.f32 %v3134, %v3192
      %v3194 = vpop.f32.mrf.mxu0
      %v3195 = vadd.f32 %v3136, %v3194
      %3196 = vmatmul.bf16.gmra.mxu0 %v2431
      %v3197 = vpop.f32.mrf.mxu0
      %v3198 = vadd.f32 %v3139, %v3197
      %v3199 = vpop.f32.mrf.mxu0
      %v3200 = vadd.f32 %v3141, %v3199
      %3201 = vmatmul.bf16.gmra.mxu0 %v2443
      %v3202 = vpop.f32.mrf.mxu0
      %v3203 = vadd.f32 %v3144, %v3202
      %v3204 = vpop.f32.mrf.mxu0
      %v3205 = vadd.f32 %v3146, %v3204
      %3206 = vmatmul.bf16.gmra.mxu0 %v2455
      %v3207 = vpop.f32.mrf.mxu0
      %v3208 = vadd.f32 %v3149, %v3207
      %v3209 = vpop.f32.mrf.mxu0
      %v3210 = vadd.f32 %v3151, %v3209
      %3211 = vdwg.mxu0
      %3212 = vmatpush.bf16.msra.mxu0 %v3069
      %3213 = vmatpush.bf16.msra.mxu0 %v3068
      %3214 = vmatpush.bf16.msra.mxu0 %v3067
      %3215 = vmatpush.bf16.msra.mxu0 %v3066
      %3216 = vmatpush.bf16.msra.mxu0 %v3065
      %3217 = vmatpush.bf16.msra.mxu0 %v3064
      %3218 = vmatpush.bf16.msra.mxu0 %v3063
      %3219 = vmatpush.bf16.msra.mxu0 %v3062
      %3220 = vmatmul.bf16.gmra.mxu0 %v2468
      %v3221 = vpop.f32.mrf.mxu0
      %v3222 = vadd.f32 %v3163, %v3221
      %v3223 = vpop.f32.mrf.mxu0
      %v3224 = vadd.f32 %v3165, %v3223
      %3225 = vmatmul.bf16.gmra.mxu0 %v2471
      %v3226 = vpop.f32.mrf.mxu0
      %v3227 = vadd.f32 %v3168, %v3226
      %v3228 = vpop.f32.mrf.mxu0
      %v3229 = vadd.f32 %v3170, %v3228
      %3230 = vmatmul.bf16.gmra.mxu0 %v2474
      %v3231 = vpop.f32.mrf.mxu0
      %v3232 = vadd.f32 %v3173, %v3231
      %v3233 = vpop.f32.mrf.mxu0
      %v3234 = vadd.f32 %v3175, %v3233
      %3235 = vmatmul.bf16.gmra.mxu0 %v2477
      %v3236 = vpop.f32.mrf.mxu0
      %v3237 = vadd.f32 %v3178, %v3236
      %v3238 = vpop.f32.mrf.mxu0
      %v3239 = vadd.f32 %v3180, %v3238
      %3240 = vmatmul.bf16.gmra.mxu0 %v2480
      %v3241 = vpop.f32.mrf.mxu0
      %v3242 = vadd.f32 %v3183, %v3241
      %v3243 = vpop.f32.mrf.mxu0
      %v3244 = vadd.f32 %v3185, %v3243
      %3245 = vmatmul.bf16.gmra.mxu0 %v2483
      %v3246 = vpop.f32.mrf.mxu0
      %v3247 = vadd.f32 %v3188, %v3246
      %v3248 = vpop.f32.mrf.mxu0
      %v3249 = vadd.f32 %v3190, %v3248
      %3250 = vmatmul.bf16.gmra.mxu0 %v2486
      %v3251 = vpop.f32.mrf.mxu0
      %v3252 = vadd.f32 %v3193, %v3251
      %v3253 = vpop.f32.mrf.mxu0
      %v3254 = vadd.f32 %v3195, %v3253
      %3255 = vmatmul.bf16.gmra.mxu0 %v2489
      %v3256 = vpop.f32.mrf.mxu0
      %v3257 = vadd.f32 %v3198, %v3256
      %v3258 = vpop.f32.mrf.mxu0
      %v3259 = vadd.f32 %v3200, %v3258
      %3260 = vmatmul.bf16.gmra.mxu0 %v2492
      %v3261 = vpop.f32.mrf.mxu0
      %v3262 = vadd.f32 %v3203, %v3261
      %v3263 = vpop.f32.mrf.mxu0
      %v3264 = vadd.f32 %v3205, %v3263
      %3265 = vmatmul.bf16.gmra.mxu0 %v2495
      %v3266 = vpop.f32.mrf.mxu0
      %v3267 = vadd.f32 %v3208, %v3266
      %v3268 = vpop.f32.mrf.mxu0
      %v3269 = vadd.f32 %v3210, %v3268
      %3270 = vdwg.mxu0
      %v3273 = vunpack.c.l.b16 %v2242
      %v3274 = vunpack.c.l.b16 %v2243
      %v3275 = vpack.c.b16 %v3274, %v3273
      %v3278 = vunpack.c.l.b16 %v2244
      %v3279 = vpack.c.b16 %v3278, %v3278
      %v3281 = vshrl.u32 %v3275, 16
      %v3283 = vshll.u32 %v3275, 16
      %v3285 = vrot.slane %v3283, 1
      %v3286 = vor.u32 %v3281, %v3285
      %v3288 = vshll.u32 %v3279, 16
      %v3290 = vrot.slane %v3288, 1
      %v3291 = vsel %vm592, %v3286, %v3290
      %v3293 = vrot.slane %v3275, 1
      %v3294 = vrot.slane %v3279, 1
      %v3295 = vsel %vm749, %v3293, %v3294
      %s3297 = scalar_lea.vmem %s3, 384
      %v3298 = vld [vmem:[%s3297] sm:$0xf]
      %v3299 = vld [vmem:[%s3297 + $0x4] sm:$0xf]
      %v3300 = vld [vmem:[%s3297 + $0x8] sm:$0xf]
      %v3301 = vld [vmem:[%s3297 + $0xc] sm:$0xf]
      %v3302 = vld [vmem:[%s3297 + $0x10] sm:$0xf]
      %v3303 = vld [vmem:[%s3297 + $0x14] sm:$0xf]
      %v3304 = vld [vmem:[%s3297 + $0x18] sm:$0xf]
      %v3305 = vld [vmem:[%s3297 + $0x1c] sm:$0xf]
      %v3306 = vld [vmem:[%s3297 + $0x20] sm:$0xf]
      %v3307 = vld [vmem:[%s3297 + $0x24] sm:$0xf]
      %v3308 = vld [vmem:[%s3297 + $0x28] sm:$0xf]
      %v3309 = vld [vmem:[%s3297 + $0x2c] sm:$0xf]
      %v3310 = vld [vmem:[%s3297 + $0x30] sm:$0xf]
      %v3311 = vld [vmem:[%s3297 + $0x34] sm:$0xf]
      %v3312 = vld [vmem:[%s3297 + $0x38] sm:$0xf]
      %v3313 = vld [vmem:[%s3297 + $0x3c] sm:$0xf]
      %v3314 = vld [vmem:[%s3297 + $0x40] sm:$0xf]
      %v3315 = vld [vmem:[%s3297 + $0x44] sm:$0xf]
      %v3316 = vld [vmem:[%s3297 + $0x48] sm:$0xf]
      %v3317 = vld [vmem:[%s3297 + $0x4c] sm:$0xf]
      %v3318 = vld [vmem:[%s3297 + $0x50] sm:$0xf]
      %v3319 = vld [vmem:[%s3297 + $0x54] sm:$0xf]
      %v3320 = vld [vmem:[%s3297 + $0x58] sm:$0xf]
      %v3321 = vld [vmem:[%s3297 + $0x5c] sm:$0xf]
      %v3322 = vld [vmem:[%s3297 + $0x60] sm:$0xf]
      %v3323 = vld [vmem:[%s3297 + $0x64] sm:$0xf]
      %v3324 = vld [vmem:[%s3297 + $0x68] sm:$0xf]
      %v3325 = vld [vmem:[%s3297 + $0x6c] sm:$0xf]
      %v3326 = vld [vmem:[%s3297 + $0x70] sm:$0xf]
      %v3327 = vld [vmem:[%s3297 + $0x74] sm:$0xf]
      %v3328 = vld [vmem:[%s3297 + $0x78] sm:$0xf]
      %v3329 = vld [vmem:[%s3297 + $0x7c] sm:$0xf]
      %v3330 = vld [vmem:[%s3297 + $0x80] sm:$0xf]
      %v3331 = vld [vmem:[%s3297 + $0x84] sm:$0xf]
      %v3332 = vld [vmem:[%s3297 + $0x88] sm:$0xf]
      %v3333 = vld [vmem:[%s3297 + $0x8c] sm:$0xf]
      %v3334 = vld [vmem:[%s3297 + $0x90] sm:$0xf]
      %v3335 = vld [vmem:[%s3297 + $0x94] sm:$0xf]
      %v3336 = vld [vmem:[%s3297 + $0x98] sm:$0xf]
      %v3337 = vld [vmem:[%s3297 + $0x9c] sm:$0xf]
      %v3338 = vld [vmem:[%s3297 + $0xa0] sm:$0xf]
      %v3339 = vld [vmem:[%s3297 + $0xa4] sm:$0xf]
      %v3340 = vld [vmem:[%s3297 + $0xa8] sm:$0xf]
      %v3341 = vld [vmem:[%s3297 + $0xac] sm:$0xf]
      %v3342 = vld [vmem:[%s3297 + $0xb0] sm:$0xf]
      %v3343 = vld [vmem:[%s3297 + $0xb4] sm:$0xf]
      %v3344 = vld [vmem:[%s3297 + $0xb8] sm:$0xf]
      %v3345 = vld [vmem:[%s3297 + $0xbc] sm:$0xf]
      %v3394 = vunpack.c.l.b16 %v3298
      %v3395 = vunpack.c.l.b16 %v3299
      %v3396 = vunpack.c.l.b16 %v3300
      %v3397 = vunpack.c.l.b16 %v3301
      %v3398 = vunpack.c.l.b16 %v3302
      %v3399 = vunpack.c.l.b16 %v3303
      %v3400 = vunpack.c.l.b16 %v3304
      %v3401 = vunpack.c.l.b16 %v3305
      %v3402 = vunpack.c.l.b16 %v3306
      %v3403 = vunpack.c.l.b16 %v3307
      %v3404 = vunpack.c.l.b16 %v3308
      %v3405 = vunpack.c.l.b16 %v3309
      %v3406 = vunpack.c.l.b16 %v3310
      %v3407 = vunpack.c.l.b16 %v3311
      %v3408 = vunpack.c.l.b16 %v3312
      %v3409 = vunpack.c.l.b16 %v3313
      %v3410 = vunpack.c.l.b16 %v3314
      %v3411 = vunpack.c.l.b16 %v3315
      %v3412 = vunpack.c.l.b16 %v3316
      %v3413 = vunpack.c.l.b16 %v3317
      %v3414 = vunpack.c.l.b16 %v3318
      %v3415 = vunpack.c.l.b16 %v3319
      %v3416 = vunpack.c.l.b16 %v3320
      %v3417 = vunpack.c.l.b16 %v3321
      %v3418 = vunpack.c.l.b16 %v3322
      %v3419 = vunpack.c.l.b16 %v3323
      %v3420 = vunpack.c.l.b16 %v3324
      %v3421 = vunpack.c.l.b16 %v3325
      %v3422 = vunpack.c.l.b16 %v3326
      %v3423 = vunpack.c.l.b16 %v3327
      %v3424 = vunpack.c.l.b16 %v3328
      %v3425 = vunpack.c.l.b16 %v3329
      %v3426 = vunpack.c.l.b16 %v3330
      %v3427 = vunpack.c.l.b16 %v3331
      %v3428 = vunpack.c.l.b16 %v3332
      %v3429 = vunpack.c.l.b16 %v3333
      %v3430 = vunpack.c.l.b16 %v3334
      %v3431 = vunpack.c.l.b16 %v3335
      %v3432 = vunpack.c.l.b16 %v3336
      %v3433 = vunpack.c.l.b16 %v3337
      %v3434 = vunpack.c.l.b16 %v3338
      %v3435 = vunpack.c.l.b16 %v3339
      %v3436 = vunpack.c.l.b16 %v3340
      %v3437 = vunpack.c.l.b16 %v3341
      %v3438 = vunpack.c.l.b16 %v3342
      %v3439 = vunpack.c.l.b16 %v3343
      %v3440 = vunpack.c.l.b16 %v3344
      %v3441 = vunpack.c.l.b16 %v3345
      %v3442 = vpack.c.b16 %v3395, %v3394
      %v3443 = vpack.c.b16 %v3397, %v3396
      %v3444 = vpack.c.b16 %v3399, %v3398
      %v3445 = vpack.c.b16 %v3401, %v3400
      %v3446 = vpack.c.b16 %v3403, %v3402
      %v3447 = vpack.c.b16 %v3405, %v3404
      %v3448 = vpack.c.b16 %v3407, %v3406
      %v3449 = vpack.c.b16 %v3409, %v3408
      %v3450 = vpack.c.b16 %v3411, %v3410
      %v3451 = vpack.c.b16 %v3413, %v3412
      %v3452 = vpack.c.b16 %v3415, %v3414
      %v3453 = vpack.c.b16 %v3417, %v3416
      %v3454 = vpack.c.b16 %v3419, %v3418
      %v3455 = vpack.c.b16 %v3421, %v3420
      %v3456 = vpack.c.b16 %v3423, %v3422
      %v3457 = vpack.c.b16 %v3425, %v3424
      %v3458 = vpack.c.b16 %v3427, %v3426
      %v3459 = vpack.c.b16 %v3429, %v3428
      %v3460 = vpack.c.b16 %v3431, %v3430
      %v3461 = vpack.c.b16 %v3433, %v3432
      %v3462 = vpack.c.b16 %v3435, %v3434
      %v3463 = vpack.c.b16 %v3437, %v3436
      %v3464 = vpack.c.b16 %v3439, %v3438
      %v3465 = vpack.c.b16 %v3441, %v3440
      %3490 = vmatpush.bf16.msra.mxu0 %v3449
      %3491 = vmatpush.bf16.msra.mxu0 %v3448
      %3492 = vmatpush.bf16.msra.mxu0 %v3447
      %3493 = vmatpush.bf16.msra.mxu0 %v3446
      %3494 = vmatpush.bf16.msra.mxu0 %v3445
      %3495 = vmatpush.bf16.msra.mxu0 %v3444
      %3496 = vmatpush.bf16.msra.mxu0 %v3443
      %3497 = vmatpush.bf16.msra.mxu0 %v3442
      %3498 = vmatmul.bf16.gmra.mxu0 %v2288
      %v3499 = vpop.f32.mrf.mxu0
      %v3500 = vadd.f32 0.0, %v3499
      %v3501 = vpop.f32.mrf.mxu0
      %v3502 = vadd.f32 0.0, %v3501
      %3503 = vmatmul.bf16.gmra.mxu0 %v2289
      %v3504 = vpop.f32.mrf.mxu0
      %v3505 = vadd.f32 0.0, %v3504
      %v3506 = vpop.f32.mrf.mxu0
      %v3507 = vadd.f32 0.0, %v3506
      %3508 = vmatmul.bf16.gmra.mxu0 %v2290
      %v3509 = vpop.f32.mrf.mxu0
      %v3510 = vadd.f32 0.0, %v3509
      %v3511 = vpop.f32.mrf.mxu0
      %v3512 = vadd.f32 0.0, %v3511
      %3513 = vmatmul.bf16.gmra.mxu0 %v2291
      %v3514 = vpop.f32.mrf.mxu0
      %v3515 = vadd.f32 0.0, %v3514
      %v3516 = vpop.f32.mrf.mxu0
      %v3517 = vadd.f32 0.0, %v3516
      %3518 = vmatmul.bf16.gmra.mxu0 %v2292
      %v3519 = vpop.f32.mrf.mxu0
      %v3520 = vadd.f32 0.0, %v3519
      %v3521 = vpop.f32.mrf.mxu0
      %v3522 = vadd.f32 0.0, %v3521
      %3523 = vmatmul.bf16.gmra.mxu0 %v2293
      %v3524 = vpop.f32.mrf.mxu0
      %v3525 = vadd.f32 0.0, %v3524
      %v3526 = vpop.f32.mrf.mxu0
      %v3527 = vadd.f32 0.0, %v3526
      %3528 = vmatmul.bf16.gmra.mxu0 %v2294
      %v3529 = vpop.f32.mrf.mxu0
      %v3530 = vadd.f32 0.0, %v3529
      %v3531 = vpop.f32.mrf.mxu0
      %v3532 = vadd.f32 0.0, %v3531
      %3533 = vmatmul.bf16.gmra.mxu0 %v2295
      %v3534 = vpop.f32.mrf.mxu0
      %v3535 = vadd.f32 0.0, %v3534
      %v3536 = vpop.f32.mrf.mxu0
      %v3537 = vadd.f32 0.0, %v3536
      %3538 = vmatmul.bf16.gmra.mxu0 %v2558
      %v3539 = vpop.f32.mrf.mxu0
      %v3540 = vadd.f32 0.0, %v3539
      %v3541 = vpop.f32.mrf.mxu0
      %v3542 = vadd.f32 0.0, %v3541
      %3543 = vmatmul.bf16.gmra.mxu0 %v3275
      %v3544 = vpop.f32.mrf.mxu0
      %v3545 = vadd.f32 0.0, %v3544
      %v3546 = vpop.f32.mrf.mxu0
      %v3547 = vadd.f32 0.0, %v3546
      %3548 = vdwg.mxu0
      %3549 = vmatpush.bf16.msra.mxu0 %v3457
      %3550 = vmatpush.bf16.msra.mxu0 %v3456
      %3551 = vmatpush.bf16.msra.mxu0 %v3455
      %3552 = vmatpush.bf16.msra.mxu0 %v3454
      %3553 = vmatpush.bf16.msra.mxu0 %v3453
      %3554 = vmatpush.bf16.msra.mxu0 %v3452
      %3555 = vmatpush.bf16.msra.mxu0 %v3451
      %3556 = vmatpush.bf16.msra.mxu0 %v3450
      %3557 = vmatmul.bf16.gmra.mxu0 %v2371
      %v3558 = vpop.f32.mrf.mxu0
      %v3559 = vadd.f32 %v3500, %v3558
      %v3560 = vpop.f32.mrf.mxu0
      %v3561 = vadd.f32 %v3502, %v3560
      %3562 = vmatmul.bf16.gmra.mxu0 %v2383
      %v3563 = vpop.f32.mrf.mxu0
      %v3564 = vadd.f32 %v3505, %v3563
      %v3565 = vpop.f32.mrf.mxu0
      %v3566 = vadd.f32 %v3507, %v3565
      %3567 = vmatmul.bf16.gmra.mxu0 %v2395
      %v3568 = vpop.f32.mrf.mxu0
      %v3569 = vadd.f32 %v3510, %v3568
      %v3570 = vpop.f32.mrf.mxu0
      %v3571 = vadd.f32 %v3512, %v3570
      %3572 = vmatmul.bf16.gmra.mxu0 %v2407
      %v3573 = vpop.f32.mrf.mxu0
      %v3574 = vadd.f32 %v3515, %v3573
      %v3575 = vpop.f32.mrf.mxu0
      %v3576 = vadd.f32 %v3517, %v3575
      %3577 = vmatmul.bf16.gmra.mxu0 %v2419
      %v3578 = vpop.f32.mrf.mxu0
      %v3579 = vadd.f32 %v3520, %v3578
      %v3580 = vpop.f32.mrf.mxu0
      %v3581 = vadd.f32 %v3522, %v3580
      %3582 = vmatmul.bf16.gmra.mxu0 %v2431
      %v3583 = vpop.f32.mrf.mxu0
      %v3584 = vadd.f32 %v3525, %v3583
      %v3585 = vpop.f32.mrf.mxu0
      %v3586 = vadd.f32 %v3527, %v3585
      %3587 = vmatmul.bf16.gmra.mxu0 %v2443
      %v3588 = vpop.f32.mrf.mxu0
      %v3589 = vadd.f32 %v3530, %v3588
      %v3590 = vpop.f32.mrf.mxu0
      %v3591 = vadd.f32 %v3532, %v3590
      %3592 = vmatmul.bf16.gmra.mxu0 %v2455
      %v3593 = vpop.f32.mrf.mxu0
      %v3594 = vadd.f32 %v3535, %v3593
      %v3595 = vpop.f32.mrf.mxu0
      %v3596 = vadd.f32 %v3537, %v3595
      %3597 = vmatmul.bf16.gmra.mxu0 %v2574
      %v3598 = vpop.f32.mrf.mxu0
      %v3599 = vadd.f32 %v3540, %v3598
      %v3600 = vpop.f32.mrf.mxu0
      %v3601 = vadd.f32 %v3542, %v3600
      %3602 = vmatmul.bf16.gmra.mxu0 %v3291
      %v3603 = vpop.f32.mrf.mxu0
      %v3604 = vadd.f32 %v3545, %v3603
      %v3605 = vpop.f32.mrf.mxu0
      %v3606 = vadd.f32 %v3547, %v3605
      %3607 = vdwg.mxu0
      %3608 = vmatpush.bf16.msra.mxu0 %v3465
      %3609 = vmatpush.bf16.msra.mxu0 %v3464
      %3610 = vmatpush.bf16.msra.mxu0 %v3463
      %3611 = vmatpush.bf16.msra.mxu0 %v3462
      %3612 = vmatpush.bf16.msra.mxu0 %v3461
      %3613 = vmatpush.bf16.msra.mxu0 %v3460
      %3614 = vmatpush.bf16.msra.mxu0 %v3459
      %3615 = vmatpush.bf16.msra.mxu0 %v3458
      %3616 = vmatmul.bf16.gmra.mxu0 %v2474
      %v3617 = vpop.f32.mrf.mxu0
      %v3618 = vadd.f32 %v3559, %v3617
      %v3619 = vpop.f32.mrf.mxu0
      %v3620 = vadd.f32 %v3561, %v3619
      %3621 = vmatmul.bf16.gmra.mxu0 %v2477
      %v3622 = vpop.f32.mrf.mxu0
      %v3623 = vadd.f32 %v3564, %v3622
      %v3624 = vpop.f32.mrf.mxu0
      %v3625 = vadd.f32 %v3566, %v3624
      %3626 = vmatmul.bf16.gmra.mxu0 %v2480
      %v3627 = vpop.f32.mrf.mxu0
      %v3628 = vadd.f32 %v3569, %v3627
      %v3629 = vpop.f32.mrf.mxu0
      %v3630 = vadd.f32 %v3571, %v3629
      %3631 = vmatmul.bf16.gmra.mxu0 %v2483
      %v3632 = vpop.f32.mrf.mxu0
      %v3633 = vadd.f32 %v3574, %v3632
      %v3634 = vpop.f32.mrf.mxu0
      %v3635 = vadd.f32 %v3576, %v3634
      %3636 = vmatmul.bf16.gmra.mxu0 %v2486
      %v3637 = vpop.f32.mrf.mxu0
      %v3638 = vadd.f32 %v3579, %v3637
      %v3639 = vpop.f32.mrf.mxu0
      %v3640 = vadd.f32 %v3581, %v3639
      %3641 = vmatmul.bf16.gmra.mxu0 %v2489
      %v3642 = vpop.f32.mrf.mxu0
      %v3643 = vadd.f32 %v3584, %v3642
      %v3644 = vpop.f32.mrf.mxu0
      %v3645 = vadd.f32 %v3586, %v3644
      %3646 = vmatmul.bf16.gmra.mxu0 %v2492
      %v3647 = vpop.f32.mrf.mxu0
      %v3648 = vadd.f32 %v3589, %v3647
      %v3649 = vpop.f32.mrf.mxu0
      %v3650 = vadd.f32 %v3591, %v3649
      %3651 = vmatmul.bf16.gmra.mxu0 %v2495
      %v3652 = vpop.f32.mrf.mxu0
      %v3653 = vadd.f32 %v3594, %v3652
      %v3654 = vpop.f32.mrf.mxu0
      %v3655 = vadd.f32 %v3596, %v3654
      %3656 = vmatmul.bf16.gmra.mxu0 %v2578
      %v3657 = vpop.f32.mrf.mxu0
      %v3658 = vadd.f32 %v3599, %v3657
      %v3659 = vpop.f32.mrf.mxu0
      %v3660 = vadd.f32 %v3601, %v3659
      %3661 = vmatmul.bf16.gmra.mxu0 %v3295
      %v3662 = vpop.f32.mrf.mxu0
      %v3663 = vadd.f32 %v3604, %v3662
      %v3664 = vpop.f32.mrf.mxu0
      %v3665 = vadd.f32 %v3606, %v3664
      %3666 = vdwg.mxu0
      %v3667 = vadd.f32 %v3222, %v3618
      %v3668 = vadd.f32 %v3224, %v3620
      %v3669 = vadd.f32 %v3227, %v3623
      %v3670 = vadd.f32 %v3229, %v3625
      %v3671 = vadd.f32 %v3232, %v3628
      %v3672 = vadd.f32 %v3234, %v3630
      %v3673 = vadd.f32 %v3237, %v3633
      %v3674 = vadd.f32 %v3239, %v3635
      %v3675 = vadd.f32 %v3242, %v3638
      %v3676 = vadd.f32 %v3244, %v3640
      %v3677 = vadd.f32 %v3247, %v3643
      %v3678 = vadd.f32 %v3249, %v3645
      %v3679 = vadd.f32 %v3252, %v3648
      %v3680 = vadd.f32 %v3254, %v3650
      %v3681 = vadd.f32 %v3257, %v3653
      %v3682 = vadd.f32 %v3259, %v3655
      %v3683 = vadd.f32 %v3262, %v3658
      %v3684 = vadd.f32 %v3264, %v3660
      %v3685 = vadd.f32 %v3267, %v3663
      %v3686 = vadd.f32 %v3269, %v3665
      %v3688 = vperm.slane %v2245, 0
      %v3690 = vadd.f32 %v3667, %v3688
      %v3691 = vadd.f32 %v3668, %v3688
      %v3692 = vadd.f32 %v3669, %v3688
      %v3693 = vadd.f32 %v3670, %v3688
      %v3694 = vadd.f32 %v3671, %v3688
      %v3695 = vadd.f32 %v3672, %v3688
      %v3696 = vadd.f32 %v3673, %v3688
      %v3697 = vadd.f32 %v3674, %v3688
      %v3698 = vadd.f32 %v3675, %v3688
      %v3699 = vadd.f32 %v3676, %v3688
      %v3700 = vadd.f32 %v3677, %v3688
      %v3701 = vadd.f32 %v3678, %v3688
      %v3702 = vadd.f32 %v3679, %v3688
      %v3703 = vadd.f32 %v3680, %v3688
      %v3704 = vadd.f32 %v3681, %v3688
      %v3705 = vadd.f32 %v3682, %v3688
      %v3706 = vadd.f32 %v3683, %v3688
      %v3707 = vadd.f32 %v3684, %v3688
      %v3708 = vadd.f32 %v3685, %v3688
      %v3709 = vadd.f32 %v3686, %v3688
      %v3710 = vmax.f32 %v3690, 0.0
      %v3711 = vmax.f32 %v3691, 0.0
      %v3712 = vmax.f32 %v3692, 0.0
      %v3713 = vmax.f32 %v3693, 0.0
      %v3714 = vmax.f32 %v3694, 0.0
      %v3715 = vmax.f32 %v3695, 0.0
      %v3716 = vmax.f32 %v3696, 0.0
      %v3717 = vmax.f32 %v3697, 0.0
      %v3718 = vmax.f32 %v3698, 0.0
      %v3719 = vmax.f32 %v3699, 0.0
      %v3720 = vmax.f32 %v3700, 0.0
      %v3721 = vmax.f32 %v3701, 0.0
      %v3722 = vmax.f32 %v3702, 0.0
      %v3723 = vmax.f32 %v3703, 0.0
      %v3724 = vmax.f32 %v3704, 0.0
      %v3725 = vmax.f32 %v3705, 0.0
      %v3726 = vmax.f32 %v3706, 0.0
      %v3727 = vmax.f32 %v3707, 0.0
      %v3728 = vmax.f32 %v3708, 0.0
      %v3729 = vmax.f32 %v3709, 0.0
      %3730 = vst [vmem:[#allocation3 + $0x8] sm:$0xff] %v3710
      %3731 = vst [vmem:[#allocation3 + $0x10] sm:$0xff] %v3711
      %3732 = vst [vmem:[#allocation3 + $0x28] sm:$0xff] %v3712
      %3733 = vst [vmem:[#allocation3 + $0x30] sm:$0xff] %v3713
      %3734 = vst [vmem:[#allocation3 + $0x48] sm:$0xff] %v3714
      %3735 = vst [vmem:[#allocation3 + $0x50] sm:$0xff] %v3715
      %3736 = vst [vmem:[#allocation3 + $0x68] sm:$0xff] %v3716
      %3737 = vst [vmem:[#allocation3 + $0x70] sm:$0xff] %v3717
      %3738 = vst [vmem:[#allocation3 + $0x88] sm:$0xff] %v3718
      %3739 = vst [vmem:[#allocation3 + $0x90] sm:$0xff] %v3719
      %3740 = vst [vmem:[#allocation3 + $0xa8] sm:$0xff] %v3720
      %3741 = vst [vmem:[#allocation3 + $0xb0] sm:$0xff] %v3721
      %3742 = vst [vmem:[#allocation3 + $0xc8] sm:$0xff] %v3722
      %3743 = vst [vmem:[#allocation3 + $0xd0] sm:$0xff] %v3723
      %3744 = vst [vmem:[#allocation3 + $0xe8] sm:$0xff] %v3724
      %3745 = vst [vmem:[#allocation3 + $0xf0] sm:$0xff] %v3725
      %3746 = vst [vmem:[#allocation3 + $0x108] sm:$0xff] %v3726
      %3747 = vst [vmem:[#allocation3 + $0x110] sm:$0xff] %v3727
      %3748 = vst [vmem:[#allocation3 + $0x128] sm:$0xff] %v3728
      %3749 = vst [vmem:[#allocation3 + $0x130] sm:$0xff] %v3729
      // Predicated region
      $region57: #{resnet_bottleneck_forward.2} parent=47 // pred_check
        %p3750 = pneg %p2148
      $region58: #{resnet_bottleneck_forward.2} parent=47 // pred_check_branch
        %3752 = sbr.rel (%p3750) target = $region60
      $region59: #{resnet_bottleneck_forward.2} parent=47 // pred_region
        %3753 = vst [vmem:[#allocation3] sm:$0xff] 0.0
        %3754 = vst [vmem:[#allocation3 + $0x8] sm:$0xff] 0.0
        %3755 = vst [vmem:[#allocation3 + $0x10] sm:$0xff] 0.0
        %3756 = vst [vmem:[#allocation3 + $0x18] sm:$0xff] 0.0
      $region60: #{resnet_bottleneck_forward.2} parent=47 // pred_fallthru
        _
      // Predicated region
      $region61: #{resnet_bottleneck_forward.2} parent=47 // pred_check
        %p3757 = pneg %p2160
      $region62: #{resnet_bottleneck_forward.2} parent=47 // pred_check_branch
        %3759 = sbr.rel (%p3757) target = $region64
      $region63: #{resnet_bottleneck_forward.2} parent=47 // pred_region
        %s3760 = scalar_lea.vmem [#allocation3], 288
        %3761 = vst [vmem:[%s3760] sm:$0xff] 0.0
        %3762 = vst [vmem:[%s3760 + $0x8] sm:$0xff] 0.0
        %3763 = vst [vmem:[%s3760 + $0x10] sm:$0xff] 0.0
        %3764 = vst [vmem:[%s3760 + $0x18] sm:$0xff] 0.0
      $region64: #{resnet_bottleneck_forward.2} parent=47 // pred_fallthru
        _
      %v3765 = vld [vmem:[#allocation3 + $0x7] sm:$0xff]
      %v3766 = vld [vmem:[#allocation3 + $0xf] sm:$0xff]
      %v3767 = vld [vmem:[#allocation3 + $0x17] sm:$0x3]
      %v3768 = vld [vmem:[#allocation3 + $0x27] sm:$0xff]
      %v3769 = vld [vmem:[#allocation3 + $0x2f] sm:$0xff]
      %v3770 = vld [vmem:[#allocation3 + $0x37] sm:$0x3]
      %v3771 = vld [vmem:[#allocation3 + $0x47] sm:$0xff]
      %v3772 = vld [vmem:[#allocation3 + $0x4f] sm:$0xff]
      %v3773 = vld [vmem:[#allocation3 + $0x57] sm:$0x3]
      %v3774 = vld [vmem:[#allocation3 + $0x67] sm:$0xff]
      %v3775 = vld [vmem:[#allocation3 + $0x6f] sm:$0xff]
      %v3776 = vld [vmem:[#allocation3 + $0x77] sm:$0x3]
      %v3777 = vld [vmem:[#allocation3 + $0x87] sm:$0xff]
      %v3778 = vld [vmem:[#allocation3 + $0x8f] sm:$0xff]
      %v3779 = vld [vmem:[#allocation3 + $0x97] sm:$0x3]
      %v3780 = vld [vmem:[#allocation3 + $0xa7] sm:$0xff]
      %v3781 = vld [vmem:[#allocation3 + $0xaf] sm:$0xff]
      %v3782 = vld [vmem:[#allocation3 + $0xb7] sm:$0x3]
      %v3783 = vld [vmem:[#allocation3 + $0xc7] sm:$0xff]
      %v3784 = vld [vmem:[#allocation3 + $0xcf] sm:$0xff]
      %v3785 = vld [vmem:[#allocation3 + $0xd7] sm:$0x3]
      %v3786 = vld [vmem:[#allocation3 + $0xe7] sm:$0xff]
      %v3787 = vld [vmem:[#allocation3 + $0xef] sm:$0xff]
      %v3788 = vld [vmem:[#allocation3 + $0xf7] sm:$0x3]
      %v3789 = vld [vmem:[#allocation3 + $0x107] sm:$0xff]
      %v3790 = vld [vmem:[#allocation3 + $0x10f] sm:$0xff]
      %v3791 = vld [vmem:[#allocation3 + $0x117] sm:$0x3]
      %v3792 = vld [vmem:[#allocation3 + $0x127] sm:$0xff]
      %v3793 = vld [vmem:[#allocation3 + $0x12f] sm:$0xff]
      %v3794 = vld [vmem:[#allocation3 + $0x137] sm:$0x3]
      %v3795 = vpack.c.bf16 %v3765, %v3765
      %v3796 = vpack.c.bf16 %v3766, %v3766
      %v3797 = vpack.c.bf16 %v3767, %v3767
      %v3798 = vpack.c.bf16 %v3768, %v3768
      %v3799 = vpack.c.bf16 %v3769, %v3769
      %v3800 = vpack.c.bf16 %v3770, %v3770
      %v3801 = vpack.c.bf16 %v3771, %v3771
      %v3802 = vpack.c.bf16 %v3772, %v3772
      %v3803 = vpack.c.bf16 %v3773, %v3773
      %v3804 = vpack.c.bf16 %v3774, %v3774
      %v3805 = vpack.c.bf16 %v3775, %v3775
      %v3806 = vpack.c.bf16 %v3776, %v3776
      %v3807 = vpack.c.bf16 %v3777, %v3777
      %v3808 = vpack.c.bf16 %v3778, %v3778
      %v3809 = vpack.c.bf16 %v3779, %v3779
      %v3810 = vpack.c.bf16 %v3780, %v3780
      %v3811 = vpack.c.bf16 %v3781, %v3781
      %v3812 = vpack.c.bf16 %v3782, %v3782
      %v3813 = vpack.c.bf16 %v3783, %v3783
      %v3814 = vpack.c.bf16 %v3784, %v3784
      %v3815 = vpack.c.bf16 %v3785, %v3785
      %v3816 = vpack.c.bf16 %v3786, %v3786
      %v3817 = vpack.c.bf16 %v3787, %v3787
      %v3818 = vpack.c.bf16 %v3788, %v3788
      %v3819 = vpack.c.bf16 %v3789, %v3789
      %v3820 = vpack.c.bf16 %v3790, %v3790
      %v3821 = vpack.c.bf16 %v3791, %v3791
      %v3822 = vpack.c.bf16 %v3792, %v3792
      %v3823 = vpack.c.bf16 %v3793, %v3793
      %v3824 = vpack.c.bf16 %v3794, %v3794
      %v3825 = vld [vmem:[%s6] sm:$0x1]
      %v3842 = vunpack.c.l.b16 %v3795
      %v3843 = vunpack.c.l.b16 %v3796
      %v3844 = vunpack.c.l.b16 %v3798
      %v3845 = vunpack.c.l.b16 %v3799
      %v3846 = vunpack.c.l.b16 %v3801
      %v3847 = vunpack.c.l.b16 %v3802
      %v3848 = vunpack.c.l.b16 %v3804
      %v3849 = vunpack.c.l.b16 %v3805
      %v3850 = vunpack.c.l.b16 %v3807
      %v3851 = vunpack.c.l.b16 %v3808
      %v3852 = vunpack.c.l.b16 %v3810
      %v3853 = vunpack.c.l.b16 %v3811
      %v3854 = vunpack.c.l.b16 %v3813
      %v3855 = vunpack.c.l.b16 %v3814
      %v3856 = vunpack.c.l.b16 %v3816
      %v3857 = vunpack.c.l.b16 %v3817
      %v3858 = vpack.c.b16 %v3843, %v3842
      %v3859 = vpack.c.b16 %v3845, %v3844
      %v3860 = vpack.c.b16 %v3847, %v3846
      %v3861 = vpack.c.b16 %v3849, %v3848
      %v3862 = vpack.c.b16 %v3851, %v3850
      %v3863 = vpack.c.b16 %v3853, %v3852
      %v3864 = vpack.c.b16 %v3855, %v3854
      %v3865 = vpack.c.b16 %v3857, %v3856
      %v3882 = vunpack.c.l.b16 %v3797
      %v3883 = vunpack.c.l.b16 %v3800
      %v3884 = vunpack.c.l.b16 %v3803
      %v3885 = vunpack.c.l.b16 %v3806
      %v3886 = vunpack.c.l.b16 %v3809
      %v3887 = vunpack.c.l.b16 %v3812
      %v3888 = vunpack.c.l.b16 %v3815
      %v3889 = vunpack.c.l.b16 %v3818
      %v3890 = vpack.c.b16 %v3882, %v3882
      %v3891 = vpack.c.b16 %v3883, %v3883
      %v3892 = vpack.c.b16 %v3884, %v3884
      %v3893 = vpack.c.b16 %v3885, %v3885
      %v3894 = vpack.c.b16 %v3886, %v3886
      %v3895 = vpack.c.b16 %v3887, %v3887
      %v3896 = vpack.c.b16 %v3888, %v3888
      %v3897 = vpack.c.b16 %v3889, %v3889
      %v3899 = vshrl.u32 %v3858, 16
      %v3901 = vshll.u32 %v3858, 16
      %v3903 = vrot.slane %v3901, 1
      %v3904 = vor.u32 %v3899, %v3903
      %v3906 = vshll.u32 %v3890, 16
      %v3908 = vrot.slane %v3906, 1
      %v3909 = vsel %vm592, %v3904, %v3908
      %v3911 = vshrl.u32 %v3859, 16
      %v3913 = vshll.u32 %v3859, 16
      %v3915 = vrot.slane %v3913, 1
      %v3916 = vor.u32 %v3911, %v3915
      %v3918 = vshll.u32 %v3891, 16
      %v3920 = vrot.slane %v3918, 1
      %v3921 = vsel %vm592, %v3916, %v3920
      %v3923 = vshrl.u32 %v3860, 16
      %v3925 = vshll.u32 %v3860, 16
      %v3927 = vrot.slane %v3925, 1
      %v3928 = vor.u32 %v3923, %v3927
      %v3930 = vshll.u32 %v3892, 16
      %v3932 = vrot.slane %v3930, 1
      %v3933 = vsel %vm592, %v3928, %v3932
      %v3935 = vshrl.u32 %v3861, 16
      %v3937 = vshll.u32 %v3861, 16
      %v3939 = vrot.slane %v3937, 1
      %v3940 = vor.u32 %v3935, %v3939
      %v3942 = vshll.u32 %v3893, 16
      %v3944 = vrot.slane %v3942, 1
      %v3945 = vsel %vm592, %v3940, %v3944
      %v3947 = vshrl.u32 %v3862, 16
      %v3949 = vshll.u32 %v3862, 16
      %v3951 = vrot.slane %v3949, 1
      %v3952 = vor.u32 %v3947, %v3951
      %v3954 = vshll.u32 %v3894, 16
      %v3956 = vrot.slane %v3954, 1
      %v3957 = vsel %vm592, %v3952, %v3956
      %v3959 = vshrl.u32 %v3863, 16
      %v3961 = vshll.u32 %v3863, 16
      %v3963 = vrot.slane %v3961, 1
      %v3964 = vor.u32 %v3959, %v3963
      %v3966 = vshll.u32 %v3895, 16
      %v3968 = vrot.slane %v3966, 1
      %v3969 = vsel %vm592, %v3964, %v3968
      %v3971 = vshrl.u32 %v3864, 16
      %v3973 = vshll.u32 %v3864, 16
      %v3975 = vrot.slane %v3973, 1
      %v3976 = vor.u32 %v3971, %v3975
      %v3978 = vshll.u32 %v3896, 16
      %v3980 = vrot.slane %v3978, 1
      %v3981 = vsel %vm592, %v3976, %v3980
      %v3983 = vshrl.u32 %v3865, 16
      %v3985 = vshll.u32 %v3865, 16
      %v3987 = vrot.slane %v3985, 1
      %v3988 = vor.u32 %v3983, %v3987
      %v3990 = vshll.u32 %v3897, 16
      %v3992 = vrot.slane %v3990, 1
      %v3993 = vsel %vm592, %v3988, %v3992
      %v4002 = vrot.slane %v3858, 1
      %v4003 = vrot.slane %v3890, 1
      %v4004 = vsel %vm749, %v4002, %v4003
      %v4005 = vrot.slane %v3859, 1
      %v4006 = vrot.slane %v3891, 1
      %v4007 = vsel %vm749, %v4005, %v4006
      %v4008 = vrot.slane %v3860, 1
      %v4009 = vrot.slane %v3892, 1
      %v4010 = vsel %vm749, %v4008, %v4009
      %v4011 = vrot.slane %v3861, 1
      %v4012 = vrot.slane %v3893, 1
      %v4013 = vsel %vm749, %v4011, %v4012
      %v4014 = vrot.slane %v3862, 1
      %v4015 = vrot.slane %v3894, 1
      %v4016 = vsel %vm749, %v4014, %v4015
      %v4017 = vrot.slane %v3863, 1
      %v4018 = vrot.slane %v3895, 1
      %v4019 = vsel %vm749, %v4017, %v4018
      %v4020 = vrot.slane %v3864, 1
      %v4021 = vrot.slane %v3896, 1
      %v4022 = vsel %vm749, %v4020, %v4021
      %v4023 = vrot.slane %v3865, 1
      %v4024 = vrot.slane %v3897, 1
      %v4025 = vsel %vm749, %v4023, %v4024
      %v4034 = vld [vmem:[%s5] sm:$0xf]
      %v4035 = vld [vmem:[%s5 + $0x4] sm:$0xf]
      %v4036 = vld [vmem:[%s5 + $0x8] sm:$0xf]
      %v4037 = vld [vmem:[%s5 + $0xc] sm:$0xf]
      %v4038 = vld [vmem:[%s5 + $0x10] sm:$0xf]
      %v4039 = vld [vmem:[%s5 + $0x14] sm:$0xf]
      %v4040 = vld [vmem:[%s5 + $0x18] sm:$0xf]
      %v4041 = vld [vmem:[%s5 + $0x1c] sm:$0xf]
      %v4042 = vld [vmem:[%s5 + $0x20] sm:$0xf]
      %v4043 = vld [vmem:[%s5 + $0x24] sm:$0xf]
      %v4044 = vld [vmem:[%s5 + $0x28] sm:$0xf]
      %v4045 = vld [vmem:[%s5 + $0x2c] sm:$0xf]
      %v4046 = vld [vmem:[%s5 + $0x30] sm:$0xf]
      %v4047 = vld [vmem:[%s5 + $0x34] sm:$0xf]
      %v4048 = vld [vmem:[%s5 + $0x38] sm:$0xf]
      %v4049 = vld [vmem:[%s5 + $0x3c] sm:$0xf]
      %v4050 = vld [vmem:[%s5 + $0x40] sm:$0xf]
      %v4051 = vld [vmem:[%s5 + $0x44] sm:$0xf]
      %v4052 = vld [vmem:[%s5 + $0x48] sm:$0xf]
      %v4053 = vld [vmem:[%s5 + $0x4c] sm:$0xf]
      %v4054 = vld [vmem:[%s5 + $0x50] sm:$0xf]
      %v4055 = vld [vmem:[%s5 + $0x54] sm:$0xf]
      %v4056 = vld [vmem:[%s5 + $0x58] sm:$0xf]
      %v4057 = vld [vmem:[%s5 + $0x5c] sm:$0xf]
      %v4058 = vld [vmem:[%s5 + $0x60] sm:$0xf]
      %v4059 = vld [vmem:[%s5 + $0x64] sm:$0xf]
      %v4060 = vld [vmem:[%s5 + $0x68] sm:$0xf]
      %v4061 = vld [vmem:[%s5 + $0x6c] sm:$0xf]
      %v4062 = vld [vmem:[%s5 + $0x70] sm:$0xf]
      %v4063 = vld [vmem:[%s5 + $0x74] sm:$0xf]
      %v4064 = vld [vmem:[%s5 + $0x78] sm:$0xf]
      %v4065 = vld [vmem:[%s5 + $0x7c] sm:$0xf]
      %v4066 = vld [vmem:[%s5 + $0x80] sm:$0xf]
      %v4067 = vld [vmem:[%s5 + $0x84] sm:$0xf]
      %v4068 = vld [vmem:[%s5 + $0x88] sm:$0xf]
      %v4069 = vld [vmem:[%s5 + $0x8c] sm:$0xf]
      %v4070 = vld [vmem:[%s5 + $0x90] sm:$0xf]
      %v4071 = vld [vmem:[%s5 + $0x94] sm:$0xf]
      %v4072 = vld [vmem:[%s5 + $0x98] sm:$0xf]
      %v4073 = vld [vmem:[%s5 + $0x9c] sm:$0xf]
      %v4074 = vld [vmem:[%s5 + $0xa0] sm:$0xf]
      %v4075 = vld [vmem:[%s5 + $0xa4] sm:$0xf]
      %v4076 = vld [vmem:[%s5 + $0xa8] sm:$0xf]
      %v4077 = vld [vmem:[%s5 + $0xac] sm:$0xf]
      %v4078 = vld [vmem:[%s5 + $0xb0] sm:$0xf]
      %v4079 = vld [vmem:[%s5 + $0xb4] sm:$0xf]
      %v4080 = vld [vmem:[%s5 + $0xb8] sm:$0xf]
      %v4081 = vld [vmem:[%s5 + $0xbc] sm:$0xf]
      %v4084 = vunpack.c.l.b16 %v3819
      %v4085 = vunpack.c.l.b16 %v3820
      %v4086 = vpack.c.b16 %v4085, %v4084
      %v4089 = vunpack.c.l.b16 %v3821
      %v4090 = vpack.c.b16 %v4089, %v4089
      %v4092 = vshrl.u32 %v4086, 16
      %v4094 = vshll.u32 %v4086, 16
      %v4096 = vrot.slane %v4094, 1
      %v4097 = vor.u32 %v4092, %v4096
      %v4099 = vshll.u32 %v4090, 16
      %v4101 = vrot.slane %v4099, 1
      %v4102 = vsel %vm592, %v4097, %v4101
      %v4104 = vrot.slane %v4086, 1
      %v4105 = vrot.slane %v4090, 1
      %v4106 = vsel %vm749, %v4104, %v4105
      %s4108 = scalar_lea.vmem %s5, 192
      %v4109 = vld [vmem:[%s4108] sm:$0xf]
      %v4110 = vld [vmem:[%s4108 + $0x4] sm:$0xf]
      %v4111 = vld [vmem:[%s4108 + $0x8] sm:$0xf]
      %v4112 = vld [vmem:[%s4108 + $0xc] sm:$0xf]
      %v4113 = vld [vmem:[%s4108 + $0x10] sm:$0xf]
      %v4114 = vld [vmem:[%s4108 + $0x14] sm:$0xf]
      %v4115 = vld [vmem:[%s4108 + $0x18] sm:$0xf]
      %v4116 = vld [vmem:[%s4108 + $0x1c] sm:$0xf]
      %v4117 = vld [vmem:[%s4108 + $0x20] sm:$0xf]
      %v4118 = vld [vmem:[%s4108 + $0x24] sm:$0xf]
      %v4119 = vld [vmem:[%s4108 + $0x28] sm:$0xf]
      %v4120 = vld [vmem:[%s4108 + $0x2c] sm:$0xf]
      %v4121 = vld [vmem:[%s4108 + $0x30] sm:$0xf]
      %v4122 = vld [vmem:[%s4108 + $0x34] sm:$0xf]
      %v4123 = vld [vmem:[%s4108 + $0x38] sm:$0xf]
      %v4124 = vld [vmem:[%s4108 + $0x3c] sm:$0xf]
      %v4125 = vld [vmem:[%s4108 + $0x40] sm:$0xf]
      %v4126 = vld [vmem:[%s4108 + $0x44] sm:$0xf]
      %v4127 = vld [vmem:[%s4108 + $0x48] sm:$0xf]
      %v4128 = vld [vmem:[%s4108 + $0x4c] sm:$0xf]
      %v4129 = vld [vmem:[%s4108 + $0x50] sm:$0xf]
      %v4130 = vld [vmem:[%s4108 + $0x54] sm:$0xf]
      %v4131 = vld [vmem:[%s4108 + $0x58] sm:$0xf]
      %v4132 = vld [vmem:[%s4108 + $0x5c] sm:$0xf]
      %v4133 = vld [vmem:[%s4108 + $0x60] sm:$0xf]
      %v4134 = vld [vmem:[%s4108 + $0x64] sm:$0xf]
      %v4135 = vld [vmem:[%s4108 + $0x68] sm:$0xf]
      %v4136 = vld [vmem:[%s4108 + $0x6c] sm:$0xf]
      %v4137 = vld [vmem:[%s4108 + $0x70] sm:$0xf]
      %v4138 = vld [vmem:[%s4108 + $0x74] sm:$0xf]
      %v4139 = vld [vmem:[%s4108 + $0x78] sm:$0xf]
      %v4140 = vld [vmem:[%s4108 + $0x7c] sm:$0xf]
      %v4141 = vld [vmem:[%s4108 + $0x80] sm:$0xf]
      %v4142 = vld [vmem:[%s4108 + $0x84] sm:$0xf]
      %v4143 = vld [vmem:[%s4108 + $0x88] sm:$0xf]
      %v4144 = vld [vmem:[%s4108 + $0x8c] sm:$0xf]
      %v4145 = vld [vmem:[%s4108 + $0x90] sm:$0xf]
      %v4146 = vld [vmem:[%s4108 + $0x94] sm:$0xf]
      %v4147 = vld [vmem:[%s4108 + $0x98] sm:$0xf]
      %v4148 = vld [vmem:[%s4108 + $0x9c] sm:$0xf]
      %v4149 = vld [vmem:[%s4108 + $0xa0] sm:$0xf]
      %v4150 = vld [vmem:[%s4108 + $0xa4] sm:$0xf]
      %v4151 = vld [vmem:[%s4108 + $0xa8] sm:$0xf]
      %v4152 = vld [vmem:[%s4108 + $0xac] sm:$0xf]
      %v4153 = vld [vmem:[%s4108 + $0xb0] sm:$0xf]
      %v4154 = vld [vmem:[%s4108 + $0xb4] sm:$0xf]
      %v4155 = vld [vmem:[%s4108 + $0xb8] sm:$0xf]
      %v4156 = vld [vmem:[%s4108 + $0xbc] sm:$0xf]
      %v4205 = vunpack.c.l.b16 %v4109
      %v4206 = vunpack.c.l.b16 %v4110
      %v4207 = vunpack.c.l.b16 %v4111
      %v4208 = vunpack.c.l.b16 %v4112
      %v4209 = vunpack.c.l.b16 %v4113
      %v4210 = vunpack.c.l.b16 %v4114
      %v4211 = vunpack.c.l.b16 %v4115
      %v4212 = vunpack.c.l.b16 %v4116
      %v4213 = vunpack.c.l.b16 %v4117
      %v4214 = vunpack.c.l.b16 %v4118
      %v4215 = vunpack.c.l.b16 %v4119
      %v4216 = vunpack.c.l.b16 %v4120
      %v4217 = vunpack.c.l.b16 %v4121
      %v4218 = vunpack.c.l.b16 %v4122
      %v4219 = vunpack.c.l.b16 %v4123
      %v4220 = vunpack.c.l.b16 %v4124
      %v4221 = vunpack.c.l.b16 %v4125
      %v4222 = vunpack.c.l.b16 %v4126
      %v4223 = vunpack.c.l.b16 %v4127
      %v4224 = vunpack.c.l.b16 %v4128
      %v4225 = vunpack.c.l.b16 %v4129
      %v4226 = vunpack.c.l.b16 %v4130
      %v4227 = vunpack.c.l.b16 %v4131
      %v4228 = vunpack.c.l.b16 %v4132
      %v4229 = vunpack.c.l.b16 %v4133
      %v4230 = vunpack.c.l.b16 %v4134
      %v4231 = vunpack.c.l.b16 %v4135
      %v4232 = vunpack.c.l.b16 %v4136
      %v4233 = vunpack.c.l.b16 %v4137
      %v4234 = vunpack.c.l.b16 %v4138
      %v4235 = vunpack.c.l.b16 %v4139
      %v4236 = vunpack.c.l.b16 %v4140
      %v4237 = vunpack.c.l.b16 %v4141
      %v4238 = vunpack.c.l.b16 %v4142
      %v4239 = vunpack.c.l.b16 %v4143
      %v4240 = vunpack.c.l.b16 %v4144
      %v4241 = vunpack.c.l.b16 %v4145
      %v4242 = vunpack.c.l.b16 %v4146
      %v4243 = vunpack.c.l.b16 %v4147
      %v4244 = vunpack.c.l.b16 %v4148
      %v4245 = vunpack.c.l.b16 %v4149
      %v4246 = vunpack.c.l.b16 %v4150
      %v4247 = vunpack.c.l.b16 %v4151
      %v4248 = vunpack.c.l.b16 %v4152
      %v4249 = vunpack.c.l.b16 %v4153
      %v4250 = vunpack.c.l.b16 %v4154
      %v4251 = vunpack.c.l.b16 %v4155
      %v4252 = vunpack.c.l.b16 %v4156
      %v4253 = vpack.c.b16 %v4206, %v4205
      %v4254 = vpack.c.b16 %v4208, %v4207
      %v4255 = vpack.c.b16 %v4210, %v4209
      %v4256 = vpack.c.b16 %v4212, %v4211
      %v4257 = vpack.c.b16 %v4214, %v4213
      %v4258 = vpack.c.b16 %v4216, %v4215
      %v4259 = vpack.c.b16 %v4218, %v4217
      %v4260 = vpack.c.b16 %v4220, %v4219
      %v4261 = vpack.c.b16 %v4222, %v4221
      %v4262 = vpack.c.b16 %v4224, %v4223
      %v4263 = vpack.c.b16 %v4226, %v4225
      %v4264 = vpack.c.b16 %v4228, %v4227
      %v4265 = vpack.c.b16 %v4230, %v4229
      %v4266 = vpack.c.b16 %v4232, %v4231
      %v4267 = vpack.c.b16 %v4234, %v4233
      %v4268 = vpack.c.b16 %v4236, %v4235
      %v4269 = vpack.c.b16 %v4238, %v4237
      %v4270 = vpack.c.b16 %v4240, %v4239
      %v4271 = vpack.c.b16 %v4242, %v4241
      %v4272 = vpack.c.b16 %v4244, %v4243
      %v4273 = vpack.c.b16 %v4246, %v4245
      %v4274 = vpack.c.b16 %v4248, %v4247
      %v4275 = vpack.c.b16 %v4250, %v4249
      %v4276 = vpack.c.b16 %v4252, %v4251
      %4301 = vmatpush.bf16.msra.mxu0 %v4260
      %4302 = vmatpush.bf16.msra.mxu0 %v4259
      %4303 = vmatpush.bf16.msra.mxu0 %v4258
      %4304 = vmatpush.bf16.msra.mxu0 %v4257
      %4305 = vmatpush.bf16.msra.mxu0 %v4256
      %4306 = vmatpush.bf16.msra.mxu0 %v4255
      %4307 = vmatpush.bf16.msra.mxu0 %v4254
      %4308 = vmatpush.bf16.msra.mxu0 %v4253
      %4309 = vmatmul.bf16.gmra.mxu0 %v3859
      %v4310 = vpop.f32.mrf.mxu0
      %v4311 = vadd.f32 0.0, %v4310
      %v4312 = vpop.f32.mrf.mxu0
      %v4313 = vadd.f32 0.0, %v4312
      %4314 = vmatmul.bf16.gmra.mxu0 %v3860
      %v4315 = vpop.f32.mrf.mxu0
      %v4316 = vadd.f32 0.0, %v4315
      %v4317 = vpop.f32.mrf.mxu0
      %v4318 = vadd.f32 0.0, %v4317
      %4319 = vmatmul.bf16.gmra.mxu0 %v3861
      %v4320 = vpop.f32.mrf.mxu0
      %v4321 = vadd.f32 0.0, %v4320
      %v4322 = vpop.f32.mrf.mxu0
      %v4323 = vadd.f32 0.0, %v4322
      %4324 = vmatmul.bf16.gmra.mxu0 %v3862
      %v4325 = vpop.f32.mrf.mxu0
      %v4326 = vadd.f32 0.0, %v4325
      %v4327 = vpop.f32.mrf.mxu0
      %v4328 = vadd.f32 0.0, %v4327
      %4329 = vmatmul.bf16.gmra.mxu0 %v3863
      %v4330 = vpop.f32.mrf.mxu0
      %v4331 = vadd.f32 0.0, %v4330
      %v4332 = vpop.f32.mrf.mxu0
      %v4333 = vadd.f32 0.0, %v4332
      %4334 = vmatmul.bf16.gmra.mxu0 %v3864
      %v4335 = vpop.f32.mrf.mxu0
      %v4336 = vadd.f32 0.0, %v4335
      %v4337 = vpop.f32.mrf.mxu0
      %v4338 = vadd.f32 0.0, %v4337
      %4339 = vmatmul.bf16.gmra.mxu0 %v3865
      %v4340 = vpop.f32.mrf.mxu0
      %v4341 = vadd.f32 0.0, %v4340
      %v4342 = vpop.f32.mrf.mxu0
      %v4343 = vadd.f32 0.0, %v4342
      %4344 = vmatmul.bf16.gmra.mxu0 %v4086
      %v4345 = vpop.f32.mrf.mxu0
      %v4346 = vadd.f32 0.0, %v4345
      %v4347 = vpop.f32.mrf.mxu0
      %v4348 = vadd.f32 0.0, %v4347
      %4349 = vdwg.mxu0
      %4350 = vmatpush.bf16.msra.mxu0 %v4268
      %4351 = vmatpush.bf16.msra.mxu0 %v4267
      %4352 = vmatpush.bf16.msra.mxu0 %v4266
      %4353 = vmatpush.bf16.msra.mxu0 %v4265
      %4354 = vmatpush.bf16.msra.mxu0 %v4264
      %4355 = vmatpush.bf16.msra.mxu0 %v4263
      %4356 = vmatpush.bf16.msra.mxu0 %v4262
      %4357 = vmatpush.bf16.msra.mxu0 %v4261
      %4358 = vmatmul.bf16.gmra.mxu0 %v3921
      %v4359 = vpop.f32.mrf.mxu0
      %v4360 = vadd.f32 %v4311, %v4359
      %v4361 = vpop.f32.mrf.mxu0
      %v4362 = vadd.f32 %v4313, %v4361
      %4363 = vmatmul.bf16.gmra.mxu0 %v3933
      %v4364 = vpop.f32.mrf.mxu0
      %v4365 = vadd.f32 %v4316, %v4364
      %v4366 = vpop.f32.mrf.mxu0
      %v4367 = vadd.f32 %v4318, %v4366
      %4368 = vmatmul.bf16.gmra.mxu0 %v3945
      %v4369 = vpop.f32.mrf.mxu0
      %v4370 = vadd.f32 %v4321, %v4369
      %v4371 = vpop.f32.mrf.mxu0
      %v4372 = vadd.f32 %v4323, %v4371
      %4373 = vmatmul.bf16.gmra.mxu0 %v3957
      %v4374 = vpop.f32.mrf.mxu0
      %v4375 = vadd.f32 %v4326, %v4374
      %v4376 = vpop.f32.mrf.mxu0
      %v4377 = vadd.f32 %v4328, %v4376
      %4378 = vmatmul.bf16.gmra.mxu0 %v3969
      %v4379 = vpop.f32.mrf.mxu0
      %v4380 = vadd.f32 %v4331, %v4379
      %v4381 = vpop.f32.mrf.mxu0
      %v4382 = vadd.f32 %v4333, %v4381
      %4383 = vmatmul.bf16.gmra.mxu0 %v3981
      %v4384 = vpop.f32.mrf.mxu0
      %v4385 = vadd.f32 %v4336, %v4384
      %v4386 = vpop.f32.mrf.mxu0
      %v4387 = vadd.f32 %v4338, %v4386
      %4388 = vmatmul.bf16.gmra.mxu0 %v3993
      %v4389 = vpop.f32.mrf.mxu0
      %v4390 = vadd.f32 %v4341, %v4389
      %v4391 = vpop.f32.mrf.mxu0
      %v4392 = vadd.f32 %v4343, %v4391
      %4393 = vmatmul.bf16.gmra.mxu0 %v4102
      %v4394 = vpop.f32.mrf.mxu0
      %v4395 = vadd.f32 %v4346, %v4394
      %v4396 = vpop.f32.mrf.mxu0
      %v4397 = vadd.f32 %v4348, %v4396
      %4398 = vdwg.mxu0
      %4399 = vmatpush.bf16.msra.mxu0 %v4276
      %4400 = vmatpush.bf16.msra.mxu0 %v4275
      %4401 = vmatpush.bf16.msra.mxu0 %v4274
      %4402 = vmatpush.bf16.msra.mxu0 %v4273
      %4403 = vmatpush.bf16.msra.mxu0 %v4272
      %4404 = vmatpush.bf16.msra.mxu0 %v4271
      %4405 = vmatpush.bf16.msra.mxu0 %v4270
      %4406 = vmatpush.bf16.msra.mxu0 %v4269
      %4407 = vmatmul.bf16.gmra.mxu0 %v4007
      %v4408 = vpop.f32.mrf.mxu0
      %v4409 = vadd.f32 %v4360, %v4408
      %v4410 = vpop.f32.mrf.mxu0
      %v4411 = vadd.f32 %v4362, %v4410
      %4412 = vmatmul.bf16.gmra.mxu0 %v4010
      %v4413 = vpop.f32.mrf.mxu0
      %v4414 = vadd.f32 %v4365, %v4413
      %v4415 = vpop.f32.mrf.mxu0
      %v4416 = vadd.f32 %v4367, %v4415
      %4417 = vmatmul.bf16.gmra.mxu0 %v4013
      %v4418 = vpop.f32.mrf.mxu0
      %v4419 = vadd.f32 %v4370, %v4418
      %v4420 = vpop.f32.mrf.mxu0
      %v4421 = vadd.f32 %v4372, %v4420
      %4422 = vmatmul.bf16.gmra.mxu0 %v4016
      %v4423 = vpop.f32.mrf.mxu0
      %v4424 = vadd.f32 %v4375, %v4423
      %v4425 = vpop.f32.mrf.mxu0
      %v4426 = vadd.f32 %v4377, %v4425
      %4427 = vmatmul.bf16.gmra.mxu0 %v4019
      %v4428 = vpop.f32.mrf.mxu0
      %v4429 = vadd.f32 %v4380, %v4428
      %v4430 = vpop.f32.mrf.mxu0
      %v4431 = vadd.f32 %v4382, %v4430
      %4432 = vmatmul.bf16.gmra.mxu0 %v4022
      %v4433 = vpop.f32.mrf.mxu0
      %v4434 = vadd.f32 %v4385, %v4433
      %v4435 = vpop.f32.mrf.mxu0
      %v4436 = vadd.f32 %v4387, %v4435
      %4437 = vmatmul.bf16.gmra.mxu0 %v4025
      %v4438 = vpop.f32.mrf.mxu0
      %v4439 = vadd.f32 %v4390, %v4438
      %v4440 = vpop.f32.mrf.mxu0
      %v4441 = vadd.f32 %v4392, %v4440
      %4442 = vmatmul.bf16.gmra.mxu0 %v4106
      %v4443 = vpop.f32.mrf.mxu0
      %v4444 = vadd.f32 %v4395, %v4443
      %v4445 = vpop.f32.mrf.mxu0
      %v4446 = vadd.f32 %v4397, %v4445
      %4447 = vdwg.mxu0
      %v4496 = vunpack.c.l.b16 %v4034
      %v4497 = vunpack.c.l.b16 %v4035
      %v4498 = vunpack.c.l.b16 %v4036
      %v4499 = vunpack.c.l.b16 %v4037
      %v4500 = vunpack.c.l.b16 %v4038
      %v4501 = vunpack.c.l.b16 %v4039
      %v4502 = vunpack.c.l.b16 %v4040
      %v4503 = vunpack.c.l.b16 %v4041
      %v4504 = vunpack.c.l.b16 %v4042
      %v4505 = vunpack.c.l.b16 %v4043
      %v4506 = vunpack.c.l.b16 %v4044
      %v4507 = vunpack.c.l.b16 %v4045
      %v4508 = vunpack.c.l.b16 %v4046
      %v4509 = vunpack.c.l.b16 %v4047
      %v4510 = vunpack.c.l.b16 %v4048
      %v4511 = vunpack.c.l.b16 %v4049
      %v4512 = vunpack.c.l.b16 %v4050
      %v4513 = vunpack.c.l.b16 %v4051
      %v4514 = vunpack.c.l.b16 %v4052
      %v4515 = vunpack.c.l.b16 %v4053
      %v4516 = vunpack.c.l.b16 %v4054
      %v4517 = vunpack.c.l.b16 %v4055
      %v4518 = vunpack.c.l.b16 %v4056
      %v4519 = vunpack.c.l.b16 %v4057
      %v4520 = vunpack.c.l.b16 %v4058
      %v4521 = vunpack.c.l.b16 %v4059
      %v4522 = vunpack.c.l.b16 %v4060
      %v4523 = vunpack.c.l.b16 %v4061
      %v4524 = vunpack.c.l.b16 %v4062
      %v4525 = vunpack.c.l.b16 %v4063
      %v4526 = vunpack.c.l.b16 %v4064
      %v4527 = vunpack.c.l.b16 %v4065
      %v4528 = vunpack.c.l.b16 %v4066
      %v4529 = vunpack.c.l.b16 %v4067
      %v4530 = vunpack.c.l.b16 %v4068
      %v4531 = vunpack.c.l.b16 %v4069
      %v4532 = vunpack.c.l.b16 %v4070
      %v4533 = vunpack.c.l.b16 %v4071
      %v4534 = vunpack.c.l.b16 %v4072
      %v4535 = vunpack.c.l.b16 %v4073
      %v4536 = vunpack.c.l.b16 %v4074
      %v4537 = vunpack.c.l.b16 %v4075
      %v4538 = vunpack.c.l.b16 %v4076
      %v4539 = vunpack.c.l.b16 %v4077
      %v4540 = vunpack.c.l.b16 %v4078
      %v4541 = vunpack.c.l.b16 %v4079
      %v4542 = vunpack.c.l.b16 %v4080
      %v4543 = vunpack.c.l.b16 %v4081
      %v4544 = vpack.c.b16 %v4497, %v4496
      %v4545 = vpack.c.b16 %v4499, %v4498
      %v4546 = vpack.c.b16 %v4501, %v4500
      %v4547 = vpack.c.b16 %v4503, %v4502
      %v4548 = vpack.c.b16 %v4505, %v4504
      %v4549 = vpack.c.b16 %v4507, %v4506
      %v4550 = vpack.c.b16 %v4509, %v4508
      %v4551 = vpack.c.b16 %v4511, %v4510
      %v4552 = vpack.c.b16 %v4513, %v4512
      %v4553 = vpack.c.b16 %v4515, %v4514
      %v4554 = vpack.c.b16 %v4517, %v4516
      %v4555 = vpack.c.b16 %v4519, %v4518
      %v4556 = vpack.c.b16 %v4521, %v4520
      %v4557 = vpack.c.b16 %v4523, %v4522
      %v4558 = vpack.c.b16 %v4525, %v4524
      %v4559 = vpack.c.b16 %v4527, %v4526
      %v4560 = vpack.c.b16 %v4529, %v4528
      %v4561 = vpack.c.b16 %v4531, %v4530
      %v4562 = vpack.c.b16 %v4533, %v4532
      %v4563 = vpack.c.b16 %v4535, %v4534
      %v4564 = vpack.c.b16 %v4537, %v4536
      %v4565 = vpack.c.b16 %v4539, %v4538
      %v4566 = vpack.c.b16 %v4541, %v4540
      %v4567 = vpack.c.b16 %v4543, %v4542
      %4592 = vmatpush.bf16.msra.mxu0 %v4551
      %4593 = vmatpush.bf16.msra.mxu0 %v4550
      %4594 = vmatpush.bf16.msra.mxu0 %v4549
      %4595 = vmatpush.bf16.msra.mxu0 %v4548
      %4596 = vmatpush.bf16.msra.mxu0 %v4547
      %4597 = vmatpush.bf16.msra.mxu0 %v4546
      %4598 = vmatpush.bf16.msra.mxu0 %v4545
      %4599 = vmatpush.bf16.msra.mxu0 %v4544
      %4600 = vmatmul.bf16.gmra.mxu0 %v3858
      %v4601 = vpop.f32.mrf.mxu0
      %v4602 = vadd.f32 %v4409, %v4601
      %v4603 = vpop.f32.mrf.mxu0
      %v4604 = vadd.f32 %v4411, %v4603
      %4605 = vmatmul.bf16.gmra.mxu0 %v3859
      %v4606 = vpop.f32.mrf.mxu0
      %v4607 = vadd.f32 %v4414, %v4606
      %v4608 = vpop.f32.mrf.mxu0
      %v4609 = vadd.f32 %v4416, %v4608
      %4610 = vmatmul.bf16.gmra.mxu0 %v3860
      %v4611 = vpop.f32.mrf.mxu0
      %v4612 = vadd.f32 %v4419, %v4611
      %v4613 = vpop.f32.mrf.mxu0
      %v4614 = vadd.f32 %v4421, %v4613
      %4615 = vmatmul.bf16.gmra.mxu0 %v3861
      %v4616 = vpop.f32.mrf.mxu0
      %v4617 = vadd.f32 %v4424, %v4616
      %v4618 = vpop.f32.mrf.mxu0
      %v4619 = vadd.f32 %v4426, %v4618
      %4620 = vmatmul.bf16.gmra.mxu0 %v3862
      %v4621 = vpop.f32.mrf.mxu0
      %v4622 = vadd.f32 %v4429, %v4621
      %v4623 = vpop.f32.mrf.mxu0
      %v4624 = vadd.f32 %v4431, %v4623
      %4625 = vmatmul.bf16.gmra.mxu0 %v3863
      %v4626 = vpop.f32.mrf.mxu0
      %v4627 = vadd.f32 %v4434, %v4626
      %v4628 = vpop.f32.mrf.mxu0
      %v4629 = vadd.f32 %v4436, %v4628
      %4630 = vmatmul.bf16.gmra.mxu0 %v3864
      %v4631 = vpop.f32.mrf.mxu0
      %v4632 = vadd.f32 %v4439, %v4631
      %v4633 = vpop.f32.mrf.mxu0
      %v4634 = vadd.f32 %v4441, %v4633
      %4635 = vmatmul.bf16.gmra.mxu0 %v3865
      %v4636 = vpop.f32.mrf.mxu0
      %v4637 = vadd.f32 %v4444, %v4636
      %v4638 = vpop.f32.mrf.mxu0
      %v4639 = vadd.f32 %v4446, %v4638
      %4640 = vdwg.mxu0
      %4641 = vmatpush.bf16.msra.mxu0 %v4559
      %4642 = vmatpush.bf16.msra.mxu0 %v4558
      %4643 = vmatpush.bf16.msra.mxu0 %v4557
      %4644 = vmatpush.bf16.msra.mxu0 %v4556
      %4645 = vmatpush.bf16.msra.mxu0 %v4555
      %4646 = vmatpush.bf16.msra.mxu0 %v4554
      %4647 = vmatpush.bf16.msra.mxu0 %v4553
      %4648 = vmatpush.bf16.msra.mxu0 %v4552
      %4649 = vmatmul.bf16.gmra.mxu0 %v3909
      %v4650 = vpop.f32.mrf.mxu0
      %v4651 = vadd.f32 %v4602, %v4650
      %v4652 = vpop.f32.mrf.mxu0
      %v4653 = vadd.f32 %v4604, %v4652
      %4654 = vmatmul.bf16.gmra.mxu0 %v3921
      %v4655 = vpop.f32.mrf.mxu0
      %v4656 = vadd.f32 %v4607, %v4655
      %v4657 = vpop.f32.mrf.mxu0
      %v4658 = vadd.f32 %v4609, %v4657
      %4659 = vmatmul.bf16.gmra.mxu0 %v3933
      %v4660 = vpop.f32.mrf.mxu0
      %v4661 = vadd.f32 %v4612, %v4660
      %v4662 = vpop.f32.mrf.mxu0
      %v4663 = vadd.f32 %v4614, %v4662
      %4664 = vmatmul.bf16.gmra.mxu0 %v3945
      %v4665 = vpop.f32.mrf.mxu0
      %v4666 = vadd.f32 %v4617, %v4665
      %v4667 = vpop.f32.mrf.mxu0
      %v4668 = vadd.f32 %v4619, %v4667
      %4669 = vmatmul.bf16.gmra.mxu0 %v3957
      %v4670 = vpop.f32.mrf.mxu0
      %v4671 = vadd.f32 %v4622, %v4670
      %v4672 = vpop.f32.mrf.mxu0
      %v4673 = vadd.f32 %v4624, %v4672
      %4674 = vmatmul.bf16.gmra.mxu0 %v3969
      %v4675 = vpop.f32.mrf.mxu0
      %v4676 = vadd.f32 %v4627, %v4675
      %v4677 = vpop.f32.mrf.mxu0
      %v4678 = vadd.f32 %v4629, %v4677
      %4679 = vmatmul.bf16.gmra.mxu0 %v3981
      %v4680 = vpop.f32.mrf.mxu0
      %v4681 = vadd.f32 %v4632, %v4680
      %v4682 = vpop.f32.mrf.mxu0
      %v4683 = vadd.f32 %v4634, %v4682
      %4684 = vmatmul.bf16.gmra.mxu0 %v3993
      %v4685 = vpop.f32.mrf.mxu0
      %v4686 = vadd.f32 %v4637, %v4685
      %v4687 = vpop.f32.mrf.mxu0
      %v4688 = vadd.f32 %v4639, %v4687
      %4689 = vdwg.mxu0
      %4690 = vmatpush.bf16.msra.mxu0 %v4567
      %4691 = vmatpush.bf16.msra.mxu0 %v4566
      %4692 = vmatpush.bf16.msra.mxu0 %v4565
      %4693 = vmatpush.bf16.msra.mxu0 %v4564
      %4694 = vmatpush.bf16.msra.mxu0 %v4563
      %4695 = vmatpush.bf16.msra.mxu0 %v4562
      %4696 = vmatpush.bf16.msra.mxu0 %v4561
      %4697 = vmatpush.bf16.msra.mxu0 %v4560
      %4698 = vmatmul.bf16.gmra.mxu0 %v4004
      %v4699 = vpop.f32.mrf.mxu0
      %v4700 = vadd.f32 %v4651, %v4699
      %v4701 = vpop.f32.mrf.mxu0
      %v4702 = vadd.f32 %v4653, %v4701
      %4703 = vmatmul.bf16.gmra.mxu0 %v4007
      %v4704 = vpop.f32.mrf.mxu0
      %v4705 = vadd.f32 %v4656, %v4704
      %v4706 = vpop.f32.mrf.mxu0
      %v4707 = vadd.f32 %v4658, %v4706
      %4708 = vmatmul.bf16.gmra.mxu0 %v4010
      %v4709 = vpop.f32.mrf.mxu0
      %v4710 = vadd.f32 %v4661, %v4709
      %v4711 = vpop.f32.mrf.mxu0
      %v4712 = vadd.f32 %v4663, %v4711
      %4713 = vmatmul.bf16.gmra.mxu0 %v4013
      %v4714 = vpop.f32.mrf.mxu0
      %v4715 = vadd.f32 %v4666, %v4714
      %v4716 = vpop.f32.mrf.mxu0
      %v4717 = vadd.f32 %v4668, %v4716
      %4718 = vmatmul.bf16.gmra.mxu0 %v4016
      %v4719 = vpop.f32.mrf.mxu0
      %v4720 = vadd.f32 %v4671, %v4719
      %v4721 = vpop.f32.mrf.mxu0
      %v4722 = vadd.f32 %v4673, %v4721
      %4723 = vmatmul.bf16.gmra.mxu0 %v4019
      %v4724 = vpop.f32.mrf.mxu0
      %v4725 = vadd.f32 %v4676, %v4724
      %v4726 = vpop.f32.mrf.mxu0
      %v4727 = vadd.f32 %v4678, %v4726
      %4728 = vmatmul.bf16.gmra.mxu0 %v4022
      %v4729 = vpop.f32.mrf.mxu0
      %v4730 = vadd.f32 %v4681, %v4729
      %v4731 = vpop.f32.mrf.mxu0
      %v4732 = vadd.f32 %v4683, %v4731
      %4733 = vmatmul.bf16.gmra.mxu0 %v4025
      %v4734 = vpop.f32.mrf.mxu0
      %v4735 = vadd.f32 %v4686, %v4734
      %v4736 = vpop.f32.mrf.mxu0
      %v4737 = vadd.f32 %v4688, %v4736
      %4738 = vdwg.mxu0
      %v4741 = vunpack.c.l.b16 %v3822
      %v4742 = vunpack.c.l.b16 %v3823
      %v4743 = vpack.c.b16 %v4742, %v4741
      %v4746 = vunpack.c.l.b16 %v3824
      %v4747 = vpack.c.b16 %v4746, %v4746
      %v4749 = vshrl.u32 %v4743, 16
      %v4751 = vshll.u32 %v4743, 16
      %v4753 = vrot.slane %v4751, 1
      %v4754 = vor.u32 %v4749, %v4753
      %v4756 = vshll.u32 %v4747, 16
      %v4758 = vrot.slane %v4756, 1
      %v4759 = vsel %vm592, %v4754, %v4758
      %v4761 = vrot.slane %v4743, 1
      %v4762 = vrot.slane %v4747, 1
      %v4763 = vsel %vm749, %v4761, %v4762
      %s4765 = scalar_lea.vmem %s5, 384
      %v4766 = vld [vmem:[%s4765] sm:$0xf]
      %v4767 = vld [vmem:[%s4765 + $0x4] sm:$0xf]
      %v4768 = vld [vmem:[%s4765 + $0x8] sm:$0xf]
      %v4769 = vld [vmem:[%s4765 + $0xc] sm:$0xf]
      %v4770 = vld [vmem:[%s4765 + $0x10] sm:$0xf]
      %v4771 = vld [vmem:[%s4765 + $0x14] sm:$0xf]
      %v4772 = vld [vmem:[%s4765 + $0x18] sm:$0xf]
      %v4773 = vld [vmem:[%s4765 + $0x1c] sm:$0xf]
      %v4774 = vld [vmem:[%s4765 + $0x20] sm:$0xf]
      %v4775 = vld [vmem:[%s4765 + $0x24] sm:$0xf]
      %v4776 = vld [vmem:[%s4765 + $0x28] sm:$0xf]
      %v4777 = vld [vmem:[%s4765 + $0x2c] sm:$0xf]
      %v4778 = vld [vmem:[%s4765 + $0x30] sm:$0xf]
      %v4779 = vld [vmem:[%s4765 + $0x34] sm:$0xf]
      %v4780 = vld [vmem:[%s4765 + $0x38] sm:$0xf]
      %v4781 = vld [vmem:[%s4765 + $0x3c] sm:$0xf]
      %v4782 = vld [vmem:[%s4765 + $0x40] sm:$0xf]
      %v4783 = vld [vmem:[%s4765 + $0x44] sm:$0xf]
      %v4784 = vld [vmem:[%s4765 + $0x48] sm:$0xf]
      %v4785 = vld [vmem:[%s4765 + $0x4c] sm:$0xf]
      %v4786 = vld [vmem:[%s4765 + $0x50] sm:$0xf]
      %v4787 = vld [vmem:[%s4765 + $0x54] sm:$0xf]
      %v4788 = vld [vmem:[%s4765 + $0x58] sm:$0xf]
      %v4789 = vld [vmem:[%s4765 + $0x5c] sm:$0xf]
      %v4790 = vld [vmem:[%s4765 + $0x60] sm:$0xf]
      %v4791 = vld [vmem:[%s4765 + $0x64] sm:$0xf]
      %v4792 = vld [vmem:[%s4765 + $0x68] sm:$0xf]
      %v4793 = vld [vmem:[%s4765 + $0x6c] sm:$0xf]
      %v4794 = vld [vmem:[%s4765 + $0x70] sm:$0xf]
      %v4795 = vld [vmem:[%s4765 + $0x74] sm:$0xf]
      %v4796 = vld [vmem:[%s4765 + $0x78] sm:$0xf]
      %v4797 = vld [vmem:[%s4765 + $0x7c] sm:$0xf]
      %v4798 = vld [vmem:[%s4765 + $0x80] sm:$0xf]
      %v4799 = vld [vmem:[%s4765 + $0x84] sm:$0xf]
      %v4800 = vld [vmem:[%s4765 + $0x88] sm:$0xf]
      %v4801 = vld [vmem:[%s4765 + $0x8c] sm:$0xf]
      %v4802 = vld [vmem:[%s4765 + $0x90] sm:$0xf]
      %v4803 = vld [vmem:[%s4765 + $0x94] sm:$0xf]
      %v4804 = vld [vmem:[%s4765 + $0x98] sm:$0xf]
      %v4805 = vld [vmem:[%s4765 + $0x9c] sm:$0xf]
      %v4806 = vld [vmem:[%s4765 + $0xa0] sm:$0xf]
      %v4807 = vld [vmem:[%s4765 + $0xa4] sm:$0xf]
      %v4808 = vld [vmem:[%s4765 + $0xa8] sm:$0xf]
      %v4809 = vld [vmem:[%s4765 + $0xac] sm:$0xf]
      %v4810 = vld [vmem:[%s4765 + $0xb0] sm:$0xf]
      %v4811 = vld [vmem:[%s4765 + $0xb4] sm:$0xf]
      %v4812 = vld [vmem:[%s4765 + $0xb8] sm:$0xf]
      %v4813 = vld [vmem:[%s4765 + $0xbc] sm:$0xf]
      %v4862 = vunpack.c.l.b16 %v4766
      %v4863 = vunpack.c.l.b16 %v4767
      %v4864 = vunpack.c.l.b16 %v4768
      %v4865 = vunpack.c.l.b16 %v4769
      %v4866 = vunpack.c.l.b16 %v4770
      %v4867 = vunpack.c.l.b16 %v4771
      %v4868 = vunpack.c.l.b16 %v4772
      %v4869 = vunpack.c.l.b16 %v4773
      %v4870 = vunpack.c.l.b16 %v4774
      %v4871 = vunpack.c.l.b16 %v4775
      %v4872 = vunpack.c.l.b16 %v4776
      %v4873 = vunpack.c.l.b16 %v4777
      %v4874 = vunpack.c.l.b16 %v4778
      %v4875 = vunpack.c.l.b16 %v4779
      %v4876 = vunpack.c.l.b16 %v4780
      %v4877 = vunpack.c.l.b16 %v4781
      %v4878 = vunpack.c.l.b16 %v4782
      %v4879 = vunpack.c.l.b16 %v4783
      %v4880 = vunpack.c.l.b16 %v4784
      %v4881 = vunpack.c.l.b16 %v4785
      %v4882 = vunpack.c.l.b16 %v4786
      %v4883 = vunpack.c.l.b16 %v4787
      %v4884 = vunpack.c.l.b16 %v4788
      %v4885 = vunpack.c.l.b16 %v4789
      %v4886 = vunpack.c.l.b16 %v4790
      %v4887 = vunpack.c.l.b16 %v4791
      %v4888 = vunpack.c.l.b16 %v4792
      %v4889 = vunpack.c.l.b16 %v4793
      %v4890 = vunpack.c.l.b16 %v4794
      %v4891 = vunpack.c.l.b16 %v4795
      %v4892 = vunpack.c.l.b16 %v4796
      %v4893 = vunpack.c.l.b16 %v4797
      %v4894 = vunpack.c.l.b16 %v4798
      %v4895 = vunpack.c.l.b16 %v4799
      %v4896 = vunpack.c.l.b16 %v4800
      %v4897 = vunpack.c.l.b16 %v4801
      %v4898 = vunpack.c.l.b16 %v4802
      %v4899 = vunpack.c.l.b16 %v4803
      %v4900 = vunpack.c.l.b16 %v4804
      %v4901 = vunpack.c.l.b16 %v4805
      %v4902 = vunpack.c.l.b16 %v4806
      %v4903 = vunpack.c.l.b16 %v4807
      %v4904 = vunpack.c.l.b16 %v4808
      %v4905 = vunpack.c.l.b16 %v4809
      %v4906 = vunpack.c.l.b16 %v4810
      %v4907 = vunpack.c.l.b16 %v4811
      %v4908 = vunpack.c.l.b16 %v4812
      %v4909 = vunpack.c.l.b16 %v4813
      %v4910 = vpack.c.b16 %v4863, %v4862
      %v4911 = vpack.c.b16 %v4865, %v4864
      %v4912 = vpack.c.b16 %v4867, %v4866
      %v4913 = vpack.c.b16 %v4869, %v4868
      %v4914 = vpack.c.b16 %v4871, %v4870
      %v4915 = vpack.c.b16 %v4873, %v4872
      %v4916 = vpack.c.b16 %v4875, %v4874
      %v4917 = vpack.c.b16 %v4877, %v4876
      %v4918 = vpack.c.b16 %v4879, %v4878
      %v4919 = vpack.c.b16 %v4881, %v4880
      %v4920 = vpack.c.b16 %v4883, %v4882
      %v4921 = vpack.c.b16 %v4885, %v4884
      %v4922 = vpack.c.b16 %v4887, %v4886
      %v4923 = vpack.c.b16 %v4889, %v4888
      %v4924 = vpack.c.b16 %v4891, %v4890
      %v4925 = vpack.c.b16 %v4893, %v4892
      %v4926 = vpack.c.b16 %v4895, %v4894
      %v4927 = vpack.c.b16 %v4897, %v4896
      %v4928 = vpack.c.b16 %v4899, %v4898
      %v4929 = vpack.c.b16 %v4901, %v4900
      %v4930 = vpack.c.b16 %v4903, %v4902
      %v4931 = vpack.c.b16 %v4905, %v4904
      %v4932 = vpack.c.b16 %v4907, %v4906
      %v4933 = vpack.c.b16 %v4909, %v4908
      %4958 = vmatpush.bf16.msra.mxu0 %v4917
      %4959 = vmatpush.bf16.msra.mxu0 %v4916
      %4960 = vmatpush.bf16.msra.mxu0 %v4915
      %4961 = vmatpush.bf16.msra.mxu0 %v4914
      %4962 = vmatpush.bf16.msra.mxu0 %v4913
      %4963 = vmatpush.bf16.msra.mxu0 %v4912
      %4964 = vmatpush.bf16.msra.mxu0 %v4911
      %4965 = vmatpush.bf16.msra.mxu0 %v4910
      %4966 = vmatmul.bf16.gmra.mxu0 %v3860
      %v4967 = vpop.f32.mrf.mxu0
      %v4968 = vadd.f32 0.0, %v4967
      %v4969 = vpop.f32.mrf.mxu0
      %v4970 = vadd.f32 0.0, %v4969
      %4971 = vmatmul.bf16.gmra.mxu0 %v3861
      %v4972 = vpop.f32.mrf.mxu0
      %v4973 = vadd.f32 0.0, %v4972
      %v4974 = vpop.f32.mrf.mxu0
      %v4975 = vadd.f32 0.0, %v4974
      %4976 = vmatmul.bf16.gmra.mxu0 %v3862
      %v4977 = vpop.f32.mrf.mxu0
      %v4978 = vadd.f32 0.0, %v4977
      %v4979 = vpop.f32.mrf.mxu0
      %v4980 = vadd.f32 0.0, %v4979
      %4981 = vmatmul.bf16.gmra.mxu0 %v3863
      %v4982 = vpop.f32.mrf.mxu0
      %v4983 = vadd.f32 0.0, %v4982
      %v4984 = vpop.f32.mrf.mxu0
      %v4985 = vadd.f32 0.0, %v4984
      %4986 = vmatmul.bf16.gmra.mxu0 %v3864
      %v4987 = vpop.f32.mrf.mxu0
      %v4988 = vadd.f32 0.0, %v4987
      %v4989 = vpop.f32.mrf.mxu0
      %v4990 = vadd.f32 0.0, %v4989
      %4991 = vmatmul.bf16.gmra.mxu0 %v3865
      %v4992 = vpop.f32.mrf.mxu0
      %v4993 = vadd.f32 0.0, %v4992
      %v4994 = vpop.f32.mrf.mxu0
      %v4995 = vadd.f32 0.0, %v4994
      %4996 = vmatmul.bf16.gmra.mxu0 %v4086
      %v4997 = vpop.f32.mrf.mxu0
      %v4998 = vadd.f32 0.0, %v4997
      %v4999 = vpop.f32.mrf.mxu0
      %v5000 = vadd.f32 0.0, %v4999
      %5001 = vmatmul.bf16.gmra.mxu0 %v4743
      %v5002 = vpop.f32.mrf.mxu0
      %v5003 = vadd.f32 0.0, %v5002
      %v5004 = vpop.f32.mrf.mxu0
      %v5005 = vadd.f32 0.0, %v5004
      %5006 = vdwg.mxu0
      %5007 = vmatpush.bf16.msra.mxu0 %v4925
      %5008 = vmatpush.bf16.msra.mxu0 %v4924
      %5009 = vmatpush.bf16.msra.mxu0 %v4923
      %5010 = vmatpush.bf16.msra.mxu0 %v4922
      %5011 = vmatpush.bf16.msra.mxu0 %v4921
      %5012 = vmatpush.bf16.msra.mxu0 %v4920
      %5013 = vmatpush.bf16.msra.mxu0 %v4919
      %5014 = vmatpush.bf16.msra.mxu0 %v4918
      %5015 = vmatmul.bf16.gmra.mxu0 %v3933
      %v5016 = vpop.f32.mrf.mxu0
      %v5017 = vadd.f32 %v4968, %v5016
      %v5018 = vpop.f32.mrf.mxu0
      %v5019 = vadd.f32 %v4970, %v5018
      %5020 = vmatmul.bf16.gmra.mxu0 %v3945
      %v5021 = vpop.f32.mrf.mxu0
      %v5022 = vadd.f32 %v4973, %v5021
      %v5023 = vpop.f32.mrf.mxu0
      %v5024 = vadd.f32 %v4975, %v5023
      %5025 = vmatmul.bf16.gmra.mxu0 %v3957
      %v5026 = vpop.f32.mrf.mxu0
      %v5027 = vadd.f32 %v4978, %v5026
      %v5028 = vpop.f32.mrf.mxu0
      %v5029 = vadd.f32 %v4980, %v5028
      %5030 = vmatmul.bf16.gmra.mxu0 %v3969
      %v5031 = vpop.f32.mrf.mxu0
      %v5032 = vadd.f32 %v4983, %v5031
      %v5033 = vpop.f32.mrf.mxu0
      %v5034 = vadd.f32 %v4985, %v5033
      %5035 = vmatmul.bf16.gmra.mxu0 %v3981
      %v5036 = vpop.f32.mrf.mxu0
      %v5037 = vadd.f32 %v4988, %v5036
      %v5038 = vpop.f32.mrf.mxu0
      %v5039 = vadd.f32 %v4990, %v5038
      %5040 = vmatmul.bf16.gmra.mxu0 %v3993
      %v5041 = vpop.f32.mrf.mxu0
      %v5042 = vadd.f32 %v4993, %v5041
      %v5043 = vpop.f32.mrf.mxu0
      %v5044 = vadd.f32 %v4995, %v5043
      %5045 = vmatmul.bf16.gmra.mxu0 %v4102
      %v5046 = vpop.f32.mrf.mxu0
      %v5047 = vadd.f32 %v4998, %v5046
      %v5048 = vpop.f32.mrf.mxu0
      %v5049 = vadd.f32 %v5000, %v5048
      %5050 = vmatmul.bf16.gmra.mxu0 %v4759
      %v5051 = vpop.f32.mrf.mxu0
      %v5052 = vadd.f32 %v5003, %v5051
      %v5053 = vpop.f32.mrf.mxu0
      %v5054 = vadd.f32 %v5005, %v5053
      %5055 = vdwg.mxu0
      %5056 = vmatpush.bf16.msra.mxu0 %v4933
      %5057 = vmatpush.bf16.msra.mxu0 %v4932
      %5058 = vmatpush.bf16.msra.mxu0 %v4931
      %5059 = vmatpush.bf16.msra.mxu0 %v4930
      %5060 = vmatpush.bf16.msra.mxu0 %v4929
      %5061 = vmatpush.bf16.msra.mxu0 %v4928
      %5062 = vmatpush.bf16.msra.mxu0 %v4927
      %5063 = vmatpush.bf16.msra.mxu0 %v4926
      %5064 = vmatmul.bf16.gmra.mxu0 %v4010
      %v5065 = vpop.f32.mrf.mxu0
      %v5066 = vadd.f32 %v5017, %v5065
      %v5067 = vpop.f32.mrf.mxu0
      %v5068 = vadd.f32 %v5019, %v5067
      %5069 = vmatmul.bf16.gmra.mxu0 %v4013
      %v5070 = vpop.f32.mrf.mxu0
      %v5071 = vadd.f32 %v5022, %v5070
      %v5072 = vpop.f32.mrf.mxu0
      %v5073 = vadd.f32 %v5024, %v5072
      %5074 = vmatmul.bf16.gmra.mxu0 %v4016
      %v5075 = vpop.f32.mrf.mxu0
      %v5076 = vadd.f32 %v5027, %v5075
      %v5077 = vpop.f32.mrf.mxu0
      %v5078 = vadd.f32 %v5029, %v5077
      %5079 = vmatmul.bf16.gmra.mxu0 %v4019
      %v5080 = vpop.f32.mrf.mxu0
      %v5081 = vadd.f32 %v5032, %v5080
      %v5082 = vpop.f32.mrf.mxu0
      %v5083 = vadd.f32 %v5034, %v5082
      %5084 = vmatmul.bf16.gmra.mxu0 %v4022
      %v5085 = vpop.f32.mrf.mxu0
      %v5086 = vadd.f32 %v5037, %v5085
      %v5087 = vpop.f32.mrf.mxu0
      %v5088 = vadd.f32 %v5039, %v5087
      %5089 = vmatmul.bf16.gmra.mxu0 %v4025
      %v5090 = vpop.f32.mrf.mxu0
      %v5091 = vadd.f32 %v5042, %v5090
      %v5092 = vpop.f32.mrf.mxu0
      %v5093 = vadd.f32 %v5044, %v5092
      %5094 = vmatmul.bf16.gmra.mxu0 %v4106
      %v5095 = vpop.f32.mrf.mxu0
      %v5096 = vadd.f32 %v5047, %v5095
      %v5097 = vpop.f32.mrf.mxu0
      %v5098 = vadd.f32 %v5049, %v5097
      %5099 = vmatmul.bf16.gmra.mxu0 %v4763
      %v5100 = vpop.f32.mrf.mxu0
      %v5101 = vadd.f32 %v5052, %v5100
      %v5102 = vpop.f32.mrf.mxu0
      %v5103 = vadd.f32 %v5054, %v5102
      %5104 = vdwg.mxu0
      %v5105 = vadd.f32 %v4700, %v5066
      %v5106 = vadd.f32 %v4702, %v5068
      %v5107 = vadd.f32 %v4705, %v5071
      %v5108 = vadd.f32 %v4707, %v5073
      %v5109 = vadd.f32 %v4710, %v5076
      %v5110 = vadd.f32 %v4712, %v5078
      %v5111 = vadd.f32 %v4715, %v5081
      %v5112 = vadd.f32 %v4717, %v5083
      %v5113 = vadd.f32 %v4720, %v5086
      %v5114 = vadd.f32 %v4722, %v5088
      %v5115 = vadd.f32 %v4725, %v5091
      %v5116 = vadd.f32 %v4727, %v5093
      %v5117 = vadd.f32 %v4730, %v5096
      %v5118 = vadd.f32 %v4732, %v5098
      %v5119 = vadd.f32 %v4735, %v5101
      %v5120 = vadd.f32 %v4737, %v5103
      %v5122 = vperm.slane %v3825, 0
      %v5124 = vadd.f32 %v5105, %v5122
      %v5125 = vadd.f32 %v5106, %v5122
      %v5126 = vadd.f32 %v5107, %v5122
      %v5127 = vadd.f32 %v5108, %v5122
      %v5128 = vadd.f32 %v5109, %v5122
      %v5129 = vadd.f32 %v5110, %v5122
      %v5130 = vadd.f32 %v5111, %v5122
      %v5131 = vadd.f32 %v5112, %v5122
      %v5132 = vadd.f32 %v5113, %v5122
      %v5133 = vadd.f32 %v5114, %v5122
      %v5134 = vadd.f32 %v5115, %v5122
      %v5135 = vadd.f32 %v5116, %v5122
      %v5136 = vadd.f32 %v5117, %v5122
      %v5137 = vadd.f32 %v5118, %v5122
      %v5138 = vadd.f32 %v5119, %v5122
      %v5139 = vadd.f32 %v5120, %v5122
      %v5140 = vadd.f32 %v5124, %v5125
      %v5141 = vadd.f32 %v5140, %v5126
      %v5142 = vadd.f32 %v5141, %v5127
      %v5143 = vadd.f32 %v5142, %v5128
      %v5144 = vadd.f32 %v5143, %v5129
      %v5145 = vadd.f32 %v5144, %v5130
      %v5146 = vadd.f32 %v5145, %v5131
      %v5147 = vadd.f32 %v5146, %v5132
      %v5148 = vadd.f32 %v5147, %v5133
      %v5149 = vadd.f32 %v5148, %v5134
      %v5150 = vadd.f32 %v5149, %v5135
      %v5151 = vadd.f32 %v5150, %v5136
      %v5152 = vadd.f32 %v5151, %v5137
      %v5153 = vadd.f32 %v5152, %v5138
      %v5154 = vadd.f32 %v5153, %v5139
      %v5155 = vrot.slane %v5154, 4
      %v5156 = vadd.f32 %v5154, %v5155
      %v5157 = vrot.slane %v5156, 2
      %v5158 = vadd.f32 %v5156, %v5157
      %v5159 = vrot.slane %v5158, 1
      %v5160 = vadd.f32 %v5158, %v5159
      %v5161 = vmul.f32 %v5124, %v5124
      %v5162 = vmul.f32 %v5125, %v5125
      %v5163 = vmul.f32 %v5126, %v5126
      %v5164 = vmul.f32 %v5127, %v5127
      %v5165 = vmul.f32 %v5128, %v5128
      %v5166 = vmul.f32 %v5129, %v5129
      %v5167 = vmul.f32 %v5130, %v5130
      %v5168 = vmul.f32 %v5131, %v5131
      %v5169 = vmul.f32 %v5132, %v5132
      %v5170 = vmul.f32 %v5133, %v5133
      %v5171 = vmul.f32 %v5134, %v5134
      %v5172 = vmul.f32 %v5135, %v5135
      %v5173 = vmul.f32 %v5136, %v5136
      %v5174 = vmul.f32 %v5137, %v5137
      %v5175 = vmul.f32 %v5138, %v5138
      %v5176 = vmul.f32 %v5139, %v5139
      %v5177 = vadd.f32 %v5161, %v5162
      %v5178 = vadd.f32 %v5177, %v5163
      %v5179 = vadd.f32 %v5178, %v5164
      %v5180 = vadd.f32 %v5179, %v5165
      %v5181 = vadd.f32 %v5180, %v5166
      %v5182 = vadd.f32 %v5181, %v5167
      %v5183 = vadd.f32 %v5182, %v5168
      %v5184 = vadd.f32 %v5183, %v5169
      %v5185 = vadd.f32 %v5184, %v5170
      %v5186 = vadd.f32 %v5185, %v5171
      %v5187 = vadd.f32 %v5186, %v5172
      %v5188 = vadd.f32 %v5187, %v5173
      %v5189 = vadd.f32 %v5188, %v5174
      %v5190 = vadd.f32 %v5189, %v5175
      %v5191 = vadd.f32 %v5190, %v5176
      %v5192 = vrot.slane %v5191, 4
      %v5193 = vadd.f32 %v5191, %v5192
      %v5194 = vrot.slane %v5193, 2
      %v5195 = vadd.f32 %v5193, %v5194
      %v5196 = vrot.slane %v5195, 1
      %v5197 = vadd.f32 %v5195, %v5196
      %vm5198 = vcmask 1040384
      %v5199 = vsel %vm5198, %v5160, %v5197
      %5200 = vst [vmem:[%s351] sm:$0x3] %v5199
      %v5201 = vpack.c.bf16 %v5124, %v5124
      %v5202 = vpack.c.bf16 %v5125, %v5125
      %v5203 = vpack.c.bf16 %v5126, %v5126
      %v5204 = vpack.c.bf16 %v5127, %v5127
      %v5205 = vpack.c.bf16 %v5128, %v5128
      %v5206 = vpack.c.bf16 %v5129, %v5129
      %v5207 = vpack.c.bf16 %v5130, %v5130
      %v5208 = vpack.c.bf16 %v5131, %v5131
      %v5209 = vpack.c.bf16 %v5132, %v5132
      %v5210 = vpack.c.bf16 %v5133, %v5133
      %v5211 = vpack.c.bf16 %v5134, %v5134
      %v5212 = vpack.c.bf16 %v5135, %v5135
      %v5213 = vpack.c.bf16 %v5136, %v5136
      %v5214 = vpack.c.bf16 %v5137, %v5137
      %v5215 = vpack.c.bf16 %v5138, %v5138
      %v5216 = vpack.c.bf16 %v5139, %v5139
      %5217 = vst [vmem:[%s342] sm:$0xf] %v5201
      %5218 = vst [vmem:[%s342 + $0x4] sm:$0xf] %v5202
      %5219 = vst [vmem:[%s342 + $0x8] sm:$0xf] %v5203
      %5220 = vst [vmem:[%s342 + $0xc] sm:$0xf] %v5204
      %5221 = vst [vmem:[%s342 + $0x10] sm:$0xf] %v5205
      %5222 = vst [vmem:[%s342 + $0x14] sm:$0xf] %v5206
      %5223 = vst [vmem:[%s342 + $0x18] sm:$0xf] %v5207
      %5224 = vst [vmem:[%s342 + $0x1c] sm:$0xf] %v5208
      %5225 = vst [vmem:[%s342 + $0x20] sm:$0xf] %v5209
      %5226 = vst [vmem:[%s342 + $0x24] sm:$0xf] %v5210
      %5227 = vst [vmem:[%s342 + $0x28] sm:$0xf] %v5211
      %5228 = vst [vmem:[%s342 + $0x2c] sm:$0xf] %v5212
      %5229 = vst [vmem:[%s342 + $0x30] sm:$0xf] %v5213
      %5230 = vst [vmem:[%s342 + $0x34] sm:$0xf] %v5214
      %5231 = vst [vmem:[%s342 + $0x38] sm:$0xf] %v5215
      %5232 = vst [vmem:[%s342 + $0x3c] sm:$0xf] %v5216
      %s5233 = smul.u32 8, %s25
      %p5234 = scmp.lt.s32.totalorder %s24, 1
      %s5235 = scalar_select %p5234, %s24, 1
      %p5236 = scmp.lt.s32.totalorder %s5233, 15
      %s5237 = scalar_select %p5236, %s5233, 15
      %s5238 = smul.addr %s5237, 2
      %s5239 = smul.addr %s5235, 32
      %s5240 = sadd.s32 %s5238, %s5239
      %s5241 = smul.addr %s5240, 4
      %s5242 = scalar_lea.vmem %s7, %s5241
      %p5243 = scmp.lt.s32.totalorder %s24, 1
      %s5244 = scalar_select %p5243, %s24, 1
      %p5245 = scmp.lt.s32.totalorder %s25, 1
      %s5246 = scalar_select %p5245, %s25, 1
      %s5247 = smul.addr %s5244, 2
      %s5248 = sadd.s32 %s5246, %s5247
      %s5249 = smul.addr %s5248, 2
      %s5250 = scalar_lea.vmem %s8, %s5249
      // Predicated region
      $region65: #{resnet_bottleneck_forward.2} parent=47 // pred_check
        %p5251 = pneg %p204
      $region66: #{resnet_bottleneck_forward.2} parent=47 // pred_check_branch
        %5253 = sbr.rel (%p5251) target = $region68
      $region67: #{resnet_bottleneck_forward.2} parent=47 // pred_region
        %s5254 = smul.u32 8, %s25
      $region68: #{resnet_bottleneck_forward.2} parent=47 // pred_fallthru
        _
      // Predicated region
      $region69: #{resnet_bottleneck_forward.2} parent=47 // pred_check
        %p5255 = pneg %p232
      $region70: #{resnet_bottleneck_forward.2} parent=47 // pred_check_branch
        %5257 = sbr.rel (%p5255) target = $region72
      $region71: #{resnet_bottleneck_forward.2} parent=47 // pred_region
        _
      $region72: #{resnet_bottleneck_forward.2} parent=47 // pred_fallthru
        _
    $region48: #{resnet_bottleneck_forward.2} parent=5 // pred_fallthru
      _
    %p5258 = scmp.le.s32.totalorder 2, %s15
    // Predicated region
    $region73: #{resnet_bottleneck_forward.2} parent=5 // pred_check
      %p5259 = pneg %p5258
    $region74: #{resnet_bottleneck_forward.2} parent=5 // pred_check_branch
      %5261 = sbr.rel (%p5259) target = $region76
    $region75: #{resnet_bottleneck_forward.2} parent=5 // pred_region
      %s5262 = ssub.s32 %s15, 2
      // Predicated region
      $region77: #{resnet_bottleneck_forward.2} parent=75 // pred_check
        %p5263 = pneg %p210
      $region78: #{resnet_bottleneck_forward.2} parent=75 // pred_check_branch
        %5265 = sbr.rel (%p5263) target = $region80
      $region79: #{resnet_bottleneck_forward.2} parent=75 // pred_region
        %s5266 = smul.u32 8, %s27
        %p5267 = scmp.lt.s32.totalorder %s26, 1
        %s5268 = scalar_select %p5267, %s26, 1
        %p5269 = scmp.lt.s32.totalorder %s5266, 15
        %s5270 = scalar_select %p5269, %s5266, 15
        %s5271 = smul.addr %s5270, 2
        %s5272 = smul.addr %s5268, 32
        %s5273 = sadd.s32 %s5271, %s5272
        %s5274 = smul.addr %s5273, 4
        %s5275 = scalar_lea.vmem %s7, %s5274
      $region80: #{resnet_bottleneck_forward.2} parent=75 // pred_fallthru
        _
      // Predicated region
      $region81: #{resnet_bottleneck_forward.2} parent=75 // pred_check
        %p5276 = pneg %p238
      $region82: #{resnet_bottleneck_forward.2} parent=75 // pred_check_branch
        %5278 = sbr.rel (%p5276) target = $region84
      $region83: #{resnet_bottleneck_forward.2} parent=75 // pred_region
        %p5279 = scmp.lt.s32.totalorder %s26, 1
        %s5280 = scalar_select %p5279, %s26, 1
        %p5281 = scmp.lt.s32.totalorder %s27, 1
        %s5282 = scalar_select %p5281, %s27, 1
        %s5283 = smul.addr %s5280, 2
        %s5284 = sadd.s32 %s5282, %s5283
        %s5285 = smul.addr %s5284, 2
        %s5286 = scalar_lea.vmem %s8, %s5285
      $region84: #{resnet_bottleneck_forward.2} parent=75 // pred_fallthru
        _
    $region76: #{resnet_bottleneck_forward.2} parent=5 // pred_fallthru
      _
  $region6: #{resnet_bottleneck_forward.2} parent=0 // loop_footer
    %s19 = sadd.s32 1, %s15
  $region7: #{resnet_bottleneck_forward.2} parent=0 // loop_footer_branch
    %14 = sbr.rel target = $region3
  $region8: #{resnet_bottleneck_forward.2} parent=0 // loop_exit
    _

</llo_original>
